<compile_context>
chip_gen: v5e
topology: v5e:2x2
jax: 0.10.0
libtpu: 0.0.40
codegen_flags: <defaults>
</compile_context>

<pallas_src>
import jax
import jax.numpy as jnp
from jax.experimental import pallas as pl
from jax.experimental.pallas import tpu as pltpu


# ------------------------------ fused model kernel ---------------------------

def make_model_kernel(num_layers, T, Bp, Hg, compute_dtype):
    """Stacked GRU (wavefront-scheduled) -> h_n[-1] -> Linear, in one kernel.

    Hg is the per-gate lane-padded width (128); fused gate width is 3*Hg.
    """

    def kernel(*refs):
        x_ref = refs[0]                              # (T*Bp, D), compute_dtype
        w_refs = refs[1:1 + 2 * num_layers]          # per layer: w_ih (.,3Hg), w_hh (Hg,3Hg)
        w_fc_ref = refs[1 + 2 * num_layers]          # (Hg, O_pad), compute_dtype
        b_fc_ref = refs[2 + 2 * num_layers]          # (1, O_pad), f32
        out_ref = refs[3 + 2 * num_layers]           # (Bp, O_pad), f32
        xp0_ref = refs[4 + 2 * num_layers]           # VMEM scratch (T*Bp, 3Hg), f32

        # Hoisted layer-0 gate projection for ALL timesteps: one stacked MXU
        # matmul, staged in VMEM scratch so per-step reads are bounded,
        # sublane-aligned static slices.
        xp0_ref[...] = jnp.dot(x_ref[...], w_refs[0][...],
                               preferred_element_type=jnp.float32)

        def gru_step(xg, hg, h_prev):
            # Lane-aligned gate blocks: r = [0:Hg), z = [Hg:2Hg), n = [2Hg:3Hg).
            rz = jax.nn.sigmoid(xg[:, :2 * Hg] + hg[:, :2 * Hg])
            r = rz[:, :Hg]
            z = rz[:, Hg:]
            n = jnp.tanh(xg[:, 2 * Hg:] + r * hg[:, 2 * Hg:])
            return n + z * (h_prev - n)              # == (1-z)*n + z*h_prev

        # Per-layer hidden state, lane-padded to Hg; padded lanes stay exactly 0.
        h = [jnp.zeros((Bp, Hg), jnp.float32) for _ in range(num_layers)]

        # Wavefront: stage s runs timestep t = s - l of layer l. Within a stage
        # all active layers depend only on the previous stage's hiddens, so
        # their (2 dots + gate math) are independent and can overlap.
        for s in range(T + num_layers - 1):          # static unroll
            h_next = list(h)
            for l in range(num_layers):
                t = s - l
                if 0 <= t < T:
                    if l == 0:
                        xg = xp0_ref[pl.ds(t * Bp, Bp), :]
                    else:
                        xg = jnp.dot(h[l - 1].astype(compute_dtype),
                                     w_refs[2 * l][...],
                                     preferred_element_type=jnp.float32)
                    hg = jnp.dot(h[l].astype(compute_dtype),
                                 w_refs[2 * l + 1][...],
                                 preferred_element_type=jnp.float32)
                    h_next[l] = gru_step(xg, hg, h[l])
            h = h_next

        # h[-1] == h_n[-1]; dropout_layer is identity at inference; fused FC,
        # written lane-dense (O padded to 128 lanes; wrapper slices back).
        out_ref[...] = (jnp.dot(h[-1].astype(compute_dtype), w_fc_ref[...],
                                preferred_element_type=jnp.float32)
                        + b_fc_ref[...]).astype(out_ref.dtype)

    return kernel


# ------------------------------ model wrapper --------------------------------

def gru_model_forward(x_btd, params, compute_dtype=jnp.float32):
    B, T, D = x_btd.shape
    layers = params["layers"]
    L = len(layers)
    Hg = params["Hg"]
    O_pad = params["w_fc_p"].shape[1]
    O = params["out_features"]

    # Pad batch to the 8-sublane granularity so every per-step tile is full.
    Bp = ((B + 7) // 8) * 8
    # batch_first (B,T,D) -> time-major, batch-padded, flattened (T*Bp, D) so the
    # layer-0 gate projection is a single matmul inside the kernel.
    x_tbd = jnp.transpose(x_btd, (1, 0, 2))
    x_tbd = jnp.pad(x_tbd, ((0, 0), (0, Bp - B), (0, 0)))
    x_flat = x_tbd.reshape(T * Bp, D).astype(compute_dtype)

    args = [x_flat]
    for lp in layers:
        args.append(lp["w_ih_p"].astype(compute_dtype))
        args.append(lp["w_hh_p"].astype(compute_dtype))
    args.append(params["w_fc_p"].astype(compute_dtype))
    args.append(params["b_fc_p"])                       # stays f32

    # Everything fits in VMEM (~1 MiB total) on every generation -> grid-less,
    # whole-array residency; no pipelining / vmem_limit_bytes needed. A parallel
    # batch grid axis (v7x 2nd TensorCore) only pays off for much larger B.
    out_padded = pl.pallas_call(
        make_model_kernel(L, T, Bp, Hg, compute_dtype),
        out_shape=jax.ShapeDtypeStruct((Bp, O_pad), jnp.float32),
        in_specs=[pl.BlockSpec(memory_space=pltpu.MemorySpace.VMEM)] * len(args),
        out_specs=pl.BlockSpec(memory_space=pltpu.MemorySpace.VMEM),
        scratch_shapes=[pltpu.VMEM((T * Bp, 3 * Hg), jnp.float32)],
    )(*args)

    return out_padded[:B, :O]


# --------------------------- pure-JAX reference -------------------------------

def gru_model_reference(x_btd, params):
    B, T, D = x_btd.shape
    H = params["layers"][0]["w_hh"].shape[0]
    x = jnp.transpose(x_btd, (1, 0, 2)).astype(jnp.float32)   # (T, B, D)
    for lp in params["layers"]:
        w_ih, w_hh = lp["w_ih"], lp["w_hh"]                   # (d_in,3H), (H,3H)
        h = jnp.zeros((B, H), jnp.float32)
        outs = []
        for t in range(T):
            xg = x[t] @ w_ih                                   # biases are zero
            hg = h @ w_hh
            r = jax.nn.sigmoid(xg[:, :H] + hg[:, :H])
            z = jax.nn.sigmoid(xg[:, H:2 * H] + hg[:, H:2 * H])
            n = jnp.tanh(xg[:, 2 * H:] + r * hg[:, 2 * H:])
            h = (1.0 - z) * n + z * h
            outs.append(h)
        x = jnp.stack(outs, axis=0)
    return x[-1] @ params["w_fc"].T + params["b_fc"]


# ------------------------------ parameter init --------------------------------

def _orthogonal(key, shape):
    rows, cols = shape
    n = max(rows, cols)
    a = jax.random.normal(key, (n, n), dtype=jnp.float32)
    q, _ = jnp.linalg.qr(a)
    return q[:rows, :cols]


def _pad_gates(w_t, Hg):
    """(d_in, 3H) fused r|z|n -> (d_in, 3*Hg) with each gate on a 128-lane boundary."""
    d_in, G = w_t.shape
    H = G // 3
    out = jnp.zeros((d_in, 3 * Hg), jnp.float32)
    for g in range(3):
        out = out.at[:, g * Hg:g * Hg + H].set(w_t[:, g * H:(g + 1) * H])
    return out


def init_params(key, D, H, O, num_layers, Hg=128, O_pad=128):
    layers = []
    for layer in range(num_layers):
        d_in = D if layer == 0 else H
        key, k1, k2 = jax.random.split(key, 3)
        # PyTorch stores weight_ih_l{k} as (3H, d_in), gate rows [r|z|n];
        # orthogonal init on the full matrix, then transpose to right-multiply.
        w_ih = _orthogonal(k1, (3 * H, d_in)).T              # (d_in, 3H)
        w_hh = _orthogonal(k2, (3 * H, H)).T                 # (H, 3H)
        # Lane-aligned kernel layouts (zero-padded gate columns; hidden-input
        # rows padded to Hg so h can stay lane-padded with exact zeros).
        w_ih_p = _pad_gates(w_ih, Hg)
        if layer > 0:
            w_ih_p = jnp.pad(w_ih_p, ((0, Hg - d_in), (0, 0)))
        w_hh_p = jnp.pad(_pad_gates(w_hh, Hg), ((0, Hg - H), (0, 0)))
        # GRU biases are zero per weigth_bias_init() -> dropped from kernel & ref.
        layers.append({"w_ih": w_ih, "w_hh": w_hh,
                       "w_ih_p": w_ih_p, "w_hh_p": w_hh_p})

    key, k3, k4 = jax.random.split(key, 3)
    bound = 1.0 / (H ** 0.5)
    w_fc = jax.random.uniform(k3, (O, H), jnp.float32, -bound, bound)  # torch Linear (O, H)
    b_fc = jax.random.uniform(k4, (O,), jnp.float32, -bound, bound)

    # Lane-dense FC output slab (O padded to 128 lanes; padded cols are zero).
    w_fc_p = jnp.zeros((Hg, O_pad), jnp.float32).at[:H, :O].set(w_fc.T)
    b_fc_p = jnp.zeros((1, O_pad), jnp.float32).at[0, :O].set(b_fc)

    return {"layers": layers, "w_fc": w_fc, "b_fc": b_fc,
            "w_fc_p": w_fc_p, "b_fc_p": b_fc_p,
            "Hg": Hg, "out_features": O}


# ----------------------------------- main -------------------------------------

if __name__ == "__main__":
    # "hidden_size is half of input_size"; unidirectional (see NOTE above);
    # num_layers=2 exercises stacking (inter-layer GRU dropout is train-only).
    B, T, D = 2, 8, 64
    H = D // 2          # 32
    O = 16
    NUM_LAYERS = 2

    key = jax.random.PRNGKey(0)
    key, xk = jax.random.split(key)
    x = jax.random.normal(xk, (B, T, D), dtype=jnp.float32)

    params = init_params(key, D, H, O, NUM_LAYERS)
    ref = gru_model_reference(x, params)

    # Primary (exact-semantics) f32 path.
    out = jax.block_until_ready(gru_model_forward(x, params, jnp.float32))
    assert out.shape == (B, O), out.shape
    assert jnp.allclose(out, ref, rtol=3e-4, atol=3e-4), float(jnp.max(jnp.abs(out - ref)))

    # bf16 matmul-input path (single-pass MXU on v6e/v7x), f32 accumulation;
    # validated with a looser tolerance against the f32 reference.
    out_bf16 = jax.block_until_ready(gru_model_forward(x, params, jnp.bfloat16))
    assert out_bf16.shape == (B, O), out_bf16.shape
    assert jnp.allclose(out_bf16, ref, rtol=8e-2, atol=8e-2), float(jnp.max(jnp.abs(out_bf16 - ref)))

    print("KERNEL_OK")
</pallas_src>

<mosaic_0001>
module attributes {stable_mosaic.version = 11 : i64} {
  func.func @kernel(%arg0: memref<64x64xf32, #tpu.memory_space<vmem>>, %arg1: memref<64x384xf32, #tpu.memory_space<vmem>>, %arg2: memref<128x384xf32, #tpu.memory_space<vmem>>, %arg3: memref<128x384xf32, #tpu.memory_space<vmem>>, %arg4: memref<128x384xf32, #tpu.memory_space<vmem>>, %arg5: memref<128x128xf32, #tpu.memory_space<vmem>>, %arg6: memref<1x128xf32, #tpu.memory_space<vmem>>, %arg7: memref<8x128xf32, #tpu.memory_space<vmem>>, %arg8: memref<64x384xf32, #tpu.memory_space<vmem>>) attributes {dimension_semantics = [], scalar_prefetch = 0 : i64, scratch_operands = 1 : i64, tpu.core_type = #tpu.core_type<tc>} {
    %c0 = arith.constant 0 : index
    %c0_0 = arith.constant 0 : index
    %0 = vector.load %arg0[%c0, %c0_0] : memref<64x64xf32, #tpu.memory_space<vmem>>, vector<64x64xf32>
    %c0_1 = arith.constant 0 : index
    %c0_2 = arith.constant 0 : index
    %1 = vector.load %arg1[%c0_1, %c0_2] : memref<64x384xf32, #tpu.memory_space<vmem>>, vector<64x384xf32>
    %cst = arith.constant dense<0.000000e+00> : vector<64x384xf32>
    %2 = tpu.matmul %0, %1, %cst {dimension_numbers = #tpu.dot_dimension_numbers<[1], [0], [0], [1], [0, 0, 1, 1], [], []>} : vector<64x64xf32>, vector<64x384xf32>, vector<64x384xf32> -> vector<64x384xf32>
    %c0_3 = arith.constant 0 : index
    %c0_4 = arith.constant 0 : index
    %3 = vector.load %arg8[%c0_3, %c0_4] : memref<64x384xf32, #tpu.memory_space<vmem>>, vector<64x384xf32>
    tpu.vector_store %arg8[%c0_3, %c0_4], %2 {strides = array<i32>} : memref<64x384xf32, #tpu.memory_space<vmem>>, vector<64x384xf32>,
    %cst_5 = arith.constant 0.000000e+00 : f32
    %4 = vector.broadcast %cst_5 : f32 to vector<8x128xf32>
    %cst_6 = arith.constant 0.000000e+00 : f32
    %5 = vector.broadcast %cst_6 : f32 to vector<8x128xf32>
    %c0_7 = arith.constant 0 : index
    %c0_8 = arith.constant 0 : index
    %6 = vector.load %arg8[%c0_7, %c0_8] : memref<64x384xf32, #tpu.memory_space<vmem>>, vector<8x384xf32>
    %c0_9 = arith.constant 0 : index
    %c0_10 = arith.constant 0 : index
    %7 = vector.load %arg2[%c0_9, %c0_10] : memref<128x384xf32, #tpu.memory_space<vmem>>, vector<128x384xf32>
    %cst_11 = arith.constant dense<0.000000e+00> : vector<8x384xf32>
    %8 = tpu.matmul %4, %7, %cst_11 {dimension_numbers = #tpu.dot_dimension_numbers<[1], [0], [0], [1], [0, 0, 1, 1], [], []>} : vector<8x128xf32>, vector<128x384xf32>, vector<8x384xf32> -> vector<8x384xf32>
    %9 = vector.extract_strided_slice %6 {offsets = [0, 0], sizes = [8, 256], strides = [1, 1]} : vector<8x384xf32> to vector<8x256xf32>
    %10 = vector.extract_strided_slice %8 {offsets = [0, 0], sizes = [8, 256], strides = [1, 1]} : vector<8x384xf32> to vector<8x256xf32>
    %11 = arith.addf %9, %10 : vector<8x256xf32>
    %12 = arith.negf %11 : vector<8x256xf32>
    %13 = math.exp %12 : vector<8x256xf32>
    %cst_12 = arith.constant 1.000000e+00 : f32
    %14 = vector.broadcast %cst_12 : f32 to vector<8x256xf32>
    %15 = arith.addf %14, %13 : vector<8x256xf32>
    %16 = arith.divf %14, %15 : vector<8x256xf32>
    %17 = vector.extract_strided_slice %16 {offsets = [0, 0], sizes = [8, 128], strides = [1, 1]} : vector<8x256xf32> to vector<8x128xf32>
    %18 = vector.extract_strided_slice %16 {offsets = [0, 128], sizes = [8, 128], strides = [1, 1]} : vector<8x256xf32> to vector<8x128xf32>
    %19 = vector.extract_strided_slice %6 {offsets = [0, 256], sizes = [8, 128], strides = [1, 1]} : vector<8x384xf32> to vector<8x128xf32>
    %20 = vector.extract_strided_slice %8 {offsets = [0, 256], sizes = [8, 128], strides = [1, 1]} : vector<8x384xf32> to vector<8x128xf32>
    %21 = arith.mulf %17, %20 : vector<8x128xf32>
    %22 = arith.addf %19, %21 : vector<8x128xf32>
    %23 = math.tanh %22 : vector<8x128xf32>
    %24 = arith.subf %4, %23 : vector<8x128xf32>
    %25 = arith.mulf %18, %24 : vector<8x128xf32>
    %26 = arith.addf %23, %25 : vector<8x128xf32>
    %c8 = arith.constant 8 : index
    %c0_13 = arith.constant 0 : index
    %27 = vector.load %arg8[%c8, %c0_13] : memref<64x384xf32, #tpu.memory_space<vmem>>, vector<8x384xf32>
    %c0_14 = arith.constant 0 : index
    %c0_15 = arith.constant 0 : index
    %28 = vector.load %arg2[%c0_14, %c0_15] : memref<128x384xf32, #tpu.memory_space<vmem>>, vector<128x384xf32>
    %cst_16 = arith.constant dense<0.000000e+00> : vector<8x384xf32>
    %29 = tpu.matmul %26, %28, %cst_16 {dimension_numbers = #tpu.dot_dimension_numbers<[1], [0], [0], [1], [0, 0, 1, 1], [], []>} : vector<8x128xf32>, vector<128x384xf32>, vector<8x384xf32> -> vector<8x384xf32>
    %30 = vector.extract_strided_slice %27 {offsets = [0, 0], sizes = [8, 256], strides = [1, 1]} : vector<8x384xf32> to vector<8x256xf32>
    %31 = vector.extract_strided_slice %29 {offsets = [0, 0], sizes = [8, 256], strides = [1, 1]} : vector<8x384xf32> to vector<8x256xf32>
    %32 = arith.addf %30, %31 : vector<8x256xf32>
    %33 = arith.negf %32 : vector<8x256xf32>
    %34 = math.exp %33 : vector<8x256xf32>
    %cst_17 = arith.constant 1.000000e+00 : f32
    %35 = vector.broadcast %cst_17 : f32 to vector<8x256xf32>
    %36 = arith.addf %35, %34 : vector<8x256xf32>
    %37 = arith.divf %35, %36 : vector<8x256xf32>
    %38 = vector.extract_strided_slice %37 {offsets = [0, 0], sizes = [8, 128], strides = [1, 1]} : vector<8x256xf32> to vector<8x128xf32>
    %39 = vector.extract_strided_slice %37 {offsets = [0, 128], sizes = [8, 128], strides = [1, 1]} : vector<8x256xf32> to vector<8x128xf32>
    %40 = vector.extract_strided_slice %27 {offsets = [0, 256], sizes = [8, 128], strides = [1, 1]} : vector<8x384xf32> to vector<8x128xf32>
    %41 = vector.extract_strided_slice %29 {offsets = [0, 256], sizes = [8, 128], strides = [1, 1]} : vector<8x384xf32> to vector<8x128xf32>
    %42 = arith.mulf %38, %41 : vector<8x128xf32>
    %43 = arith.addf %40, %42 : vector<8x128xf32>
    %44 = math.tanh %43 : vector<8x128xf32>
    %45 = arith.subf %26, %44 : vector<8x128xf32>
    %46 = arith.mulf %39, %45 : vector<8x128xf32>
    %47 = arith.addf %44, %46 : vector<8x128xf32>
    %c0_18 = arith.constant 0 : index
    %c0_19 = arith.constant 0 : index
    %48 = vector.load %arg3[%c0_18, %c0_19] : memref<128x384xf32, #tpu.memory_space<vmem>>, vector<128x384xf32>
    %cst_20 = arith.constant dense<0.000000e+00> : vector<8x384xf32>
    %49 = tpu.matmul %26, %48, %cst_20 {dimension_numbers = #tpu.dot_dimension_numbers<[1], [0], [0], [1], [0, 0, 1, 1], [], []>} : vector<8x128xf32>, vector<128x384xf32>, vector<8x384xf32> -> vector<8x384xf32>
    %c0_21 = arith.constant 0 : index
    %c0_22 = arith.constant 0 : index
    %50 = vector.load %arg4[%c0_21, %c0_22] : memref<128x384xf32, #tpu.memory_space<vmem>>, vector<128x384xf32>
    %cst_23 = arith.constant dense<0.000000e+00> : vector<8x384xf32>
    %51 = tpu.matmul %5, %50, %cst_23 {dimension_numbers = #tpu.dot_dimension_numbers<[1], [0], [0], [1], [0, 0, 1, 1], [], []>} : vector<8x128xf32>, vector<128x384xf32>, vector<8x384xf32> -> vector<8x384xf32>
    %52 = vector.extract_strided_slice %49 {offsets = [0, 0], sizes = [8, 256], strides = [1, 1]} : vector<8x384xf32> to vector<8x256xf32>
    %53 = vector.extract_strided_slice %51 {offsets = [0, 0], sizes = [8, 256], strides = [1, 1]} : vector<8x384xf32> to vector<8x256xf32>
    %54 = arith.addf %52, %53 : vector<8x256xf32>
    %55 = arith.negf %54 : vector<8x256xf32>
    %56 = math.exp %55 : vector<8x256xf32>
    %cst_24 = arith.constant 1.000000e+00 : f32
    %57 = vector.broadcast %cst_24 : f32 to vector<8x256xf32>
    %58 = arith.addf %57, %56 : vector<8x256xf32>
    %59 = arith.divf %57, %58 : vector<8x256xf32>
    %60 = vector.extract_strided_slice %59 {offsets = [0, 0], sizes = [8, 128], strides = [1, 1]} : vector<8x256xf32> to vector<8x128xf32>
    %61 = vector.extract_strided_slice %59 {offsets = [0, 128], sizes = [8, 128], strides = [1, 1]} : vector<8x256xf32> to vector<8x128xf32>
    %62 = vector.extract_strided_slice %49 {offsets = [0, 256], sizes = [8, 128], strides = [1, 1]} : vector<8x384xf32> to vector<8x128xf32>
    %63 = vector.extract_strided_slice %51 {offsets = [0, 256], sizes = [8, 128], strides = [1, 1]} : vector<8x384xf32> to vector<8x128xf32>
    %64 = arith.mulf %60, %63 : vector<8x128xf32>
    %65 = arith.addf %62, %64 : vector<8x128xf32>
    %66 = math.tanh %65 : vector<8x128xf32>
    %67 = arith.subf %5, %66 : vector<8x128xf32>
    %68 = arith.mulf %61, %67 : vector<8x128xf32>
    %69 = arith.addf %66, %68 : vector<8x128xf32>
    %c16 = arith.constant 16 : index
    %c0_25 = arith.constant 0 : index
    %70 = vector.load %arg8[%c16, %c0_25] : memref<64x384xf32, #tpu.memory_space<vmem>>, vector<8x384xf32>
    %c0_26 = arith.constant 0 : index
    %c0_27 = arith.constant 0 : index
    %71 = vector.load %arg2[%c0_26, %c0_27] : memref<128x384xf32, #tpu.memory_space<vmem>>, vector<128x384xf32>
    %cst_28 = arith.constant dense<0.000000e+00> : vector<8x384xf32>
    %72 = tpu.matmul %47, %71, %cst_28 {dimension_numbers = #tpu.dot_dimension_numbers<[1], [0], [0], [1], [0, 0, 1, 1], [], []>} : vector<8x128xf32>, vector<128x384xf32>, vector<8x384xf32> -> vector<8x384xf32>
    %73 = vector.extract_strided_slice %70 {offsets = [0, 0], sizes = [8, 256], strides = [1, 1]} : vector<8x384xf32> to vector<8x256xf32>
    %74 = vector.extract_strided_slice %72 {offsets = [0, 0], sizes = [8, 256], strides = [1, 1]} : vector<8x384xf32> to vector<8x256xf32>
    %75 = arith.addf %73, %74 : vector<8x256xf32>
    %76 = arith.negf %75 : vector<8x256xf32>
    %77 = math.exp %76 : vector<8x256xf32>
    %cst_29 = arith.constant 1.000000e+00 : f32
    %78 = vector.broadcast %cst_29 : f32 to vector<8x256xf32>
    %79 = arith.addf %78, %77 : vector<8x256xf32>
    %80 = arith.divf %78, %79 : vector<8x256xf32>
    %81 = vector.extract_strided_slice %80 {offsets = [0, 0], sizes = [8, 128], strides = [1, 1]} : vector<8x256xf32> to vector<8x128xf32>
    %82 = vector.extract_strided_slice %80 {offsets = [0, 128], sizes = [8, 128], strides = [1, 1]} : vector<8x256xf32> to vector<8x128xf32>
    %83 = vector.extract_strided_slice %70 {offsets = [0, 256], sizes = [8, 128], strides = [1, 1]} : vector<8x384xf32> to vector<8x128xf32>
    %84 = vector.extract_strided_slice %72 {offsets = [0, 256], sizes = [8, 128], strides = [1, 1]} : vector<8x384xf32> to vector<8x128xf32>
    %85 = arith.mulf %81, %84 : vector<8x128xf32>
    %86 = arith.addf %83, %85 : vector<8x128xf32>
    %87 = math.tanh %86 : vector<8x128xf32>
    %88 = arith.subf %47, %87 : vector<8x128xf32>
    %89 = arith.mulf %82, %88 : vector<8x128xf32>
    %90 = arith.addf %87, %89 : vector<8x128xf32>
    %c0_30 = arith.constant 0 : index
    %c0_31 = arith.constant 0 : index
    %91 = vector.load %arg3[%c0_30, %c0_31] : memref<128x384xf32, #tpu.memory_space<vmem>>, vector<128x384xf32>
    %cst_32 = arith.constant dense<0.000000e+00> : vector<8x384xf32>
    %92 = tpu.matmul %47, %91, %cst_32 {dimension_numbers = #tpu.dot_dimension_numbers<[1], [0], [0], [1], [0, 0, 1, 1], [], []>} : vector<8x128xf32>, vector<128x384xf32>, vector<8x384xf32> -> vector<8x384xf32>
    %c0_33 = arith.constant 0 : index
    %c0_34 = arith.constant 0 : index
    %93 = vector.load %arg4[%c0_33, %c0_34] : memref<128x384xf32, #tpu.memory_space<vmem>>, vector<128x384xf32>
    %cst_35 = arith.constant dense<0.000000e+00> : vector<8x384xf32>
    %94 = tpu.matmul %69, %93, %cst_35 {dimension_numbers = #tpu.dot_dimension_numbers<[1], [0], [0], [1], [0, 0, 1, 1], [], []>} : vector<8x128xf32>, vector<128x384xf32>, vector<8x384xf32> -> vector<8x384xf32>
    %95 = vector.extract_strided_slice %92 {offsets = [0, 0], sizes = [8, 256], strides = [1, 1]} : vector<8x384xf32> to vector<8x256xf32>
    %96 = vector.extract_strided_slice %94 {offsets = [0, 0], sizes = [8, 256], strides = [1, 1]} : vector<8x384xf32> to vector<8x256xf32>
    %97 = arith.addf %95, %96 : vector<8x256xf32>
    %98 = arith.negf %97 : vector<8x256xf32>
    %99 = math.exp %98 : vector<8x256xf32>
    %cst_36 = arith.constant 1.000000e+00 : f32
    %100 = vector.broadcast %cst_36 : f32 to vector<8x256xf32>
    %101 = arith.addf %100, %99 : vector<8x256xf32>
    %102 = arith.divf %100, %101 : vector<8x256xf32>
    %103 = vector.extract_strided_slice %102 {offsets = [0, 0], sizes = [8, 128], strides = [1, 1]} : vector<8x256xf32> to vector<8x128xf32>
    %104 = vector.extract_strided_slice %102 {offsets = [0, 128], sizes = [8, 128], strides = [1, 1]} : vector<8x256xf32> to vector<8x128xf32>
    %105 = vector.extract_strided_slice %92 {offsets = [0, 256], sizes = [8, 128], strides = [1, 1]} : vector<8x384xf32> to vector<8x128xf32>
    %106 = vector.extract_strided_slice %94 {offsets = [0, 256], sizes = [8, 128], strides = [1, 1]} : vector<8x384xf32> to vector<8x128xf32>
    %107 = arith.mulf %103, %106 : vector<8x128xf32>
    %108 = arith.addf %105, %107 : vector<8x128xf32>
    %109 = math.tanh %108 : vector<8x128xf32>
    %110 = arith.subf %69, %109 : vector<8x128xf32>
    %111 = arith.mulf %104, %110 : vector<8x128xf32>
    %112 = arith.addf %109, %111 : vector<8x128xf32>
    %c24 = arith.constant 24 : index
    %c0_37 = arith.constant 0 : index
    %113 = vector.load %arg8[%c24, %c0_37] : memref<64x384xf32, #tpu.memory_space<vmem>>, vector<8x384xf32>
    %c0_38 = arith.constant 0 : index
    %c0_39 = arith.constant 0 : index
    %114 = vector.load %arg2[%c0_38, %c0_39] : memref<128x384xf32, #tpu.memory_space<vmem>>, vector<128x384xf32>
    %cst_40 = arith.constant dense<0.000000e+00> : vector<8x384xf32>
    %115 = tpu.matmul %90, %114, %cst_40 {dimension_numbers = #tpu.dot_dimension_numbers<[1], [0], [0], [1], [0, 0, 1, 1], [], []>} : vector<8x128xf32>, vector<128x384xf32>, vector<8x384xf32> -> vector<8x384xf32>
    %116 = vector.extract_strided_slice %113 {offsets = [0, 0], sizes = [8, 256], strides = [1, 1]} : vector<8x384xf32> to vector<8x256xf32>
    %117 = vector.extract_strided_slice %115 {offsets = [0, 0], sizes = [8, 256], strides = [1, 1]} : vector<8x384xf32> to vector<8x256xf32>
    %118 = arith.addf %116, %117 : vector<8x256xf32>
    %119 = arith.negf %118 : vector<8x256xf32>
    %120 = math.exp %119 : vector<8x256xf32>
    %cst_41 = arith.constant 1.000000e+00 : f32
    %121 = vector.broadcast %cst_41 : f32 to vector<8x256xf32>
    %122 = arith.addf %121, %120 : vector<8x256xf32>
    %123 = arith.divf %121, %122 : vector<8x256xf32>
    %124 = vector.extract_strided_slice %123 {offsets = [0, 0], sizes = [8, 128], strides = [1, 1]} : vector<8x256xf32> to vector<8x128xf32>
    %125 = vector.extract_strided_slice %123 {offsets = [0, 128], sizes = [8, 128], strides = [1, 1]} : vector<8x256xf32> to vector<8x128xf32>
    %126 = vector.extract_strided_slice %113 {offsets = [0, 256], sizes = [8, 128], strides = [1, 1]} : vector<8x384xf32> to vector<8x128xf32>
    %127 = vector.extract_strided_slice %115 {offsets = [0, 256], sizes = [8, 128], strides = [1, 1]} : vector<8x384xf32> to vector<8x128xf32>
    %128 = arith.mulf %124, %127 : vector<8x128xf32>
    %129 = arith.addf %126, %128 : vector<8x128xf32>
    %130 = math.tanh %129 : vector<8x128xf32>
    %131 = arith.subf %90, %130 : vector<8x128xf32>
    %132 = arith.mulf %125, %131 : vector<8x128xf32>
    %133 = arith.addf %130, %132 : vector<8x128xf32>
    %c0_42 = arith.constant 0 : index
    %c0_43 = arith.constant 0 : index
    %134 = vector.load %arg3[%c0_42, %c0_43] : memref<128x384xf32, #tpu.memory_space<vmem>>, vector<128x384xf32>
    %cst_44 = arith.constant dense<0.000000e+00> : vector<8x384xf32>
    %135 = tpu.matmul %90, %134, %cst_44 {dimension_numbers = #tpu.dot_dimension_numbers<[1], [0], [0], [1], [0, 0, 1, 1], [], []>} : vector<8x128xf32>, vector<128x384xf32>, vector<8x384xf32> -> vector<8x384xf32>
    %c0_45 = arith.constant 0 : index
    %c0_46 = arith.constant 0 : index
    %136 = vector.load %arg4[%c0_45, %c0_46] : memref<128x384xf32, #tpu.memory_space<vmem>>, vector<128x384xf32>
    %cst_47 = arith.constant dense<0.000000e+00> : vector<8x384xf32>
    %137 = tpu.matmul %112, %136, %cst_47 {dimension_numbers = #tpu.dot_dimension_numbers<[1], [0], [0], [1], [0, 0, 1, 1], [], []>} : vector<8x128xf32>, vector<128x384xf32>, vector<8x384xf32> -> vector<8x384xf32>
    %138 = vector.extract_strided_slice %135 {offsets = [0, 0], sizes = [8, 256], strides = [1, 1]} : vector<8x384xf32> to vector<8x256xf32>
    %139 = vector.extract_strided_slice %137 {offsets = [0, 0], sizes = [8, 256], strides = [1, 1]} : vector<8x384xf32> to vector<8x256xf32>
    %140 = arith.addf %138, %139 : vector<8x256xf32>
    %141 = arith.negf %140 : vector<8x256xf32>
    %142 = math.exp %141 : vector<8x256xf32>
    %cst_48 = arith.constant 1.000000e+00 : f32
    %143 = vector.broadcast %cst_48 : f32 to vector<8x256xf32>
    %144 = arith.addf %143, %142 : vector<8x256xf32>
    %145 = arith.divf %143, %144 : vector<8x256xf32>
    %146 = vector.extract_strided_slice %145 {offsets = [0, 0], sizes = [8, 128], strides = [1, 1]} : vector<8x256xf32> to vector<8x128xf32>
    %147 = vector.extract_strided_slice %145 {offsets = [0, 128], sizes = [8, 128], strides = [1, 1]} : vector<8x256xf32> to vector<8x128xf32>
    %148 = vector.extract_strided_slice %135 {offsets = [0, 256], sizes = [8, 128], strides = [1, 1]} : vector<8x384xf32> to vector<8x128xf32>
    %149 = vector.extract_strided_slice %137 {offsets = [0, 256], sizes = [8, 128], strides = [1, 1]} : vector<8x384xf32> to vector<8x128xf32>
    %150 = arith.mulf %146, %149 : vector<8x128xf32>
    %151 = arith.addf %148, %150 : vector<8x128xf32>
    %152 = math.tanh %151 : vector<8x128xf32>
    %153 = arith.subf %112, %152 : vector<8x128xf32>
    %154 = arith.mulf %147, %153 : vector<8x128xf32>
    %155 = arith.addf %152, %154 : vector<8x128xf32>
    %c32 = arith.constant 32 : index
    %c0_49 = arith.constant 0 : index
    %156 = vector.load %arg8[%c32, %c0_49] : memref<64x384xf32, #tpu.memory_space<vmem>>, vector<8x384xf32>
    %c0_50 = arith.constant 0 : index
    %c0_51 = arith.constant 0 : index
    %157 = vector.load %arg2[%c0_50, %c0_51] : memref<128x384xf32, #tpu.memory_space<vmem>>, vector<128x384xf32>
    %cst_52 = arith.constant dense<0.000000e+00> : vector<8x384xf32>
    %158 = tpu.matmul %133, %157, %cst_52 {dimension_numbers = #tpu.dot_dimension_numbers<[1], [0], [0], [1], [0, 0, 1, 1], [], []>} : vector<8x128xf32>, vector<128x384xf32>, vector<8x384xf32> -> vector<8x384xf32>
    %159 = vector.extract_strided_slice %156 {offsets = [0, 0], sizes = [8, 256], strides = [1, 1]} : vector<8x384xf32> to vector<8x256xf32>
    %160 = vector.extract_strided_slice %158 {offsets = [0, 0], sizes = [8, 256], strides = [1, 1]} : vector<8x384xf32> to vector<8x256xf32>
    %161 = arith.addf %159, %160 : vector<8x256xf32>
    %162 = arith.negf %161 : vector<8x256xf32>
    %163 = math.exp %162 : vector<8x256xf32>
    %cst_53 = arith.constant 1.000000e+00 : f32
    %164 = vector.broadcast %cst_53 : f32 to vector<8x256xf32>
    %165 = arith.addf %164, %163 : vector<8x256xf32>
    %166 = arith.divf %164, %165 : vector<8x256xf32>
    %167 = vector.extract_strided_slice %166 {offsets = [0, 0], sizes = [8, 128], strides = [1, 1]} : vector<8x256xf32> to vector<8x128xf32>
    %168 = vector.extract_strided_slice %166 {offsets = [0, 128], sizes = [8, 128], strides = [1, 1]} : vector<8x256xf32> to vector<8x128xf32>
    %169 = vector.extract_strided_slice %156 {offsets = [0, 256], sizes = [8, 128], strides = [1, 1]} : vector<8x384xf32> to vector<8x128xf32>
    %170 = vector.extract_strided_slice %158 {offsets = [0, 256], sizes = [8, 128], strides = [1, 1]} : vector<8x384xf32> to vector<8x128xf32>
    %171 = arith.mulf %167, %170 : vector<8x128xf32>
    %172 = arith.addf %169, %171 : vector<8x128xf32>
    %173 = math.tanh %172 : vector<8x128xf32>
    %174 = arith.subf %133, %173 : vector<8x128xf32>
    %175 = arith.mulf %168, %174 : vector<8x128xf32>
    %176 = arith.addf %173, %175 : vector<8x128xf32>
    %c0_54 = arith.constant 0 : index
    %c0_55 = arith.constant 0 : index
    %177 = vector.load %arg3[%c0_54, %c0_55] : memref<128x384xf32, #tpu.memory_space<vmem>>, vector<128x384xf32>
    %cst_56 = arith.constant dense<0.000000e+00> : vector<8x384xf32>
    %178 = tpu.matmul %133, %177, %cst_56 {dimension_numbers = #tpu.dot_dimension_numbers<[1], [0], [0], [1], [0, 0, 1, 1], [], []>} : vector<8x128xf32>, vector<128x384xf32>, vector<8x384xf32> -> vector<8x384xf32>
    %c0_57 = arith.constant 0 : index
    %c0_58 = arith.constant 0 : index
    %179 = vector.load %arg4[%c0_57, %c0_58] : memref<128x384xf32, #tpu.memory_space<vmem>>, vector<128x384xf32>
    %cst_59 = arith.constant dense<0.000000e+00> : vector<8x384xf32>
    %180 = tpu.matmul %155, %179, %cst_59 {dimension_numbers = #tpu.dot_dimension_numbers<[1], [0], [0], [1], [0, 0, 1, 1], [], []>} : vector<8x128xf32>, vector<128x384xf32>, vector<8x384xf32> -> vector<8x384xf32>
    %181 = vector.extract_strided_slice %178 {offsets = [0, 0], sizes = [8, 256], strides = [1, 1]} : vector<8x384xf32> to vector<8x256xf32>
    %182 = vector.extract_strided_slice %180 {offsets = [0, 0], sizes = [8, 256], strides = [1, 1]} : vector<8x384xf32> to vector<8x256xf32>
    %183 = arith.addf %181, %182 : vector<8x256xf32>
    %184 = arith.negf %183 : vector<8x256xf32>
    %185 = math.exp %184 : vector<8x256xf32>
    %cst_60 = arith.constant 1.000000e+00 : f32
    %186 = vector.broadcast %cst_60 : f32 to vector<8x256xf32>
    %187 = arith.addf %186, %185 : vector<8x256xf32>
    %188 = arith.divf %186, %187 : vector<8x256xf32>
    %189 = vector.extract_strided_slice %188 {offsets = [0, 0], sizes = [8, 128], strides = [1, 1]} : vector<8x256xf32> to vector<8x128xf32>
    %190 = vector.extract_strided_slice %188 {offsets = [0, 128], sizes = [8, 128], strides = [1, 1]} : vector<8x256xf32> to vector<8x128xf32>
    %191 = vector.extract_strided_slice %178 {offsets = [0, 256], sizes = [8, 128], strides = [1, 1]} : vector<8x384xf32> to vector<8x128xf32>
    %192 = vector.extract_strided_slice %180 {offsets = [0, 256], sizes = [8, 128], strides = [1, 1]} : vector<8x384xf32> to vector<8x128xf32>
    %193 = arith.mulf %189, %192 : vector<8x128xf32>
    %194 = arith.addf %191, %193 : vector<8x128xf32>
    %195 = math.tanh %194 : vector<8x128xf32>
    %196 = arith.subf %155, %195 : vector<8x128xf32>
    %197 = arith.mulf %190, %196 : vector<8x128xf32>
    %198 = arith.addf %195, %197 : vector<8x128xf32>
    %c40 = arith.constant 40 : index
    %c0_61 = arith.constant 0 : index
    %199 = vector.load %arg8[%c40, %c0_61] : memref<64x384xf32, #tpu.memory_space<vmem>>, vector<8x384xf32>
    %c0_62 = arith.constant 0 : index
    %c0_63 = arith.constant 0 : index
    %200 = vector.load %arg2[%c0_62, %c0_63] : memref<128x384xf32, #tpu.memory_space<vmem>>, vector<128x384xf32>
    %cst_64 = arith.constant dense<0.000000e+00> : vector<8x384xf32>
    %201 = tpu.matmul %176, %200, %cst_64 {dimension_numbers = #tpu.dot_dimension_numbers<[1], [0], [0], [1], [0, 0, 1, 1], [], []>} : vector<8x128xf32>, vector<128x384xf32>, vector<8x384xf32> -> vector<8x384xf32>
    %202 = vector.extract_strided_slice %199 {offsets = [0, 0], sizes = [8, 256], strides = [1, 1]} : vector<8x384xf32> to vector<8x256xf32>
    %203 = vector.extract_strided_slice %201 {offsets = [0, 0], sizes = [8, 256], strides = [1, 1]} : vector<8x384xf32> to vector<8x256xf32>
    %204 = arith.addf %202, %203 : vector<8x256xf32>
    %205 = arith.negf %204 : vector<8x256xf32>
    %206 = math.exp %205 : vector<8x256xf32>
    %cst_65 = arith.constant 1.000000e+00 : f32
    %207 = vector.broadcast %cst_65 : f32 to vector<8x256xf32>
    %208 = arith.addf %207, %206 : vector<8x256xf32>
    %209 = arith.divf %207, %208 : vector<8x256xf32>
    %210 = vector.extract_strided_slice %209 {offsets = [0, 0], sizes = [8, 128], strides = [1, 1]} : vector<8x256xf32> to vector<8x128xf32>
    %211 = vector.extract_strided_slice %209 {offsets = [0, 128], sizes = [8, 128], strides = [1, 1]} : vector<8x256xf32> to vector<8x128xf32>
    %212 = vector.extract_strided_slice %199 {offsets = [0, 256], sizes = [8, 128], strides = [1, 1]} : vector<8x384xf32> to vector<8x128xf32>
    %213 = vector.extract_strided_slice %201 {offsets = [0, 256], sizes = [8, 128], strides = [1, 1]} : vector<8x384xf32> to vector<8x128xf32>
    %214 = arith.mulf %210, %213 : vector<8x128xf32>
    %215 = arith.addf %212, %214 : vector<8x128xf32>
    %216 = math.tanh %215 : vector<8x128xf32>
    %217 = arith.subf %176, %216 : vector<8x128xf32>
    %218 = arith.mulf %211, %217 : vector<8x128xf32>
    %219 = arith.addf %216, %218 : vector<8x128xf32>
    %c0_66 = arith.constant 0 : index
    %c0_67 = arith.constant 0 : index
    %220 = vector.load %arg3[%c0_66, %c0_67] : memref<128x384xf32, #tpu.memory_space<vmem>>, vector<128x384xf32>
    %cst_68 = arith.constant dense<0.000000e+00> : vector<8x384xf32>
    %221 = tpu.matmul %176, %220, %cst_68 {dimension_numbers = #tpu.dot_dimension_numbers<[1], [0], [0], [1], [0, 0, 1, 1], [], []>} : vector<8x128xf32>, vector<128x384xf32>, vector<8x384xf32> -> vector<8x384xf32>
    %c0_69 = arith.constant 0 : index
    %c0_70 = arith.constant 0 : index
    %222 = vector.load %arg4[%c0_69, %c0_70] : memref<128x384xf32, #tpu.memory_space<vmem>>, vector<128x384xf32>
    %cst_71 = arith.constant dense<0.000000e+00> : vector<8x384xf32>
    %223 = tpu.matmul %198, %222, %cst_71 {dimension_numbers = #tpu.dot_dimension_numbers<[1], [0], [0], [1], [0, 0, 1, 1], [], []>} : vector<8x128xf32>, vector<128x384xf32>, vector<8x384xf32> -> vector<8x384xf32>
    %224 = vector.extract_strided_slice %221 {offsets = [0, 0], sizes = [8, 256], strides = [1, 1]} : vector<8x384xf32> to vector<8x256xf32>
    %225 = vector.extract_strided_slice %223 {offsets = [0, 0], sizes = [8, 256], strides = [1, 1]} : vector<8x384xf32> to vector<8x256xf32>
    %226 = arith.addf %224, %225 : vector<8x256xf32>
    %227 = arith.negf %226 : vector<8x256xf32>
    %228 = math.exp %227 : vector<8x256xf32>
    %cst_72 = arith.constant 1.000000e+00 : f32
    %229 = vector.broadcast %cst_72 : f32 to vector<8x256xf32>
    %230 = arith.addf %229, %228 : vector<8x256xf32>
    %231 = arith.divf %229, %230 : vector<8x256xf32>
    %232 = vector.extract_strided_slice %231 {offsets = [0, 0], sizes = [8, 128], strides = [1, 1]} : vector<8x256xf32> to vector<8x128xf32>
    %233 = vector.extract_strided_slice %231 {offsets = [0, 128], sizes = [8, 128], strides = [1, 1]} : vector<8x256xf32> to vector<8x128xf32>
    %234 = vector.extract_strided_slice %221 {offsets = [0, 256], sizes = [8, 128], strides = [1, 1]} : vector<8x384xf32> to vector<8x128xf32>
    %235 = vector.extract_strided_slice %223 {offsets = [0, 256], sizes = [8, 128], strides = [1, 1]} : vector<8x384xf32> to vector<8x128xf32>
    %236 = arith.mulf %232, %235 : vector<8x128xf32>
    %237 = arith.addf %234, %236 : vector<8x128xf32>
    %238 = math.tanh %237 : vector<8x128xf32>
    %239 = arith.subf %198, %238 : vector<8x128xf32>
    %240 = arith.mulf %233, %239 : vector<8x128xf32>
    %241 = arith.addf %238, %240 : vector<8x128xf32>
    %c48 = arith.constant 48 : index
    %c0_73 = arith.constant 0 : index
    %242 = vector.load %arg8[%c48, %c0_73] : memref<64x384xf32, #tpu.memory_space<vmem>>, vector<8x384xf32>
    %c0_74 = arith.constant 0 : index
    %c0_75 = arith.constant 0 : index
    %243 = vector.load %arg2[%c0_74, %c0_75] : memref<128x384xf32, #tpu.memory_space<vmem>>, vector<128x384xf32>
    %cst_76 = arith.constant dense<0.000000e+00> : vector<8x384xf32>
    %244 = tpu.matmul %219, %243, %cst_76 {dimension_numbers = #tpu.dot_dimension_numbers<[1], [0], [0], [1], [0, 0, 1, 1], [], []>} : vector<8x128xf32>, vector<128x384xf32>, vector<8x384xf32> -> vector<8x384xf32>
    %245 = vector.extract_strided_slice %242 {offsets = [0, 0], sizes = [8, 256], strides = [1, 1]} : vector<8x384xf32> to vector<8x256xf32>
    %246 = vector.extract_strided_slice %244 {offsets = [0, 0], sizes = [8, 256], strides = [1, 1]} : vector<8x384xf32> to vector<8x256xf32>
    %247 = arith.addf %245, %246 : vector<8x256xf32>
    %248 = arith.negf %247 : vector<8x256xf32>
    %249 = math.exp %248 : vector<8x256xf32>
    %cst_77 = arith.constant 1.000000e+00 : f32
    %250 = vector.broadcast %cst_77 : f32 to vector<8x256xf32>
    %251 = arith.addf %250, %249 : vector<8x256xf32>
    %252 = arith.divf %250, %251 : vector<8x256xf32>
    %253 = vector.extract_strided_slice %252 {offsets = [0, 0], sizes = [8, 128], strides = [1, 1]} : vector<8x256xf32> to vector<8x128xf32>
    %254 = vector.extract_strided_slice %252 {offsets = [0, 128], sizes = [8, 128], strides = [1, 1]} : vector<8x256xf32> to vector<8x128xf32>
    %255 = vector.extract_strided_slice %242 {offsets = [0, 256], sizes = [8, 128], strides = [1, 1]} : vector<8x384xf32> to vector<8x128xf32>
    %256 = vector.extract_strided_slice %244 {offsets = [0, 256], sizes = [8, 128], strides = [1, 1]} : vector<8x384xf32> to vector<8x128xf32>
    %257 = arith.mulf %253, %256 : vector<8x128xf32>
    %258 = arith.addf %255, %257 : vector<8x128xf32>
    %259 = math.tanh %258 : vector<8x128xf32>
    %260 = arith.subf %219, %259 : vector<8x128xf32>
    %261 = arith.mulf %254, %260 : vector<8x128xf32>
    %262 = arith.addf %259, %261 : vector<8x128xf32>
    %c0_78 = arith.constant 0 : index
    %c0_79 = arith.constant 0 : index
    %263 = vector.load %arg3[%c0_78, %c0_79] : memref<128x384xf32, #tpu.memory_space<vmem>>, vector<128x384xf32>
    %cst_80 = arith.constant dense<0.000000e+00> : vector<8x384xf32>
    %264 = tpu.matmul %219, %263, %cst_80 {dimension_numbers = #tpu.dot_dimension_numbers<[1], [0], [0], [1], [0, 0, 1, 1], [], []>} : vector<8x128xf32>, vector<128x384xf32>, vector<8x384xf32> -> vector<8x384xf32>
    %c0_81 = arith.constant 0 : index
    %c0_82 = arith.constant 0 : index
    %265 = vector.load %arg4[%c0_81, %c0_82] : memref<128x384xf32, #tpu.memory_space<vmem>>, vector<128x384xf32>
    %cst_83 = arith.constant dense<0.000000e+00> : vector<8x384xf32>
    %266 = tpu.matmul %241, %265, %cst_83 {dimension_numbers = #tpu.dot_dimension_numbers<[1], [0], [0], [1], [0, 0, 1, 1], [], []>} : vector<8x128xf32>, vector<128x384xf32>, vector<8x384xf32> -> vector<8x384xf32>
    %267 = vector.extract_strided_slice %264 {offsets = [0, 0], sizes = [8, 256], strides = [1, 1]} : vector<8x384xf32> to vector<8x256xf32>
    %268 = vector.extract_strided_slice %266 {offsets = [0, 0], sizes = [8, 256], strides = [1, 1]} : vector<8x384xf32> to vector<8x256xf32>
    %269 = arith.addf %267, %268 : vector<8x256xf32>
    %270 = arith.negf %269 : vector<8x256xf32>
    %271 = math.exp %270 : vector<8x256xf32>
    %cst_84 = arith.constant 1.000000e+00 : f32
    %272 = vector.broadcast %cst_84 : f32 to vector<8x256xf32>
    %273 = arith.addf %272, %271 : vector<8x256xf32>
    %274 = arith.divf %272, %273 : vector<8x256xf32>
    %275 = vector.extract_strided_slice %274 {offsets = [0, 0], sizes = [8, 128], strides = [1, 1]} : vector<8x256xf32> to vector<8x128xf32>
    %276 = vector.extract_strided_slice %274 {offsets = [0, 128], sizes = [8, 128], strides = [1, 1]} : vector<8x256xf32> to vector<8x128xf32>
    %277 = vector.extract_strided_slice %264 {offsets = [0, 256], sizes = [8, 128], strides = [1, 1]} : vector<8x384xf32> to vector<8x128xf32>
    %278 = vector.extract_strided_slice %266 {offsets = [0, 256], sizes = [8, 128], strides = [1, 1]} : vector<8x384xf32> to vector<8x128xf32>
    %279 = arith.mulf %275, %278 : vector<8x128xf32>
    %280 = arith.addf %277, %279 : vector<8x128xf32>
    %281 = math.tanh %280 : vector<8x128xf32>
    %282 = arith.subf %241, %281 : vector<8x128xf32>
    %283 = arith.mulf %276, %282 : vector<8x128xf32>
    %284 = arith.addf %281, %283 : vector<8x128xf32>
    %c56 = arith.constant 56 : index
    %c0_85 = arith.constant 0 : index
    %285 = vector.load %arg8[%c56, %c0_85] : memref<64x384xf32, #tpu.memory_space<vmem>>, vector<8x384xf32>
    %c0_86 = arith.constant 0 : index
    %c0_87 = arith.constant 0 : index
    %286 = vector.load %arg2[%c0_86, %c0_87] : memref<128x384xf32, #tpu.memory_space<vmem>>, vector<128x384xf32>
    %cst_88 = arith.constant dense<0.000000e+00> : vector<8x384xf32>
    %287 = tpu.matmul %262, %286, %cst_88 {dimension_numbers = #tpu.dot_dimension_numbers<[1], [0], [0], [1], [0, 0, 1, 1], [], []>} : vector<8x128xf32>, vector<128x384xf32>, vector<8x384xf32> -> vector<8x384xf32>
    %288 = vector.extract_strided_slice %285 {offsets = [0, 0], sizes = [8, 256], strides = [1, 1]} : vector<8x384xf32> to vector<8x256xf32>
    %289 = vector.extract_strided_slice %287 {offsets = [0, 0], sizes = [8, 256], strides = [1, 1]} : vector<8x384xf32> to vector<8x256xf32>
    %290 = arith.addf %288, %289 : vector<8x256xf32>
    %291 = arith.negf %290 : vector<8x256xf32>
    %292 = math.exp %291 : vector<8x256xf32>
    %cst_89 = arith.constant 1.000000e+00 : f32
    %293 = vector.broadcast %cst_89 : f32 to vector<8x256xf32>
    %294 = arith.addf %293, %292 : vector<8x256xf32>
    %295 = arith.divf %293, %294 : vector<8x256xf32>
    %296 = vector.extract_strided_slice %295 {offsets = [0, 0], sizes = [8, 128], strides = [1, 1]} : vector<8x256xf32> to vector<8x128xf32>
    %297 = vector.extract_strided_slice %295 {offsets = [0, 128], sizes = [8, 128], strides = [1, 1]} : vector<8x256xf32> to vector<8x128xf32>
    %298 = vector.extract_strided_slice %285 {offsets = [0, 256], sizes = [8, 128], strides = [1, 1]} : vector<8x384xf32> to vector<8x128xf32>
    %299 = vector.extract_strided_slice %287 {offsets = [0, 256], sizes = [8, 128], strides = [1, 1]} : vector<8x384xf32> to vector<8x128xf32>
    %300 = arith.mulf %296, %299 : vector<8x128xf32>
    %301 = arith.addf %298, %300 : vector<8x128xf32>
    %302 = math.tanh %301 : vector<8x128xf32>
    %303 = arith.subf %262, %302 : vector<8x128xf32>
    %304 = arith.mulf %297, %303 : vector<8x128xf32>
    %305 = arith.addf %302, %304 : vector<8x128xf32>
    %c0_90 = arith.constant 0 : index
    %c0_91 = arith.constant 0 : index
    %306 = vector.load %arg3[%c0_90, %c0_91] : memref<128x384xf32, #tpu.memory_space<vmem>>, vector<128x384xf32>
    %cst_92 = arith.constant dense<0.000000e+00> : vector<8x384xf32>
    %307 = tpu.matmul %262, %306, %cst_92 {dimension_numbers = #tpu.dot_dimension_numbers<[1], [0], [0], [1], [0, 0, 1, 1], [], []>} : vector<8x128xf32>, vector<128x384xf32>, vector<8x384xf32> -> vector<8x384xf32>
    %c0_93 = arith.constant 0 : index
    %c0_94 = arith.constant 0 : index
    %308 = vector.load %arg4[%c0_93, %c0_94] : memref<128x384xf32, #tpu.memory_space<vmem>>, vector<128x384xf32>
    %cst_95 = arith.constant dense<0.000000e+00> : vector<8x384xf32>
    %309 = tpu.matmul %284, %308, %cst_95 {dimension_numbers = #tpu.dot_dimension_numbers<[1], [0], [0], [1], [0, 0, 1, 1], [], []>} : vector<8x128xf32>, vector<128x384xf32>, vector<8x384xf32> -> vector<8x384xf32>
    %310 = vector.extract_strided_slice %307 {offsets = [0, 0], sizes = [8, 256], strides = [1, 1]} : vector<8x384xf32> to vector<8x256xf32>
    %311 = vector.extract_strided_slice %309 {offsets = [0, 0], sizes = [8, 256], strides = [1, 1]} : vector<8x384xf32> to vector<8x256xf32>
    %312 = arith.addf %310, %311 : vector<8x256xf32>
    %313 = arith.negf %312 : vector<8x256xf32>
    %314 = math.exp %313 : vector<8x256xf32>
    %cst_96 = arith.constant 1.000000e+00 : f32
    %315 = vector.broadcast %cst_96 : f32 to vector<8x256xf32>
    %316 = arith.addf %315, %314 : vector<8x256xf32>
    %317 = arith.divf %315, %316 : vector<8x256xf32>
    %318 = vector.extract_strided_slice %317 {offsets = [0, 0], sizes = [8, 128], strides = [1, 1]} : vector<8x256xf32> to vector<8x128xf32>
    %319 = vector.extract_strided_slice %317 {offsets = [0, 128], sizes = [8, 128], strides = [1, 1]} : vector<8x256xf32> to vector<8x128xf32>
    %320 = vector.extract_strided_slice %307 {offsets = [0, 256], sizes = [8, 128], strides = [1, 1]} : vector<8x384xf32> to vector<8x128xf32>
    %321 = vector.extract_strided_slice %309 {offsets = [0, 256], sizes = [8, 128], strides = [1, 1]} : vector<8x384xf32> to vector<8x128xf32>
    %322 = arith.mulf %318, %321 : vector<8x128xf32>
    %323 = arith.addf %320, %322 : vector<8x128xf32>
    %324 = math.tanh %323 : vector<8x128xf32>
    %325 = arith.subf %284, %324 : vector<8x128xf32>
    %326 = arith.mulf %319, %325 : vector<8x128xf32>
    %327 = arith.addf %324, %326 : vector<8x128xf32>
    %c0_97 = arith.constant 0 : index
    %c0_98 = arith.constant 0 : index
    %328 = vector.load %arg3[%c0_97, %c0_98] : memref<128x384xf32, #tpu.memory_space<vmem>>, vector<128x384xf32>
    %cst_99 = arith.constant dense<0.000000e+00> : vector<8x384xf32>
    %329 = tpu.matmul %305, %328, %cst_99 {dimension_numbers = #tpu.dot_dimension_numbers<[1], [0], [0], [1], [0, 0, 1, 1], [], []>} : vector<8x128xf32>, vector<128x384xf32>, vector<8x384xf32> -> vector<8x384xf32>
    %c0_100 = arith.constant 0 : index
    %c0_101 = arith.constant 0 : index
    %330 = vector.load %arg4[%c0_100, %c0_101] : memref<128x384xf32, #tpu.memory_space<vmem>>, vector<128x384xf32>
    %cst_102 = arith.constant dense<0.000000e+00> : vector<8x384xf32>
    %331 = tpu.matmul %327, %330, %cst_102 {dimension_numbers = #tpu.dot_dimension_numbers<[1], [0], [0], [1], [0, 0, 1, 1], [], []>} : vector<8x128xf32>, vector<128x384xf32>, vector<8x384xf32> -> vector<8x384xf32>
    %332 = vector.extract_strided_slice %329 {offsets = [0, 0], sizes = [8, 256], strides = [1, 1]} : vector<8x384xf32> to vector<8x256xf32>
    %333 = vector.extract_strided_slice %331 {offsets = [0, 0], sizes = [8, 256], strides = [1, 1]} : vector<8x384xf32> to vector<8x256xf32>
    %334 = arith.addf %332, %333 : vector<8x256xf32>
    %335 = arith.negf %334 : vector<8x256xf32>
    %336 = math.exp %335 : vector<8x256xf32>
    %cst_103 = arith.constant 1.000000e+00 : f32
    %337 = vector.broadcast %cst_103 : f32 to vector<8x256xf32>
    %338 = arith.addf %337, %336 : vector<8x256xf32>
    %339 = arith.divf %337, %338 : vector<8x256xf32>
    %340 = vector.extract_strided_slice %339 {offsets = [0, 0], sizes = [8, 128], strides = [1, 1]} : vector<8x256xf32> to vector<8x128xf32>
    %341 = vector.extract_strided_slice %339 {offsets = [0, 128], sizes = [8, 128], strides = [1, 1]} : vector<8x256xf32> to vector<8x128xf32>
    %342 = vector.extract_strided_slice %329 {offsets = [0, 256], sizes = [8, 128], strides = [1, 1]} : vector<8x384xf32> to vector<8x128xf32>
    %343 = vector.extract_strided_slice %331 {offsets = [0, 256], sizes = [8, 128], strides = [1, 1]} : vector<8x384xf32> to vector<8x128xf32>
    %344 = arith.mulf %340, %343 : vector<8x128xf32>
    %345 = arith.addf %342, %344 : vector<8x128xf32>
    %346 = math.tanh %345 : vector<8x128xf32>
    %347 = arith.subf %327, %346 : vector<8x128xf32>
    %348 = arith.mulf %341, %347 : vector<8x128xf32>
    %349 = arith.addf %346, %348 : vector<8x128xf32>
    %c0_104 = arith.constant 0 : index
    %c0_105 = arith.constant 0 : index
    %350 = vector.load %arg5[%c0_104, %c0_105] : memref<128x128xf32, #tpu.memory_space<vmem>>, vector<128x128xf32>
    %cst_106 = arith.constant dense<0.000000e+00> : vector<8x128xf32>
    %351 = tpu.matmul %349, %350, %cst_106 {dimension_numbers = #tpu.dot_dimension_numbers<[1], [0], [0], [1], [0, 0, 1, 1], [], []>} : vector<8x128xf32>, vector<128x128xf32>, vector<8x128xf32> -> vector<8x128xf32>
    %c0_107 = arith.constant 0 : index
    %c0_108 = arith.constant 0 : index
    %352 = vector.load %arg6[%c0_107, %c0_108] : memref<1x128xf32, #tpu.memory_space<vmem>>, vector<1x128xf32>
    %353 = vector.broadcast %352 : vector<1x128xf32> to vector<8x128xf32>
    %354 = arith.addf %351, %353 : vector<8x128xf32>
    %c0_109 = arith.constant 0 : index
    %c0_110 = arith.constant 0 : index
    %355 = vector.load %arg7[%c0_109, %c0_110] : memref<8x128xf32, #tpu.memory_space<vmem>>, vector<8x128xf32>
    tpu.vector_store %arg7[%c0_109, %c0_110], %354 {strides = array<i32>} : memref<8x128xf32, #tpu.memory_space<vmem>>, vector<8x128xf32>,
    return
  }
}

</mosaic_0001>

<llo_original>
// kernel: tpu_custom_call.1
$region0: #{tpu_custom_call.1}
  #allocation0 [shape = 'u32[]', space=smem, size = 0x4, offset = 0x4, fixed_abs, tag = 'smem constant byte address 0x4 - core index']
  #allocation1 [shape = 'u32[72,128]{1,0:T(1,128)}', space=vmem, size = 0x9000, scoped, tag = 'internal scratch']
  #allocation2 [shape = 'f32[64,384]{1,0:T(8,128)}', space=vmem, size = 0x18000, scoped, tag = 'scratch operand']
  %s0 = inlined_call_operand.hbm [shape: f32[64,64], index: 0, kind: input, shape index: {}]
  %s1 = inlined_call_operand.hbm [shape: f32[64,384], index: 1, kind: input, shape index: {}]
  %s2 = inlined_call_operand.hbm [shape: f32[128,384], index: 2, kind: input, shape index: {}]
  %s3 = inlined_call_operand.hbm [shape: f32[128,384], index: 3, kind: input, shape index: {}]
  %s4 = inlined_call_operand.hbm [shape: f32[128,384], index: 4, kind: input, shape index: {}]
  %s5 = inlined_call_operand.hbm [shape: f32[128,128], index: 5, kind: input, shape index: {}]
  %s6 = inlined_call_operand.vmem [shape: f32[1,128], index: 6, kind: input, shape index: {}]
  %s7 = inlined_call_operand.hbm [shape: f32[8,128], index: 7, kind: output, shape index: {}]
  %s8 = sld [smem:[#allocation0]]
  $region62: #{tpu_custom_call.1} parent=0
    _
  %s10 = ssub.s32 1, %s8
  %s11 = scalar_select 0, %s10, %s8
  $region1: #{tpu_custom_call.1} parent=0
    #allocation3 [shape = 'u8[32768]{0}', space=vmem, size = 0x8000, scoped, tag = 'input window, operand 0, single buffered']
    #allocation4 [shape = 's32[1]{0}', space=sflag, size = 0x4, scoped, tag = 'scoped memory for tpu_custom_call.1']
    #allocation5 [shape = 's32[1]{0}', space=sflag, size = 0x4, scoped, tag = 'scoped memory for tpu_custom_call.1']
    #allocation6 [shape = 'u8[98304]{0}', space=vmem, size = 0x18000, scoped, tag = 'input window, operand 1, single buffered']
    #allocation7 [shape = 's32[1]{0}', space=sflag, size = 0x4, scoped, tag = 'scoped memory for tpu_custom_call.1']
    #allocation8 [shape = 'u8[196608]{0}', space=vmem, size = 0x30000, scoped, tag = 'input window, operand 2, single buffered']
    #allocation9 [shape = 'u8[196608]{0}', space=vmem, size = 0x30000, scoped, tag = 'input window, operand 3, single buffered']
    #allocation10 [shape = 's32[1]{0}', space=sflag, size = 0x4, scoped, tag = 'scoped memory for tpu_custom_call.1']
    #allocation11 [shape = 'u8[196608]{0}', space=vmem, size = 0x30000, scoped, tag = 'input window, operand 4, single buffered']
    #allocation12 [shape = 'u8[65536]{0}', space=vmem, size = 0x10000, scoped, tag = 'input window, operand 5, single buffered']
    #allocation13 [shape = 's32[1]{0}', space=sflag, size = 0x4, scoped, tag = 'scoped memory for tpu_custom_call.1']
    #allocation14 [shape = 'u8[4096]{0}', space=vmem, size = 0x1000, scoped, tag = 'output window, operand 0, single buffered']
    %12 = vsyncpa [#allocation4], 0
    %13 = vsyncpa [#allocation7], 0
    %14 = vsyncpa [#allocation10], 0
    %15 = vsyncpa [#allocation13], 0
    %16 = vsyncpa [#allocation5], 0
    // Predicated region
    $region2: #{tpu_custom_call.1} parent=1 // pred_check
      _
    $region3: #{tpu_custom_call.1} parent=1 // pred_check_branch
      %18 = sbr.rel (0) target = $region5
    $region4: #{tpu_custom_call.1} parent=1 // pred_region
      %20 = vsyncadd [#allocation4], 0
      %s21 = sshll.u32 %s0, 4
      %s22 = int_to_ptr.hbm [resolvable:$true] %s21
      %s23 = sshll.u32 [#allocation3], 4
      %s24 = int_to_ptr.vmem [resolvable:$true] %s23
      %29 = dma.hbm_to_vmem [thread:$0]  %s22, 1024, %s24, [#allocation4], 128, 128, 8
    $region5: #{tpu_custom_call.1} parent=1 // pred_fallthru
      _
    // Predicated region
    $region6: #{tpu_custom_call.1} parent=1 // pred_check
      _
    $region7: #{tpu_custom_call.1} parent=1 // pred_check_branch
      %31 = sbr.rel (0) target = $region9
    $region8: #{tpu_custom_call.1} parent=1 // pred_region
      %33 = vsyncadd [#allocation7], 0
      %s34 = sshll.u32 %s1, 4
      %s35 = int_to_ptr.hbm [resolvable:$true] %s34
      %s36 = sshll.u32 [#allocation6], 4
      %s37 = int_to_ptr.vmem [resolvable:$true] %s36
      %42 = dma.hbm_to_vmem [thread:$0]  %s35, 3072, %s37, [#allocation7], 384, 384, 24
    $region9: #{tpu_custom_call.1} parent=1 // pred_fallthru
      _
    // Predicated region
    $region10: #{tpu_custom_call.1} parent=1 // pred_check
      _
    $region11: #{tpu_custom_call.1} parent=1 // pred_check_branch
      %44 = sbr.rel (0) target = $region13
    $region12: #{tpu_custom_call.1} parent=1 // pred_region
      %46 = vsyncadd [#allocation7], 0
      %s47 = sshll.u32 %s2, 4
      %s48 = int_to_ptr.hbm [resolvable:$true] %s47
      %s49 = sshll.u32 [#allocation8], 4
      %s50 = int_to_ptr.vmem [resolvable:$true] %s49
      %55 = dma.hbm_to_vmem [thread:$0]  %s48, 6144, %s50, [#allocation7], 384, 384, 24
    $region13: #{tpu_custom_call.1} parent=1 // pred_fallthru
      _
    // Predicated region
    $region14: #{tpu_custom_call.1} parent=1 // pred_check
      _
    $region15: #{tpu_custom_call.1} parent=1 // pred_check_branch
      %57 = sbr.rel (0) target = $region17
    $region16: #{tpu_custom_call.1} parent=1 // pred_region
      %59 = vsyncadd [#allocation10], 0
      %s60 = sshll.u32 %s3, 4
      %s61 = int_to_ptr.hbm [resolvable:$true] %s60
      %s62 = sshll.u32 [#allocation9], 4
      %s63 = int_to_ptr.vmem [resolvable:$true] %s62
      %68 = dma.hbm_to_vmem [thread:$0]  %s61, 6144, %s63, [#allocation10], 384, 384, 24
    $region17: #{tpu_custom_call.1} parent=1 // pred_fallthru
      _
    // Predicated region
    $region18: #{tpu_custom_call.1} parent=1 // pred_check
      _
    $region19: #{tpu_custom_call.1} parent=1 // pred_check_branch
      %70 = sbr.rel (0) target = $region21
    $region20: #{tpu_custom_call.1} parent=1 // pred_region
      %72 = vsyncadd [#allocation10], 0
      %s73 = sshll.u32 %s4, 4
      %s74 = int_to_ptr.hbm [resolvable:$true] %s73
      %s75 = sshll.u32 [#allocation11], 4
      %s76 = int_to_ptr.vmem [resolvable:$true] %s75
      %81 = dma.hbm_to_vmem [thread:$0]  %s74, 6144, %s76, [#allocation10], 384, 384, 24
    $region21: #{tpu_custom_call.1} parent=1 // pred_fallthru
      _
    // Predicated region
    $region22: #{tpu_custom_call.1} parent=1 // pred_check
      _
    $region23: #{tpu_custom_call.1} parent=1 // pred_check_branch
      %83 = sbr.rel (0) target = $region25
    $region24: #{tpu_custom_call.1} parent=1 // pred_region
      %85 = vsyncadd [#allocation13], 0
      %s86 = sshll.u32 %s5, 4
      %s87 = int_to_ptr.hbm [resolvable:$true] %s86
      %s88 = sshll.u32 [#allocation12], 4
      %s89 = int_to_ptr.vmem [resolvable:$true] %s88
      %94 = dma.hbm_to_vmem [thread:$0]  %s87, 2048, %s89, [#allocation13], 128, 128, 8
    $region25: #{tpu_custom_call.1} parent=1 // pred_fallthru
      _
    // Predicated region
    $region26: #{tpu_custom_call.1} parent=1 // pred_check
      _
    $region27: #{tpu_custom_call.1} parent=1 // pred_check_branch
      %96 = sbr.rel (0) target = $region29
    $region28: #{tpu_custom_call.1} parent=1 // pred_region
      _
    $region29: #{tpu_custom_call.1} parent=1 // pred_fallthru
      _
    // Predicated region
    $region30: #{tpu_custom_call.1} parent=1 // pred_check
      _
    $region31: #{tpu_custom_call.1} parent=1 // pred_check_branch
      %98 = sbr.rel (0) target = $region33
    $region32: #{tpu_custom_call.1} parent=1 // pred_region
      %100 = dma.done [#allocation4], 1024
    $region33: #{tpu_custom_call.1} parent=1 // pred_fallthru
      _
    // Predicated region
    $region34: #{tpu_custom_call.1} parent=1 // pred_check
      _
    $region35: #{tpu_custom_call.1} parent=1 // pred_check_branch
      %102 = sbr.rel (0) target = $region37
    $region36: #{tpu_custom_call.1} parent=1 // pred_region
      %104 = dma.done [#allocation7], 3072
    $region37: #{tpu_custom_call.1} parent=1 // pred_fallthru
      _
    // Predicated region
    $region38: #{tpu_custom_call.1} parent=1 // pred_check
      _
    $region39: #{tpu_custom_call.1} parent=1 // pred_check_branch
      %106 = sbr.rel (0) target = $region41
    $region40: #{tpu_custom_call.1} parent=1 // pred_region
      %108 = dma.done [#allocation7], 6144
    $region41: #{tpu_custom_call.1} parent=1 // pred_fallthru
      _
    // Predicated region
    $region42: #{tpu_custom_call.1} parent=1 // pred_check
      _
    $region43: #{tpu_custom_call.1} parent=1 // pred_check_branch
      %110 = sbr.rel (0) target = $region45
    $region44: #{tpu_custom_call.1} parent=1 // pred_region
      %112 = dma.done [#allocation10], 6144
    $region45: #{tpu_custom_call.1} parent=1 // pred_fallthru
      _
    // Predicated region
    $region46: #{tpu_custom_call.1} parent=1 // pred_check
      _
    $region47: #{tpu_custom_call.1} parent=1 // pred_check_branch
      %114 = sbr.rel (0) target = $region49
    $region48: #{tpu_custom_call.1} parent=1 // pred_region
      %116 = dma.done [#allocation10], 6144
    $region49: #{tpu_custom_call.1} parent=1 // pred_fallthru
      _
    // Predicated region
    $region50: #{tpu_custom_call.1} parent=1 // pred_check
      _
    $region51: #{tpu_custom_call.1} parent=1 // pred_check_branch
      %118 = sbr.rel (0) target = $region53
    $region52: #{tpu_custom_call.1} parent=1 // pred_region
      %120 = dma.done [#allocation13], 2048
    $region53: #{tpu_custom_call.1} parent=1 // pred_fallthru
      _
    %v121 = vld [vmem:[#allocation3] sm:$0xff]
    %v122 = vld [vmem:[#allocation3 + $0x8] sm:$0xff]
    %v123 = vld [vmem:[#allocation3 + $0x10] sm:$0xff]
    %v124 = vld [vmem:[#allocation3 + $0x18] sm:$0xff]
    %v125 = vld [vmem:[#allocation3 + $0x20] sm:$0xff]
    %v126 = vld [vmem:[#allocation3 + $0x28] sm:$0xff]
    %v127 = vld [vmem:[#allocation3 + $0x30] sm:$0xff]
    %v128 = vld [vmem:[#allocation3 + $0x38] sm:$0xff]
    %v129 = vld [vmem:[#allocation6] sm:$0xff]
    %v130 = vld [vmem:[#allocation6 + $0x8] sm:$0xff]
    %v131 = vld [vmem:[#allocation6 + $0x10] sm:$0xff]
    %v132 = vld [vmem:[#allocation6 + $0x18] sm:$0xff]
    %v133 = vld [vmem:[#allocation6 + $0x20] sm:$0xff]
    %v134 = vld [vmem:[#allocation6 + $0x28] sm:$0xff]
    %v135 = vld [vmem:[#allocation6 + $0x30] sm:$0xff]
    %v136 = vld [vmem:[#allocation6 + $0x38] sm:$0xff]
    %v137 = vld [vmem:[#allocation6 + $0x40] sm:$0xff]
    %v138 = vld [vmem:[#allocation6 + $0x48] sm:$0xff]
    %v139 = vld [vmem:[#allocation6 + $0x50] sm:$0xff]
    %v140 = vld [vmem:[#allocation6 + $0x58] sm:$0xff]
    %v141 = vld [vmem:[#allocation6 + $0x60] sm:$0xff]
    %v142 = vld [vmem:[#allocation6 + $0x68] sm:$0xff]
    %v143 = vld [vmem:[#allocation6 + $0x70] sm:$0xff]
    %v144 = vld [vmem:[#allocation6 + $0x78] sm:$0xff]
    %v145 = vld [vmem:[#allocation6 + $0x80] sm:$0xff]
    %v146 = vld [vmem:[#allocation6 + $0x88] sm:$0xff]
    %v147 = vld [vmem:[#allocation6 + $0x90] sm:$0xff]
    %v148 = vld [vmem:[#allocation6 + $0x98] sm:$0xff]
    %v149 = vld [vmem:[#allocation6 + $0xa0] sm:$0xff]
    %v150 = vld [vmem:[#allocation6 + $0xa8] sm:$0xff]
    %v151 = vld [vmem:[#allocation6 + $0xb0] sm:$0xff]
    %v152 = vld [vmem:[#allocation6 + $0xb8] sm:$0xff]
    %vm153 = vcmask 523264
    %v155 = vsel %vm153, %v121, 0
    %v158 = vsel %vm153, %v122, 0
    %v161 = vsel %vm153, %v123, 0
    %v164 = vsel %vm153, %v124, 0
    %v167 = vsel %vm153, %v125, 0
    %v170 = vsel %vm153, %v126, 0
    %v173 = vsel %vm153, %v127, 0
    %v176 = vsel %vm153, %v128, 0
    %178 = vmatpush.msra.mxu0 0.0
    %179 = vmatpush.msra.mxu0 0.0
    %180 = vmatpush.msra.mxu0 0.0
    %181 = vmatpush.msra.mxu0 0.0
    %182 = vmatpush.msra.mxu0 0.0
    %183 = vmatpush.msra.mxu0 0.0
    %184 = vmatpush.msra.mxu0 0.0
    %185 = vmatpush.msra.mxu0 0.0
    %186 = vmatpush.msra.mxu0 %v150
    %187 = vmatpush.msra.mxu0 %v147
    %188 = vmatpush.msra.mxu0 %v144
    %189 = vmatpush.msra.mxu0 %v141
    %190 = vmatpush.msra.mxu0 %v138
    %191 = vmatpush.msra.mxu0 %v135
    %192 = vmatpush.msra.mxu0 %v132
    %193 = vmatpush.msra.mxu0 %v129
    %194 = vmatmul.f32.gmra.mxu0 %v155
    %v195 = vpop.f32.mrf.mxu0
    %v196 = vadd.f32 0.0, %v195
    %197 = vmatmul.f32.gmra.mxu0 %v158
    %v198 = vpop.f32.mrf.mxu0
    %v199 = vadd.f32 0.0, %v198
    %200 = vmatmul.f32.gmra.mxu0 %v161
    %v201 = vpop.f32.mrf.mxu0
    %v202 = vadd.f32 0.0, %v201
    %203 = vmatmul.f32.gmra.mxu0 %v164
    %v204 = vpop.f32.mrf.mxu0
    %v205 = vadd.f32 0.0, %v204
    %206 = vmatmul.f32.gmra.mxu0 %v167
    %v207 = vpop.f32.mrf.mxu0
    %v208 = vadd.f32 0.0, %v207
    %209 = vmatmul.f32.gmra.mxu0 %v170
    %v210 = vpop.f32.mrf.mxu0
    %v211 = vadd.f32 0.0, %v210
    %212 = vmatmul.f32.gmra.mxu0 %v173
    %v213 = vpop.f32.mrf.mxu0
    %v214 = vadd.f32 0.0, %v213
    %215 = vmatmul.f32.gmra.mxu0 %v176
    %v216 = vpop.f32.mrf.mxu0
    %v217 = vadd.f32 0.0, %v216
    %218 = vdwg.mxu0
    %219 = vmatpush.msra.mxu0 0.0
    %220 = vmatpush.msra.mxu0 0.0
    %221 = vmatpush.msra.mxu0 0.0
    %222 = vmatpush.msra.mxu0 0.0
    %223 = vmatpush.msra.mxu0 0.0
    %224 = vmatpush.msra.mxu0 0.0
    %225 = vmatpush.msra.mxu0 0.0
    %226 = vmatpush.msra.mxu0 0.0
    %227 = vmatpush.msra.mxu0 %v151
    %228 = vmatpush.msra.mxu0 %v148
    %229 = vmatpush.msra.mxu0 %v145
    %230 = vmatpush.msra.mxu0 %v142
    %231 = vmatpush.msra.mxu0 %v139
    %232 = vmatpush.msra.mxu0 %v136
    %233 = vmatpush.msra.mxu0 %v133
    %234 = vmatpush.msra.mxu0 %v130
    %235 = vmatmul.f32.gmra.mxu0 %v155
    %v236 = vpop.f32.mrf.mxu0
    %v237 = vadd.f32 0.0, %v236
    %238 = vmatmul.f32.gmra.mxu0 %v158
    %v239 = vpop.f32.mrf.mxu0
    %v240 = vadd.f32 0.0, %v239
    %241 = vmatmul.f32.gmra.mxu0 %v161
    %v242 = vpop.f32.mrf.mxu0
    %v243 = vadd.f32 0.0, %v242
    %244 = vmatmul.f32.gmra.mxu0 %v164
    %v245 = vpop.f32.mrf.mxu0
    %v246 = vadd.f32 0.0, %v245
    %247 = vmatmul.f32.gmra.mxu0 %v167
    %v248 = vpop.f32.mrf.mxu0
    %v249 = vadd.f32 0.0, %v248
    %250 = vmatmul.f32.gmra.mxu0 %v170
    %v251 = vpop.f32.mrf.mxu0
    %v252 = vadd.f32 0.0, %v251
    %253 = vmatmul.f32.gmra.mxu0 %v173
    %v254 = vpop.f32.mrf.mxu0
    %v255 = vadd.f32 0.0, %v254
    %256 = vmatmul.f32.gmra.mxu0 %v176
    %v257 = vpop.f32.mrf.mxu0
    %v258 = vadd.f32 0.0, %v257
    %259 = vdwg.mxu0
    %260 = vmatpush.msra.mxu0 0.0
    %261 = vmatpush.msra.mxu0 0.0
    %262 = vmatpush.msra.mxu0 0.0
    %263 = vmatpush.msra.mxu0 0.0
    %264 = vmatpush.msra.mxu0 0.0
    %265 = vmatpush.msra.mxu0 0.0
    %266 = vmatpush.msra.mxu0 0.0
    %267 = vmatpush.msra.mxu0 0.0
    %268 = vmatpush.msra.mxu0 %v152
    %269 = vmatpush.msra.mxu0 %v149
    %270 = vmatpush.msra.mxu0 %v146
    %271 = vmatpush.msra.mxu0 %v143
    %272 = vmatpush.msra.mxu0 %v140
    %273 = vmatpush.msra.mxu0 %v137
    %274 = vmatpush.msra.mxu0 %v134
    %275 = vmatpush.msra.mxu0 %v131
    %276 = vmatmul.f32.gmra.mxu0 %v155
    %v277 = vpop.f32.mrf.mxu0
    %v278 = vadd.f32 0.0, %v277
    %279 = vmatmul.f32.gmra.mxu0 %v158
    %v280 = vpop.f32.mrf.mxu0
    %v281 = vadd.f32 0.0, %v280
    %282 = vmatmul.f32.gmra.mxu0 %v161
    %v283 = vpop.f32.mrf.mxu0
    %v284 = vadd.f32 0.0, %v283
    %285 = vmatmul.f32.gmra.mxu0 %v164
    %v286 = vpop.f32.mrf.mxu0
    %v287 = vadd.f32 0.0, %v286
    %288 = vmatmul.f32.gmra.mxu0 %v167
    %v289 = vpop.f32.mrf.mxu0
    %v290 = vadd.f32 0.0, %v289
    %291 = vmatmul.f32.gmra.mxu0 %v170
    %v292 = vpop.f32.mrf.mxu0
    %v293 = vadd.f32 0.0, %v292
    %294 = vmatmul.f32.gmra.mxu0 %v173
    %v295 = vpop.f32.mrf.mxu0
    %v296 = vadd.f32 0.0, %v295
    %297 = vmatmul.f32.gmra.mxu0 %v176
    %v298 = vpop.f32.mrf.mxu0
    %v299 = vadd.f32 0.0, %v298
    %300 = vdwg.mxu0
    %301 = vst [vmem:[#allocation2] sm:$0xff] %v196
    %302 = vst [vmem:[#allocation2 + $0x8] sm:$0xff] %v237
    %303 = vst [vmem:[#allocation2 + $0x10] sm:$0xff] %v278
    %304 = vst [vmem:[#allocation2 + $0x18] sm:$0xff] %v199
    %305 = vst [vmem:[#allocation2 + $0x20] sm:$0xff] %v240
    %306 = vst [vmem:[#allocation2 + $0x28] sm:$0xff] %v281
    %307 = vst [vmem:[#allocation2 + $0x30] sm:$0xff] %v202
    %308 = vst [vmem:[#allocation2 + $0x38] sm:$0xff] %v243
    %309 = vst [vmem:[#allocation2 + $0x40] sm:$0xff] %v284
    %310 = vst [vmem:[#allocation2 + $0x48] sm:$0xff] %v205
    %311 = vst [vmem:[#allocation2 + $0x50] sm:$0xff] %v246
    %312 = vst [vmem:[#allocation2 + $0x58] sm:$0xff] %v287
    %313 = vst [vmem:[#allocation2 + $0x60] sm:$0xff] %v208
    %314 = vst [vmem:[#allocation2 + $0x68] sm:$0xff] %v249
    %315 = vst [vmem:[#allocation2 + $0x70] sm:$0xff] %v290
    %316 = vst [vmem:[#allocation2 + $0x78] sm:$0xff] %v211
    %317 = vst [vmem:[#allocation2 + $0x80] sm:$0xff] %v252
    %318 = vst [vmem:[#allocation2 + $0x88] sm:$0xff] %v293
    %319 = vst [vmem:[#allocation2 + $0x90] sm:$0xff] %v214
    %320 = vst [vmem:[#allocation2 + $0x98] sm:$0xff] %v255
    %321 = vst [vmem:[#allocation2 + $0xa0] sm:$0xff] %v296
    %322 = vst [vmem:[#allocation2 + $0xa8] sm:$0xff] %v217
    %323 = vst [vmem:[#allocation2 + $0xb0] sm:$0xff] %v258
    %324 = vst [vmem:[#allocation2 + $0xb8] sm:$0xff] %v299
    %v325 = vld [vmem:[#allocation2] sm:$0xff]
    %v326 = vld [vmem:[#allocation2 + $0x8] sm:$0xff]
    %v327 = vld [vmem:[#allocation2 + $0x10] sm:$0xff]
    %v328 = vld [vmem:[#allocation8] sm:$0xff]
    %v329 = vld [vmem:[#allocation8 + $0x8] sm:$0xff]
    %v330 = vld [vmem:[#allocation8 + $0x10] sm:$0xff]
    %v331 = vld [vmem:[#allocation8 + $0x18] sm:$0xff]
    %v332 = vld [vmem:[#allocation8 + $0x20] sm:$0xff]
    %v333 = vld [vmem:[#allocation8 + $0x28] sm:$0xff]
    %v334 = vld [vmem:[#allocation8 + $0x30] sm:$0xff]
    %v335 = vld [vmem:[#allocation8 + $0x38] sm:$0xff]
    %v336 = vld [vmem:[#allocation8 + $0x40] sm:$0xff]
    %v337 = vld [vmem:[#allocation8 + $0x48] sm:$0xff]
    %v338 = vld [vmem:[#allocation8 + $0x50] sm:$0xff]
    %v339 = vld [vmem:[#allocation8 + $0x58] sm:$0xff]
    %v340 = vld [vmem:[#allocation8 + $0x60] sm:$0xff]
    %v341 = vld [vmem:[#allocation8 + $0x68] sm:$0xff]
    %v342 = vld [vmem:[#allocation8 + $0x70] sm:$0xff]
    %v343 = vld [vmem:[#allocation8 + $0x78] sm:$0xff]
    %v344 = vld [vmem:[#allocation8 + $0x80] sm:$0xff]
    %v345 = vld [vmem:[#allocation8 + $0x88] sm:$0xff]
    %v346 = vld [vmem:[#allocation8 + $0x90] sm:$0xff]
    %v347 = vld [vmem:[#allocation8 + $0x98] sm:$0xff]
    %v348 = vld [vmem:[#allocation8 + $0xa0] sm:$0xff]
    %v349 = vld [vmem:[#allocation8 + $0xa8] sm:$0xff]
    %v350 = vld [vmem:[#allocation8 + $0xb0] sm:$0xff]
    %v351 = vld [vmem:[#allocation8 + $0xb8] sm:$0xff]
    %v352 = vld [vmem:[#allocation8 + $0xc0] sm:$0xff]
    %v353 = vld [vmem:[#allocation8 + $0xc8] sm:$0xff]
    %v354 = vld [vmem:[#allocation8 + $0xd0] sm:$0xff]
    %v355 = vld [vmem:[#allocation8 + $0xd8] sm:$0xff]
    %v356 = vld [vmem:[#allocation8 + $0xe0] sm:$0xff]
    %v357 = vld [vmem:[#allocation8 + $0xe8] sm:$0xff]
    %v358 = vld [vmem:[#allocation8 + $0xf0] sm:$0xff]
    %v359 = vld [vmem:[#allocation8 + $0xf8] sm:$0xff]
    %v360 = vld [vmem:[#allocation8 + $0x100] sm:$0xff]
    %v361 = vld [vmem:[#allocation8 + $0x108] sm:$0xff]
    %v362 = vld [vmem:[#allocation8 + $0x110] sm:$0xff]
    %v363 = vld [vmem:[#allocation8 + $0x118] sm:$0xff]
    %v364 = vld [vmem:[#allocation8 + $0x120] sm:$0xff]
    %v365 = vld [vmem:[#allocation8 + $0x128] sm:$0xff]
    %v366 = vld [vmem:[#allocation8 + $0x130] sm:$0xff]
    %v367 = vld [vmem:[#allocation8 + $0x138] sm:$0xff]
    %v368 = vld [vmem:[#allocation8 + $0x140] sm:$0xff]
    %v369 = vld [vmem:[#allocation8 + $0x148] sm:$0xff]
    %v370 = vld [vmem:[#allocation8 + $0x150] sm:$0xff]
    %v371 = vld [vmem:[#allocation8 + $0x158] sm:$0xff]
    %v372 = vld [vmem:[#allocation8 + $0x160] sm:$0xff]
    %v373 = vld [vmem:[#allocation8 + $0x168] sm:$0xff]
    %v374 = vld [vmem:[#allocation8 + $0x170] sm:$0xff]
    %v375 = vld [vmem:[#allocation8 + $0x178] sm:$0xff]
    %376 = vmatpush.msra.mxu0 %v373
    %377 = vmatpush.msra.mxu0 %v370
    %378 = vmatpush.msra.mxu0 %v367
    %379 = vmatpush.msra.mxu0 %v364
    %380 = vmatpush.msra.mxu0 %v361
    %381 = vmatpush.msra.mxu0 %v358
    %382 = vmatpush.msra.mxu0 %v355
    %383 = vmatpush.msra.mxu0 %v352
    %384 = vmatpush.msra.mxu0 %v349
    %385 = vmatpush.msra.mxu0 %v346
    %386 = vmatpush.msra.mxu0 %v343
    %387 = vmatpush.msra.mxu0 %v340
    %388 = vmatpush.msra.mxu0 %v337
    %389 = vmatpush.msra.mxu0 %v334
    %390 = vmatpush.msra.mxu0 %v331
    %391 = vmatpush.msra.mxu0 %v328
    %392 = vmatmul.f32.gmra.mxu0 0.0
    %v393 = vpop.f32.mrf.mxu0
    %v394 = vadd.f32 0.0, %v393
    %395 = vdwg.mxu0
    %396 = vmatpush.msra.mxu0 %v374
    %397 = vmatpush.msra.mxu0 %v371
    %398 = vmatpush.msra.mxu0 %v368
    %399 = vmatpush.msra.mxu0 %v365
    %400 = vmatpush.msra.mxu0 %v362
    %401 = vmatpush.msra.mxu0 %v359
    %402 = vmatpush.msra.mxu0 %v356
    %403 = vmatpush.msra.mxu0 %v353
    %404 = vmatpush.msra.mxu0 %v350
    %405 = vmatpush.msra.mxu0 %v347
    %406 = vmatpush.msra.mxu0 %v344
    %407 = vmatpush.msra.mxu0 %v341
    %408 = vmatpush.msra.mxu0 %v338
    %409 = vmatpush.msra.mxu0 %v335
    %410 = vmatpush.msra.mxu0 %v332
    %411 = vmatpush.msra.mxu0 %v329
    %412 = vmatmul.f32.gmra.mxu0 0.0
    %v413 = vpop.f32.mrf.mxu0
    %v414 = vadd.f32 0.0, %v413
    %415 = vdwg.mxu0
    %416 = vmatpush.msra.mxu0 %v375
    %417 = vmatpush.msra.mxu0 %v372
    %418 = vmatpush.msra.mxu0 %v369
    %419 = vmatpush.msra.mxu0 %v366
    %420 = vmatpush.msra.mxu0 %v363
    %421 = vmatpush.msra.mxu0 %v360
    %422 = vmatpush.msra.mxu0 %v357
    %423 = vmatpush.msra.mxu0 %v354
    %424 = vmatpush.msra.mxu0 %v351
    %425 = vmatpush.msra.mxu0 %v348
    %426 = vmatpush.msra.mxu0 %v345
    %427 = vmatpush.msra.mxu0 %v342
    %428 = vmatpush.msra.mxu0 %v339
    %429 = vmatpush.msra.mxu0 %v336
    %430 = vmatpush.msra.mxu0 %v333
    %431 = vmatpush.msra.mxu0 %v330
    %432 = vmatmul.f32.gmra.mxu0 0.0
    %v433 = vpop.f32.mrf.mxu0
    %v434 = vadd.f32 0.0, %v433
    %435 = vdwg.mxu0
    %v436 = vadd.f32 %v325, %v394
    %v437 = vadd.f32 %v326, %v414
    %v438 = vxor.u32 %v436, 2147483648
    %v439 = vxor.u32 %v437, 2147483648
    %v440 = vmul.f32 %v438, 1.442695
    %v441 = vpow.pop %v440
    %v442 = vmul.f32 %v439, 1.442695
    %v443 = vpow.pop %v442
    %v444 = vadd.f32 %v441, 1.0
    %v445 = vadd.f32 %v443, 1.0
    %v446 = vrcp.pop %v444
    %v447 = vmul.f32 %v444, %v446
    %v448 = vsub.f32 1.0, %v447
    %v449 = vmul.f32 %v446, %v448
    %v450 = vadd.f32 %v446, %v449
    %vm451 = vweird.f32 %v444
    %vm452 = vweird.f32 %v446
    %vm453 = vmor %vm451, %vm452
    %v454 = vsel %vm453, %v446, %v450
    %v455 = vand.u32 2147483647, %v444
    %vm456 = vcmp.eq.f32.partialorder %v455, 8.507059e+37
    %v457 = vand.u32 %v444, 2147483648
    %v458 = vor.u32 1.1754944e-38, %v457
    %v459 = vsel %vm456, %v458, %v454
    %v460 = vmul.f32 1.0, %v459
    %v461 = vrcp.pop %v445
    %v462 = vmul.f32 %v445, %v461
    %v463 = vsub.f32 1.0, %v462
    %v464 = vmul.f32 %v461, %v463
    %v465 = vadd.f32 %v461, %v464
    %vm466 = vweird.f32 %v445
    %vm467 = vweird.f32 %v461
    %vm468 = vmor %vm466, %vm467
    %v469 = vsel %vm468, %v461, %v465
    %v470 = vand.u32 2147483647, %v445
    %vm471 = vcmp.eq.f32.partialorder %v470, 8.507059e+37
    %v472 = vand.u32 %v445, 2147483648
    %v473 = vor.u32 1.1754944e-38, %v472
    %v474 = vsel %vm471, %v473, %v469
    %v475 = vmul.f32 1.0, %v474
    %v476 = vmul.f32 %v460, %v434
    %v477 = vadd.f32 %v327, %v476
    %v478 = vtanh.pop %v477
    %v479 = vsub.f32 0.0, %v478
    %v480 = vmul.f32 %v475, %v479
    %v481 = vadd.f32 %v478, %v480
    %v482 = vld [vmem:[#allocation2 + $0x18] sm:$0xff]
    %v483 = vld [vmem:[#allocation2 + $0x20] sm:$0xff]
    %v484 = vld [vmem:[#allocation2 + $0x28] sm:$0xff]
    %485 = vmatpush.msra.mxu0 %v373
    %486 = vmatpush.msra.mxu0 %v370
    %487 = vmatpush.msra.mxu0 %v367
    %488 = vmatpush.msra.mxu0 %v364
    %489 = vmatpush.msra.mxu0 %v361
    %490 = vmatpush.msra.mxu0 %v358
    %491 = vmatpush.msra.mxu0 %v355
    %492 = vmatpush.msra.mxu0 %v352
    %493 = vmatpush.msra.mxu0 %v349
    %494 = vmatpush.msra.mxu0 %v346
    %495 = vmatpush.msra.mxu0 %v343
    %496 = vmatpush.msra.mxu0 %v340
    %497 = vmatpush.msra.mxu0 %v337
    %498 = vmatpush.msra.mxu0 %v334
    %499 = vmatpush.msra.mxu0 %v331
    %500 = vmatpush.msra.mxu0 %v328
    %501 = vmatmul.f32.gmra.mxu0 %v481
    %v502 = vpop.f32.mrf.mxu0
    %v503 = vadd.f32 0.0, %v502
    %504 = vdwg.mxu0
    %505 = vmatpush.msra.mxu0 %v374
    %506 = vmatpush.msra.mxu0 %v371
    %507 = vmatpush.msra.mxu0 %v368
    %508 = vmatpush.msra.mxu0 %v365
    %509 = vmatpush.msra.mxu0 %v362
    %510 = vmatpush.msra.mxu0 %v359
    %511 = vmatpush.msra.mxu0 %v356
    %512 = vmatpush.msra.mxu0 %v353
    %513 = vmatpush.msra.mxu0 %v350
    %514 = vmatpush.msra.mxu0 %v347
    %515 = vmatpush.msra.mxu0 %v344
    %516 = vmatpush.msra.mxu0 %v341
    %517 = vmatpush.msra.mxu0 %v338
    %518 = vmatpush.msra.mxu0 %v335
    %519 = vmatpush.msra.mxu0 %v332
    %520 = vmatpush.msra.mxu0 %v329
    %521 = vmatmul.f32.gmra.mxu0 %v481
    %v522 = vpop.f32.mrf.mxu0
    %v523 = vadd.f32 0.0, %v522
    %524 = vdwg.mxu0
    %525 = vmatpush.msra.mxu0 %v375
    %526 = vmatpush.msra.mxu0 %v372
    %527 = vmatpush.msra.mxu0 %v369
    %528 = vmatpush.msra.mxu0 %v366
    %529 = vmatpush.msra.mxu0 %v363
    %530 = vmatpush.msra.mxu0 %v360
    %531 = vmatpush.msra.mxu0 %v357
    %532 = vmatpush.msra.mxu0 %v354
    %533 = vmatpush.msra.mxu0 %v351
    %534 = vmatpush.msra.mxu0 %v348
    %535 = vmatpush.msra.mxu0 %v345
    %536 = vmatpush.msra.mxu0 %v342
    %537 = vmatpush.msra.mxu0 %v339
    %538 = vmatpush.msra.mxu0 %v336
    %539 = vmatpush.msra.mxu0 %v333
    %540 = vmatpush.msra.mxu0 %v330
    %541 = vmatmul.f32.gmra.mxu0 %v481
    %v542 = vpop.f32.mrf.mxu0
    %v543 = vadd.f32 0.0, %v542
    %544 = vdwg.mxu0
    %v545 = vadd.f32 %v482, %v503
    %v546 = vadd.f32 %v483, %v523
    %v547 = vxor.u32 %v545, 2147483648
    %v548 = vxor.u32 %v546, 2147483648
    %v549 = vmul.f32 %v547, 1.442695
    %v550 = vpow.pop %v549
    %v551 = vmul.f32 %v548, 1.442695
    %v552 = vpow.pop %v551
    %v553 = vadd.f32 %v550, 1.0
    %v554 = vadd.f32 %v552, 1.0
    %v555 = vrcp.pop %v553
    %v556 = vmul.f32 %v553, %v555
    %v557 = vsub.f32 1.0, %v556
    %v558 = vmul.f32 %v555, %v557
    %v559 = vadd.f32 %v555, %v558
    %vm560 = vweird.f32 %v553
    %vm561 = vweird.f32 %v555
    %vm562 = vmor %vm560, %vm561
    %v563 = vsel %vm562, %v555, %v559
    %v564 = vand.u32 2147483647, %v553
    %vm565 = vcmp.eq.f32.partialorder %v564, 8.507059e+37
    %v566 = vand.u32 %v553, 2147483648
    %v567 = vor.u32 1.1754944e-38, %v566
    %v568 = vsel %vm565, %v567, %v563
    %v569 = vmul.f32 1.0, %v568
    %v570 = vrcp.pop %v554
    %v571 = vmul.f32 %v554, %v570
    %v572 = vsub.f32 1.0, %v571
    %v573 = vmul.f32 %v570, %v572
    %v574 = vadd.f32 %v570, %v573
    %vm575 = vweird.f32 %v554
    %vm576 = vweird.f32 %v570
    %vm577 = vmor %vm575, %vm576
    %v578 = vsel %vm577, %v570, %v574
    %v579 = vand.u32 2147483647, %v554
    %vm580 = vcmp.eq.f32.partialorder %v579, 8.507059e+37
    %v581 = vand.u32 %v554, 2147483648
    %v582 = vor.u32 1.1754944e-38, %v581
    %v583 = vsel %vm580, %v582, %v578
    %v584 = vmul.f32 1.0, %v583
    %v585 = vmul.f32 %v569, %v543
    %v586 = vadd.f32 %v484, %v585
    %v587 = vtanh.pop %v586
    %v588 = vsub.f32 %v481, %v587
    %v589 = vmul.f32 %v584, %v588
    %v590 = vadd.f32 %v587, %v589
    %v591 = vld [vmem:[#allocation9] sm:$0xff]
    %v592 = vld [vmem:[#allocation9 + $0x8] sm:$0xff]
    %v593 = vld [vmem:[#allocation9 + $0x10] sm:$0xff]
    %v594 = vld [vmem:[#allocation9 + $0x18] sm:$0xff]
    %v595 = vld [vmem:[#allocation9 + $0x20] sm:$0xff]
    %v596 = vld [vmem:[#allocation9 + $0x28] sm:$0xff]
    %v597 = vld [vmem:[#allocation9 + $0x30] sm:$0xff]
    %v598 = vld [vmem:[#allocation9 + $0x38] sm:$0xff]
    %v599 = vld [vmem:[#allocation9 + $0x40] sm:$0xff]
    %v600 = vld [vmem:[#allocation9 + $0x48] sm:$0xff]
    %v601 = vld [vmem:[#allocation9 + $0x50] sm:$0xff]
    %v602 = vld [vmem:[#allocation9 + $0x58] sm:$0xff]
    %v603 = vld [vmem:[#allocation9 + $0x60] sm:$0xff]
    %v604 = vld [vmem:[#allocation9 + $0x68] sm:$0xff]
    %v605 = vld [vmem:[#allocation9 + $0x70] sm:$0xff]
    %v606 = vld [vmem:[#allocation9 + $0x78] sm:$0xff]
    %v607 = vld [vmem:[#allocation9 + $0x80] sm:$0xff]
    %v608 = vld [vmem:[#allocation9 + $0x88] sm:$0xff]
    %v609 = vld [vmem:[#allocation9 + $0x90] sm:$0xff]
    %v610 = vld [vmem:[#allocation9 + $0x98] sm:$0xff]
    %v611 = vld [vmem:[#allocation9 + $0xa0] sm:$0xff]
    %v612 = vld [vmem:[#allocation9 + $0xa8] sm:$0xff]
    %v613 = vld [vmem:[#allocation9 + $0xb0] sm:$0xff]
    %v614 = vld [vmem:[#allocation9 + $0xb8] sm:$0xff]
    %v615 = vld [vmem:[#allocation9 + $0xc0] sm:$0xff]
    %v616 = vld [vmem:[#allocation9 + $0xc8] sm:$0xff]
    %v617 = vld [vmem:[#allocation9 + $0xd0] sm:$0xff]
    %v618 = vld [vmem:[#allocation9 + $0xd8] sm:$0xff]
    %v619 = vld [vmem:[#allocation9 + $0xe0] sm:$0xff]
    %v620 = vld [vmem:[#allocation9 + $0xe8] sm:$0xff]
    %v621 = vld [vmem:[#allocation9 + $0xf0] sm:$0xff]
    %v622 = vld [vmem:[#allocation9 + $0xf8] sm:$0xff]
    %v623 = vld [vmem:[#allocation9 + $0x100] sm:$0xff]
    %v624 = vld [vmem:[#allocation9 + $0x108] sm:$0xff]
    %v625 = vld [vmem:[#allocation9 + $0x110] sm:$0xff]
    %v626 = vld [vmem:[#allocation9 + $0x118] sm:$0xff]
    %v627 = vld [vmem:[#allocation9 + $0x120] sm:$0xff]
    %v628 = vld [vmem:[#allocation9 + $0x128] sm:$0xff]
    %v629 = vld [vmem:[#allocation9 + $0x130] sm:$0xff]
    %v630 = vld [vmem:[#allocation9 + $0x138] sm:$0xff]
    %v631 = vld [vmem:[#allocation9 + $0x140] sm:$0xff]
    %v632 = vld [vmem:[#allocation9 + $0x148] sm:$0xff]
    %v633 = vld [vmem:[#allocation9 + $0x150] sm:$0xff]
    %v634 = vld [vmem:[#allocation9 + $0x158] sm:$0xff]
    %v635 = vld [vmem:[#allocation9 + $0x160] sm:$0xff]
    %v636 = vld [vmem:[#allocation9 + $0x168] sm:$0xff]
    %v637 = vld [vmem:[#allocation9 + $0x170] sm:$0xff]
    %v638 = vld [vmem:[#allocation9 + $0x178] sm:$0xff]
    %639 = vmatpush.msra.mxu0 %v636
    %640 = vmatpush.msra.mxu0 %v633
    %641 = vmatpush.msra.mxu0 %v630
    %642 = vmatpush.msra.mxu0 %v627
    %643 = vmatpush.msra.mxu0 %v624
    %644 = vmatpush.msra.mxu0 %v621
    %645 = vmatpush.msra.mxu0 %v618
    %646 = vmatpush.msra.mxu0 %v615
    %647 = vmatpush.msra.mxu0 %v612
    %648 = vmatpush.msra.mxu0 %v609
    %649 = vmatpush.msra.mxu0 %v606
    %650 = vmatpush.msra.mxu0 %v603
    %651 = vmatpush.msra.mxu0 %v600
    %652 = vmatpush.msra.mxu0 %v597
    %653 = vmatpush.msra.mxu0 %v594
    %654 = vmatpush.msra.mxu0 %v591
    %655 = vmatmul.f32.gmra.mxu0 %v481
    %v656 = vpop.f32.mrf.mxu0
    %v657 = vadd.f32 0.0, %v656
    %658 = vdwg.mxu0
    %659 = vmatpush.msra.mxu0 %v637
    %660 = vmatpush.msra.mxu0 %v634
    %661 = vmatpush.msra.mxu0 %v631
    %662 = vmatpush.msra.mxu0 %v628
    %663 = vmatpush.msra.mxu0 %v625
    %664 = vmatpush.msra.mxu0 %v622
    %665 = vmatpush.msra.mxu0 %v619
    %666 = vmatpush.msra.mxu0 %v616
    %667 = vmatpush.msra.mxu0 %v613
    %668 = vmatpush.msra.mxu0 %v610
    %669 = vmatpush.msra.mxu0 %v607
    %670 = vmatpush.msra.mxu0 %v604
    %671 = vmatpush.msra.mxu0 %v601
    %672 = vmatpush.msra.mxu0 %v598
    %673 = vmatpush.msra.mxu0 %v595
    %674 = vmatpush.msra.mxu0 %v592
    %675 = vmatmul.f32.gmra.mxu0 %v481
    %v676 = vpop.f32.mrf.mxu0
    %v677 = vadd.f32 0.0, %v676
    %678 = vdwg.mxu0
    %679 = vmatpush.msra.mxu0 %v638
    %680 = vmatpush.msra.mxu0 %v635
    %681 = vmatpush.msra.mxu0 %v632
    %682 = vmatpush.msra.mxu0 %v629
    %683 = vmatpush.msra.mxu0 %v626
    %684 = vmatpush.msra.mxu0 %v623
    %685 = vmatpush.msra.mxu0 %v620
    %686 = vmatpush.msra.mxu0 %v617
    %687 = vmatpush.msra.mxu0 %v614
    %688 = vmatpush.msra.mxu0 %v611
    %689 = vmatpush.msra.mxu0 %v608
    %690 = vmatpush.msra.mxu0 %v605
    %691 = vmatpush.msra.mxu0 %v602
    %692 = vmatpush.msra.mxu0 %v599
    %693 = vmatpush.msra.mxu0 %v596
    %694 = vmatpush.msra.mxu0 %v593
    %695 = vmatmul.f32.gmra.mxu0 %v481
    %v696 = vpop.f32.mrf.mxu0
    %v697 = vadd.f32 0.0, %v696
    %698 = vdwg.mxu0
    %v699 = vld [vmem:[#allocation11] sm:$0xff]
    %v700 = vld [vmem:[#allocation11 + $0x8] sm:$0xff]
    %v701 = vld [vmem:[#allocation11 + $0x10] sm:$0xff]
    %v702 = vld [vmem:[#allocation11 + $0x18] sm:$0xff]
    %v703 = vld [vmem:[#allocation11 + $0x20] sm:$0xff]
    %v704 = vld [vmem:[#allocation11 + $0x28] sm:$0xff]
    %v705 = vld [vmem:[#allocation11 + $0x30] sm:$0xff]
    %v706 = vld [vmem:[#allocation11 + $0x38] sm:$0xff]
    %v707 = vld [vmem:[#allocation11 + $0x40] sm:$0xff]
    %v708 = vld [vmem:[#allocation11 + $0x48] sm:$0xff]
    %v709 = vld [vmem:[#allocation11 + $0x50] sm:$0xff]
    %v710 = vld [vmem:[#allocation11 + $0x58] sm:$0xff]
    %v711 = vld [vmem:[#allocation11 + $0x60] sm:$0xff]
    %v712 = vld [vmem:[#allocation11 + $0x68] sm:$0xff]
    %v713 = vld [vmem:[#allocation11 + $0x70] sm:$0xff]
    %v714 = vld [vmem:[#allocation11 + $0x78] sm:$0xff]
    %v715 = vld [vmem:[#allocation11 + $0x80] sm:$0xff]
    %v716 = vld [vmem:[#allocation11 + $0x88] sm:$0xff]
    %v717 = vld [vmem:[#allocation11 + $0x90] sm:$0xff]
    %v718 = vld [vmem:[#allocation11 + $0x98] sm:$0xff]
    %v719 = vld [vmem:[#allocation11 + $0xa0] sm:$0xff]
    %v720 = vld [vmem:[#allocation11 + $0xa8] sm:$0xff]
    %v721 = vld [vmem:[#allocation11 + $0xb0] sm:$0xff]
    %v722 = vld [vmem:[#allocation11 + $0xb8] sm:$0xff]
    %v723 = vld [vmem:[#allocation11 + $0xc0] sm:$0xff]
    %v724 = vld [vmem:[#allocation11 + $0xc8] sm:$0xff]
    %v725 = vld [vmem:[#allocation11 + $0xd0] sm:$0xff]
    %v726 = vld [vmem:[#allocation11 + $0xd8] sm:$0xff]
    %v727 = vld [vmem:[#allocation11 + $0xe0] sm:$0xff]
    %v728 = vld [vmem:[#allocation11 + $0xe8] sm:$0xff]
    %v729 = vld [vmem:[#allocation11 + $0xf0] sm:$0xff]
    %v730 = vld [vmem:[#allocation11 + $0xf8] sm:$0xff]
    %v731 = vld [vmem:[#allocation11 + $0x100] sm:$0xff]
    %v732 = vld [vmem:[#allocation11 + $0x108] sm:$0xff]
    %v733 = vld [vmem:[#allocation11 + $0x110] sm:$0xff]
    %v734 = vld [vmem:[#allocation11 + $0x118] sm:$0xff]
    %v735 = vld [vmem:[#allocation11 + $0x120] sm:$0xff]
    %v736 = vld [vmem:[#allocation11 + $0x128] sm:$0xff]
    %v737 = vld [vmem:[#allocation11 + $0x130] sm:$0xff]
    %v738 = vld [vmem:[#allocation11 + $0x138] sm:$0xff]
    %v739 = vld [vmem:[#allocation11 + $0x140] sm:$0xff]
    %v740 = vld [vmem:[#allocation11 + $0x148] sm:$0xff]
    %v741 = vld [vmem:[#allocation11 + $0x150] sm:$0xff]
    %v742 = vld [vmem:[#allocation11 + $0x158] sm:$0xff]
    %v743 = vld [vmem:[#allocation11 + $0x160] sm:$0xff]
    %v744 = vld [vmem:[#allocation11 + $0x168] sm:$0xff]
    %v745 = vld [vmem:[#allocation11 + $0x170] sm:$0xff]
    %v746 = vld [vmem:[#allocation11 + $0x178] sm:$0xff]
    %747 = vmatpush.msra.mxu0 %v744
    %748 = vmatpush.msra.mxu0 %v741
    %749 = vmatpush.msra.mxu0 %v738
    %750 = vmatpush.msra.mxu0 %v735
    %751 = vmatpush.msra.mxu0 %v732
    %752 = vmatpush.msra.mxu0 %v729
    %753 = vmatpush.msra.mxu0 %v726
    %754 = vmatpush.msra.mxu0 %v723
    %755 = vmatpush.msra.mxu0 %v720
    %756 = vmatpush.msra.mxu0 %v717
    %757 = vmatpush.msra.mxu0 %v714
    %758 = vmatpush.msra.mxu0 %v711
    %759 = vmatpush.msra.mxu0 %v708
    %760 = vmatpush.msra.mxu0 %v705
    %761 = vmatpush.msra.mxu0 %v702
    %762 = vmatpush.msra.mxu0 %v699
    %763 = vmatmul.f32.gmra.mxu0 0.0
    %v764 = vpop.f32.mrf.mxu0
    %v765 = vadd.f32 0.0, %v764
    %766 = vdwg.mxu0
    %767 = vmatpush.msra.mxu0 %v745
    %768 = vmatpush.msra.mxu0 %v742
    %769 = vmatpush.msra.mxu0 %v739
    %770 = vmatpush.msra.mxu0 %v736
    %771 = vmatpush.msra.mxu0 %v733
    %772 = vmatpush.msra.mxu0 %v730
    %773 = vmatpush.msra.mxu0 %v727
    %774 = vmatpush.msra.mxu0 %v724
    %775 = vmatpush.msra.mxu0 %v721
    %776 = vmatpush.msra.mxu0 %v718
    %777 = vmatpush.msra.mxu0 %v715
    %778 = vmatpush.msra.mxu0 %v712
    %779 = vmatpush.msra.mxu0 %v709
    %780 = vmatpush.msra.mxu0 %v706
    %781 = vmatpush.msra.mxu0 %v703
    %782 = vmatpush.msra.mxu0 %v700
    %783 = vmatmul.f32.gmra.mxu0 0.0
    %v784 = vpop.f32.mrf.mxu0
    %v785 = vadd.f32 0.0, %v784
    %786 = vdwg.mxu0
    %787 = vmatpush.msra.mxu0 %v746
    %788 = vmatpush.msra.mxu0 %v743
    %789 = vmatpush.msra.mxu0 %v740
    %790 = vmatpush.msra.mxu0 %v737
    %791 = vmatpush.msra.mxu0 %v734
    %792 = vmatpush.msra.mxu0 %v731
    %793 = vmatpush.msra.mxu0 %v728
    %794 = vmatpush.msra.mxu0 %v725
    %795 = vmatpush.msra.mxu0 %v722
    %796 = vmatpush.msra.mxu0 %v719
    %797 = vmatpush.msra.mxu0 %v716
    %798 = vmatpush.msra.mxu0 %v713
    %799 = vmatpush.msra.mxu0 %v710
    %800 = vmatpush.msra.mxu0 %v707
    %801 = vmatpush.msra.mxu0 %v704
    %802 = vmatpush.msra.mxu0 %v701
    %803 = vmatmul.f32.gmra.mxu0 0.0
    %v804 = vpop.f32.mrf.mxu0
    %v805 = vadd.f32 0.0, %v804
    %806 = vdwg.mxu0
    %v807 = vadd.f32 %v657, %v765
    %v808 = vadd.f32 %v677, %v785
    %v809 = vxor.u32 %v807, 2147483648
    %v810 = vxor.u32 %v808, 2147483648
    %v811 = vmul.f32 %v809, 1.442695
    %v812 = vpow.pop %v811
    %v813 = vmul.f32 %v810, 1.442695
    %v814 = vpow.pop %v813
    %v815 = vadd.f32 %v812, 1.0
    %v816 = vadd.f32 %v814, 1.0
    %v817 = vrcp.pop %v815
    %v818 = vmul.f32 %v815, %v817
    %v819 = vsub.f32 1.0, %v818
    %v820 = vmul.f32 %v817, %v819
    %v821 = vadd.f32 %v817, %v820
    %vm822 = vweird.f32 %v815
    %vm823 = vweird.f32 %v817
    %vm824 = vmor %vm822, %vm823
    %v825 = vsel %vm824, %v817, %v821
    %v826 = vand.u32 2147483647, %v815
    %vm827 = vcmp.eq.f32.partialorder %v826, 8.507059e+37
    %v828 = vand.u32 %v815, 2147483648
    %v829 = vor.u32 1.1754944e-38, %v828
    %v830 = vsel %vm827, %v829, %v825
    %v831 = vmul.f32 1.0, %v830
    %v832 = vrcp.pop %v816
    %v833 = vmul.f32 %v816, %v832
    %v834 = vsub.f32 1.0, %v833
    %v835 = vmul.f32 %v832, %v834
    %v836 = vadd.f32 %v832, %v835
    %vm837 = vweird.f32 %v816
    %vm838 = vweird.f32 %v832
    %vm839 = vmor %vm837, %vm838
    %v840 = vsel %vm839, %v832, %v836
    %v841 = vand.u32 2147483647, %v816
    %vm842 = vcmp.eq.f32.partialorder %v841, 8.507059e+37
    %v843 = vand.u32 %v816, 2147483648
    %v844 = vor.u32 1.1754944e-38, %v843
    %v845 = vsel %vm842, %v844, %v840
    %v846 = vmul.f32 1.0, %v845
    %v847 = vmul.f32 %v831, %v805
    %v848 = vadd.f32 %v697, %v847
    %v849 = vtanh.pop %v848
    %v850 = vsub.f32 0.0, %v849
    %v851 = vmul.f32 %v846, %v850
    %v852 = vadd.f32 %v849, %v851
    %v853 = vld [vmem:[#allocation2 + $0x30] sm:$0xff]
    %v854 = vld [vmem:[#allocation2 + $0x38] sm:$0xff]
    %v855 = vld [vmem:[#allocation2 + $0x40] sm:$0xff]
    %856 = vmatpush.msra.mxu0 %v373
    %857 = vmatpush.msra.mxu0 %v370
    %858 = vmatpush.msra.mxu0 %v367
    %859 = vmatpush.msra.mxu0 %v364
    %860 = vmatpush.msra.mxu0 %v361
    %861 = vmatpush.msra.mxu0 %v358
    %862 = vmatpush.msra.mxu0 %v355
    %863 = vmatpush.msra.mxu0 %v352
    %864 = vmatpush.msra.mxu0 %v349
    %865 = vmatpush.msra.mxu0 %v346
    %866 = vmatpush.msra.mxu0 %v343
    %867 = vmatpush.msra.mxu0 %v340
    %868 = vmatpush.msra.mxu0 %v337
    %869 = vmatpush.msra.mxu0 %v334
    %870 = vmatpush.msra.mxu0 %v331
    %871 = vmatpush.msra.mxu0 %v328
    %872 = vmatmul.f32.gmra.mxu0 %v590
    %v873 = vpop.f32.mrf.mxu0
    %v874 = vadd.f32 0.0, %v873
    %875 = vdwg.mxu0
    %876 = vmatpush.msra.mxu0 %v374
    %877 = vmatpush.msra.mxu0 %v371
    %878 = vmatpush.msra.mxu0 %v368
    %879 = vmatpush.msra.mxu0 %v365
    %880 = vmatpush.msra.mxu0 %v362
    %881 = vmatpush.msra.mxu0 %v359
    %882 = vmatpush.msra.mxu0 %v356
    %883 = vmatpush.msra.mxu0 %v353
    %884 = vmatpush.msra.mxu0 %v350
    %885 = vmatpush.msra.mxu0 %v347
    %886 = vmatpush.msra.mxu0 %v344
    %887 = vmatpush.msra.mxu0 %v341
    %888 = vmatpush.msra.mxu0 %v338
    %889 = vmatpush.msra.mxu0 %v335
    %890 = vmatpush.msra.mxu0 %v332
    %891 = vmatpush.msra.mxu0 %v329
    %892 = vmatmul.f32.gmra.mxu0 %v590
    %v893 = vpop.f32.mrf.mxu0
    %v894 = vadd.f32 0.0, %v893
    %895 = vdwg.mxu0
    %896 = vmatpush.msra.mxu0 %v375
    %897 = vmatpush.msra.mxu0 %v372
    %898 = vmatpush.msra.mxu0 %v369
    %899 = vmatpush.msra.mxu0 %v366
    %900 = vmatpush.msra.mxu0 %v363
    %901 = vmatpush.msra.mxu0 %v360
    %902 = vmatpush.msra.mxu0 %v357
    %903 = vmatpush.msra.mxu0 %v354
    %904 = vmatpush.msra.mxu0 %v351
    %905 = vmatpush.msra.mxu0 %v348
    %906 = vmatpush.msra.mxu0 %v345
    %907 = vmatpush.msra.mxu0 %v342
    %908 = vmatpush.msra.mxu0 %v339
    %909 = vmatpush.msra.mxu0 %v336
    %910 = vmatpush.msra.mxu0 %v333
    %911 = vmatpush.msra.mxu0 %v330
    %912 = vmatmul.f32.gmra.mxu0 %v590
    %v913 = vpop.f32.mrf.mxu0
    %v914 = vadd.f32 0.0, %v913
    %915 = vdwg.mxu0
    %v916 = vadd.f32 %v853, %v874
    %v917 = vadd.f32 %v854, %v894
    %v918 = vxor.u32 %v916, 2147483648
    %v919 = vxor.u32 %v917, 2147483648
    %v920 = vmul.f32 %v918, 1.442695
    %v921 = vpow.pop %v920
    %v922 = vmul.f32 %v919, 1.442695
    %v923 = vpow.pop %v922
    %v924 = vadd.f32 %v921, 1.0
    %v925 = vadd.f32 %v923, 1.0
    %v926 = vrcp.pop %v924
    %v927 = vmul.f32 %v924, %v926
    %v928 = vsub.f32 1.0, %v927
    %v929 = vmul.f32 %v926, %v928
    %v930 = vadd.f32 %v926, %v929
    %vm931 = vweird.f32 %v924
    %vm932 = vweird.f32 %v926
    %vm933 = vmor %vm931, %vm932
    %v934 = vsel %vm933, %v926, %v930
    %v935 = vand.u32 2147483647, %v924
    %vm936 = vcmp.eq.f32.partialorder %v935, 8.507059e+37
    %v937 = vand.u32 %v924, 2147483648
    %v938 = vor.u32 1.1754944e-38, %v937
    %v939 = vsel %vm936, %v938, %v934
    %v940 = vmul.f32 1.0, %v939
    %v941 = vrcp.pop %v925
    %v942 = vmul.f32 %v925, %v941
    %v943 = vsub.f32 1.0, %v942
    %v944 = vmul.f32 %v941, %v943
    %v945 = vadd.f32 %v941, %v944
    %vm946 = vweird.f32 %v925
    %vm947 = vweird.f32 %v941
    %vm948 = vmor %vm946, %vm947
    %v949 = vsel %vm948, %v941, %v945
    %v950 = vand.u32 2147483647, %v925
    %vm951 = vcmp.eq.f32.partialorder %v950, 8.507059e+37
    %v952 = vand.u32 %v925, 2147483648
    %v953 = vor.u32 1.1754944e-38, %v952
    %v954 = vsel %vm951, %v953, %v949
    %v955 = vmul.f32 1.0, %v954
    %v956 = vmul.f32 %v940, %v914
    %v957 = vadd.f32 %v855, %v956
    %v958 = vtanh.pop %v957
    %v959 = vsub.f32 %v590, %v958
    %v960 = vmul.f32 %v955, %v959
    %v961 = vadd.f32 %v958, %v960
    %962 = vmatpush.msra.mxu0 %v636
    %963 = vmatpush.msra.mxu0 %v633
    %964 = vmatpush.msra.mxu0 %v630
    %965 = vmatpush.msra.mxu0 %v627
    %966 = vmatpush.msra.mxu0 %v624
    %967 = vmatpush.msra.mxu0 %v621
    %968 = vmatpush.msra.mxu0 %v618
    %969 = vmatpush.msra.mxu0 %v615
    %970 = vmatpush.msra.mxu0 %v612
    %971 = vmatpush.msra.mxu0 %v609
    %972 = vmatpush.msra.mxu0 %v606
    %973 = vmatpush.msra.mxu0 %v603
    %974 = vmatpush.msra.mxu0 %v600
    %975 = vmatpush.msra.mxu0 %v597
    %976 = vmatpush.msra.mxu0 %v594
    %977 = vmatpush.msra.mxu0 %v591
    %978 = vmatmul.f32.gmra.mxu0 %v590
    %v979 = vpop.f32.mrf.mxu0
    %v980 = vadd.f32 0.0, %v979
    %981 = vdwg.mxu0
    %982 = vmatpush.msra.mxu0 %v637
    %983 = vmatpush.msra.mxu0 %v634
    %984 = vmatpush.msra.mxu0 %v631
    %985 = vmatpush.msra.mxu0 %v628
    %986 = vmatpush.msra.mxu0 %v625
    %987 = vmatpush.msra.mxu0 %v622
    %988 = vmatpush.msra.mxu0 %v619
    %989 = vmatpush.msra.mxu0 %v616
    %990 = vmatpush.msra.mxu0 %v613
    %991 = vmatpush.msra.mxu0 %v610
    %992 = vmatpush.msra.mxu0 %v607
    %993 = vmatpush.msra.mxu0 %v604
    %994 = vmatpush.msra.mxu0 %v601
    %995 = vmatpush.msra.mxu0 %v598
    %996 = vmatpush.msra.mxu0 %v595
    %997 = vmatpush.msra.mxu0 %v592
    %998 = vmatmul.f32.gmra.mxu0 %v590
    %v999 = vpop.f32.mrf.mxu0
    %v1000 = vadd.f32 0.0, %v999
    %1001 = vdwg.mxu0
    %1002 = vmatpush.msra.mxu0 %v638
    %1003 = vmatpush.msra.mxu0 %v635
    %1004 = vmatpush.msra.mxu0 %v632
    %1005 = vmatpush.msra.mxu0 %v629
    %1006 = vmatpush.msra.mxu0 %v626
    %1007 = vmatpush.msra.mxu0 %v623
    %1008 = vmatpush.msra.mxu0 %v620
    %1009 = vmatpush.msra.mxu0 %v617
    %1010 = vmatpush.msra.mxu0 %v614
    %1011 = vmatpush.msra.mxu0 %v611
    %1012 = vmatpush.msra.mxu0 %v608
    %1013 = vmatpush.msra.mxu0 %v605
    %1014 = vmatpush.msra.mxu0 %v602
    %1015 = vmatpush.msra.mxu0 %v599
    %1016 = vmatpush.msra.mxu0 %v596
    %1017 = vmatpush.msra.mxu0 %v593
    %1018 = vmatmul.f32.gmra.mxu0 %v590
    %v1019 = vpop.f32.mrf.mxu0
    %v1020 = vadd.f32 0.0, %v1019
    %1021 = vdwg.mxu0
    %1022 = vmatpush.msra.mxu0 %v744
    %1023 = vmatpush.msra.mxu0 %v741
    %1024 = vmatpush.msra.mxu0 %v738
    %1025 = vmatpush.msra.mxu0 %v735
    %1026 = vmatpush.msra.mxu0 %v732
    %1027 = vmatpush.msra.mxu0 %v729
    %1028 = vmatpush.msra.mxu0 %v726
    %1029 = vmatpush.msra.mxu0 %v723
    %1030 = vmatpush.msra.mxu0 %v720
    %1031 = vmatpush.msra.mxu0 %v717
    %1032 = vmatpush.msra.mxu0 %v714
    %1033 = vmatpush.msra.mxu0 %v711
    %1034 = vmatpush.msra.mxu0 %v708
    %1035 = vmatpush.msra.mxu0 %v705
    %1036 = vmatpush.msra.mxu0 %v702
    %1037 = vmatpush.msra.mxu0 %v699
    %1038 = vmatmul.f32.gmra.mxu0 %v852
    %v1039 = vpop.f32.mrf.mxu0
    %v1040 = vadd.f32 0.0, %v1039
    %1041 = vdwg.mxu0
    %1042 = vmatpush.msra.mxu0 %v745
    %1043 = vmatpush.msra.mxu0 %v742
    %1044 = vmatpush.msra.mxu0 %v739
    %1045 = vmatpush.msra.mxu0 %v736
    %1046 = vmatpush.msra.mxu0 %v733
    %1047 = vmatpush.msra.mxu0 %v730
    %1048 = vmatpush.msra.mxu0 %v727
    %1049 = vmatpush.msra.mxu0 %v724
    %1050 = vmatpush.msra.mxu0 %v721
    %1051 = vmatpush.msra.mxu0 %v718
    %1052 = vmatpush.msra.mxu0 %v715
    %1053 = vmatpush.msra.mxu0 %v712
    %1054 = vmatpush.msra.mxu0 %v709
    %1055 = vmatpush.msra.mxu0 %v706
    %1056 = vmatpush.msra.mxu0 %v703
    %1057 = vmatpush.msra.mxu0 %v700
    %1058 = vmatmul.f32.gmra.mxu0 %v852
    %v1059 = vpop.f32.mrf.mxu0
    %v1060 = vadd.f32 0.0, %v1059
    %1061 = vdwg.mxu0
    %1062 = vmatpush.msra.mxu0 %v746
    %1063 = vmatpush.msra.mxu0 %v743
    %1064 = vmatpush.msra.mxu0 %v740
    %1065 = vmatpush.msra.mxu0 %v737
    %1066 = vmatpush.msra.mxu0 %v734
    %1067 = vmatpush.msra.mxu0 %v731
    %1068 = vmatpush.msra.mxu0 %v728
    %1069 = vmatpush.msra.mxu0 %v725
    %1070 = vmatpush.msra.mxu0 %v722
    %1071 = vmatpush.msra.mxu0 %v719
    %1072 = vmatpush.msra.mxu0 %v716
    %1073 = vmatpush.msra.mxu0 %v713
    %1074 = vmatpush.msra.mxu0 %v710
    %1075 = vmatpush.msra.mxu0 %v707
    %1076 = vmatpush.msra.mxu0 %v704
    %1077 = vmatpush.msra.mxu0 %v701
    %1078 = vmatmul.f32.gmra.mxu0 %v852
    %v1079 = vpop.f32.mrf.mxu0
    %v1080 = vadd.f32 0.0, %v1079
    %1081 = vdwg.mxu0
    %v1082 = vadd.f32 %v980, %v1040
    %v1083 = vadd.f32 %v1000, %v1060
    %v1084 = vxor.u32 %v1082, 2147483648
    %v1085 = vxor.u32 %v1083, 2147483648
    %v1086 = vmul.f32 %v1084, 1.442695
    %v1087 = vpow.pop %v1086
    %v1088 = vmul.f32 %v1085, 1.442695
    %v1089 = vpow.pop %v1088
    %v1090 = vadd.f32 %v1087, 1.0
    %v1091 = vadd.f32 %v1089, 1.0
    %v1092 = vrcp.pop %v1090
    %v1093 = vmul.f32 %v1090, %v1092
    %v1094 = vsub.f32 1.0, %v1093
    %v1095 = vmul.f32 %v1092, %v1094
    %v1096 = vadd.f32 %v1092, %v1095
    %vm1097 = vweird.f32 %v1090
    %vm1098 = vweird.f32 %v1092
    %vm1099 = vmor %vm1097, %vm1098
    %v1100 = vsel %vm1099, %v1092, %v1096
    %v1101 = vand.u32 2147483647, %v1090
    %vm1102 = vcmp.eq.f32.partialorder %v1101, 8.507059e+37
    %v1103 = vand.u32 %v1090, 2147483648
    %v1104 = vor.u32 1.1754944e-38, %v1103
    %v1105 = vsel %vm1102, %v1104, %v1100
    %v1106 = vmul.f32 1.0, %v1105
    %v1107 = vrcp.pop %v1091
    %v1108 = vmul.f32 %v1091, %v1107
    %v1109 = vsub.f32 1.0, %v1108
    %v1110 = vmul.f32 %v1107, %v1109
    %v1111 = vadd.f32 %v1107, %v1110
    %vm1112 = vweird.f32 %v1091
    %vm1113 = vweird.f32 %v1107
    %vm1114 = vmor %vm1112, %vm1113
    %v1115 = vsel %vm1114, %v1107, %v1111
    %v1116 = vand.u32 2147483647, %v1091
    %vm1117 = vcmp.eq.f32.partialorder %v1116, 8.507059e+37
    %v1118 = vand.u32 %v1091, 2147483648
    %v1119 = vor.u32 1.1754944e-38, %v1118
    %v1120 = vsel %vm1117, %v1119, %v1115
    %v1121 = vmul.f32 1.0, %v1120
    %v1122 = vmul.f32 %v1106, %v1080
    %v1123 = vadd.f32 %v1020, %v1122
    %v1124 = vtanh.pop %v1123
    %v1125 = vsub.f32 %v852, %v1124
    %v1126 = vmul.f32 %v1121, %v1125
    %v1127 = vadd.f32 %v1124, %v1126
    %v1128 = vld [vmem:[#allocation2 + $0x48] sm:$0xff]
    %v1129 = vld [vmem:[#allocation2 + $0x50] sm:$0xff]
    %v1130 = vld [vmem:[#allocation2 + $0x58] sm:$0xff]
    %1131 = vmatpush.msra.mxu0 %v373
    %1132 = vmatpush.msra.mxu0 %v370
    %1133 = vmatpush.msra.mxu0 %v367
    %1134 = vmatpush.msra.mxu0 %v364
    %1135 = vmatpush.msra.mxu0 %v361
    %1136 = vmatpush.msra.mxu0 %v358
    %1137 = vmatpush.msra.mxu0 %v355
    %1138 = vmatpush.msra.mxu0 %v352
    %1139 = vmatpush.msra.mxu0 %v349
    %1140 = vmatpush.msra.mxu0 %v346
    %1141 = vmatpush.msra.mxu0 %v343
    %1142 = vmatpush.msra.mxu0 %v340
    %1143 = vmatpush.msra.mxu0 %v337
    %1144 = vmatpush.msra.mxu0 %v334
    %1145 = vmatpush.msra.mxu0 %v331
    %1146 = vmatpush.msra.mxu0 %v328
    %1147 = vmatmul.f32.gmra.mxu0 %v961
    %v1148 = vpop.f32.mrf.mxu0
    %v1149 = vadd.f32 0.0, %v1148
    %1150 = vdwg.mxu0
    %1151 = vmatpush.msra.mxu0 %v374
    %1152 = vmatpush.msra.mxu0 %v371
    %1153 = vmatpush.msra.mxu0 %v368
    %1154 = vmatpush.msra.mxu0 %v365
    %1155 = vmatpush.msra.mxu0 %v362
    %1156 = vmatpush.msra.mxu0 %v359
    %1157 = vmatpush.msra.mxu0 %v356
    %1158 = vmatpush.msra.mxu0 %v353
    %1159 = vmatpush.msra.mxu0 %v350
    %1160 = vmatpush.msra.mxu0 %v347
    %1161 = vmatpush.msra.mxu0 %v344
    %1162 = vmatpush.msra.mxu0 %v341
    %1163 = vmatpush.msra.mxu0 %v338
    %1164 = vmatpush.msra.mxu0 %v335
    %1165 = vmatpush.msra.mxu0 %v332
    %1166 = vmatpush.msra.mxu0 %v329
    %1167 = vmatmul.f32.gmra.mxu0 %v961
    %v1168 = vpop.f32.mrf.mxu0
    %v1169 = vadd.f32 0.0, %v1168
    %1170 = vdwg.mxu0
    %1171 = vmatpush.msra.mxu0 %v375
    %1172 = vmatpush.msra.mxu0 %v372
    %1173 = vmatpush.msra.mxu0 %v369
    %1174 = vmatpush.msra.mxu0 %v366
    %1175 = vmatpush.msra.mxu0 %v363
    %1176 = vmatpush.msra.mxu0 %v360
    %1177 = vmatpush.msra.mxu0 %v357
    %1178 = vmatpush.msra.mxu0 %v354
    %1179 = vmatpush.msra.mxu0 %v351
    %1180 = vmatpush.msra.mxu0 %v348
    %1181 = vmatpush.msra.mxu0 %v345
    %1182 = vmatpush.msra.mxu0 %v342
    %1183 = vmatpush.msra.mxu0 %v339
    %1184 = vmatpush.msra.mxu0 %v336
    %1185 = vmatpush.msra.mxu0 %v333
    %1186 = vmatpush.msra.mxu0 %v330
    %1187 = vmatmul.f32.gmra.mxu0 %v961
    %v1188 = vpop.f32.mrf.mxu0
    %v1189 = vadd.f32 0.0, %v1188
    %1190 = vdwg.mxu0
    %v1191 = vadd.f32 %v1128, %v1149
    %v1192 = vadd.f32 %v1129, %v1169
    %v1193 = vxor.u32 %v1191, 2147483648
    %v1194 = vxor.u32 %v1192, 2147483648
    %v1195 = vmul.f32 %v1193, 1.442695
    %v1196 = vpow.pop %v1195
    %v1197 = vmul.f32 %v1194, 1.442695
    %v1198 = vpow.pop %v1197
    %v1199 = vadd.f32 %v1196, 1.0
    %v1200 = vadd.f32 %v1198, 1.0
    %v1201 = vrcp.pop %v1199
    %v1202 = vmul.f32 %v1199, %v1201
    %v1203 = vsub.f32 1.0, %v1202
    %v1204 = vmul.f32 %v1201, %v1203
    %v1205 = vadd.f32 %v1201, %v1204
    %vm1206 = vweird.f32 %v1199
    %vm1207 = vweird.f32 %v1201
    %vm1208 = vmor %vm1206, %vm1207
    %v1209 = vsel %vm1208, %v1201, %v1205
    %v1210 = vand.u32 2147483647, %v1199
    %vm1211 = vcmp.eq.f32.partialorder %v1210, 8.507059e+37
    %v1212 = vand.u32 %v1199, 2147483648
    %v1213 = vor.u32 1.1754944e-38, %v1212
    %v1214 = vsel %vm1211, %v1213, %v1209
    %v1215 = vmul.f32 1.0, %v1214
    %v1216 = vrcp.pop %v1200
    %v1217 = vmul.f32 %v1200, %v1216
    %v1218 = vsub.f32 1.0, %v1217
    %v1219 = vmul.f32 %v1216, %v1218
    %v1220 = vadd.f32 %v1216, %v1219
    %vm1221 = vweird.f32 %v1200
    %vm1222 = vweird.f32 %v1216
    %vm1223 = vmor %vm1221, %vm1222
    %v1224 = vsel %vm1223, %v1216, %v1220
    %v1225 = vand.u32 2147483647, %v1200
    %vm1226 = vcmp.eq.f32.partialorder %v1225, 8.507059e+37
    %v1227 = vand.u32 %v1200, 2147483648
    %v1228 = vor.u32 1.1754944e-38, %v1227
    %v1229 = vsel %vm1226, %v1228, %v1224
    %v1230 = vmul.f32 1.0, %v1229
    %v1231 = vmul.f32 %v1215, %v1189
    %v1232 = vadd.f32 %v1130, %v1231
    %v1233 = vtanh.pop %v1232
    %v1234 = vsub.f32 %v961, %v1233
    %v1235 = vmul.f32 %v1230, %v1234
    %v1236 = vadd.f32 %v1233, %v1235
    %1237 = vmatpush.msra.mxu0 %v636
    %1238 = vmatpush.msra.mxu0 %v633
    %1239 = vmatpush.msra.mxu0 %v630
    %1240 = vmatpush.msra.mxu0 %v627
    %1241 = vmatpush.msra.mxu0 %v624
    %1242 = vmatpush.msra.mxu0 %v621
    %1243 = vmatpush.msra.mxu0 %v618
    %1244 = vmatpush.msra.mxu0 %v615
    %1245 = vmatpush.msra.mxu0 %v612
    %1246 = vmatpush.msra.mxu0 %v609
    %1247 = vmatpush.msra.mxu0 %v606
    %1248 = vmatpush.msra.mxu0 %v603
    %1249 = vmatpush.msra.mxu0 %v600
    %1250 = vmatpush.msra.mxu0 %v597
    %1251 = vmatpush.msra.mxu0 %v594
    %1252 = vmatpush.msra.mxu0 %v591
    %1253 = vmatmul.f32.gmra.mxu0 %v961
    %v1254 = vpop.f32.mrf.mxu0
    %v1255 = vadd.f32 0.0, %v1254
    %1256 = vdwg.mxu0
    %1257 = vmatpush.msra.mxu0 %v637
    %1258 = vmatpush.msra.mxu0 %v634
    %1259 = vmatpush.msra.mxu0 %v631
    %1260 = vmatpush.msra.mxu0 %v628
    %1261 = vmatpush.msra.mxu0 %v625
    %1262 = vmatpush.msra.mxu0 %v622
    %1263 = vmatpush.msra.mxu0 %v619
    %1264 = vmatpush.msra.mxu0 %v616
    %1265 = vmatpush.msra.mxu0 %v613
    %1266 = vmatpush.msra.mxu0 %v610
    %1267 = vmatpush.msra.mxu0 %v607
    %1268 = vmatpush.msra.mxu0 %v604
    %1269 = vmatpush.msra.mxu0 %v601
    %1270 = vmatpush.msra.mxu0 %v598
    %1271 = vmatpush.msra.mxu0 %v595
    %1272 = vmatpush.msra.mxu0 %v592
    %1273 = vmatmul.f32.gmra.mxu0 %v961
    %v1274 = vpop.f32.mrf.mxu0
    %v1275 = vadd.f32 0.0, %v1274
    %1276 = vdwg.mxu0
    %1277 = vmatpush.msra.mxu0 %v638
    %1278 = vmatpush.msra.mxu0 %v635
    %1279 = vmatpush.msra.mxu0 %v632
    %1280 = vmatpush.msra.mxu0 %v629
    %1281 = vmatpush.msra.mxu0 %v626
    %1282 = vmatpush.msra.mxu0 %v623
    %1283 = vmatpush.msra.mxu0 %v620
    %1284 = vmatpush.msra.mxu0 %v617
    %1285 = vmatpush.msra.mxu0 %v614
    %1286 = vmatpush.msra.mxu0 %v611
    %1287 = vmatpush.msra.mxu0 %v608
    %1288 = vmatpush.msra.mxu0 %v605
    %1289 = vmatpush.msra.mxu0 %v602
    %1290 = vmatpush.msra.mxu0 %v599
    %1291 = vmatpush.msra.mxu0 %v596
    %1292 = vmatpush.msra.mxu0 %v593
    %1293 = vmatmul.f32.gmra.mxu0 %v961
    %v1294 = vpop.f32.mrf.mxu0
    %v1295 = vadd.f32 0.0, %v1294
    %1296 = vdwg.mxu0
    %1297 = vmatpush.msra.mxu0 %v744
    %1298 = vmatpush.msra.mxu0 %v741
    %1299 = vmatpush.msra.mxu0 %v738
    %1300 = vmatpush.msra.mxu0 %v735
    %1301 = vmatpush.msra.mxu0 %v732
    %1302 = vmatpush.msra.mxu0 %v729
    %1303 = vmatpush.msra.mxu0 %v726
    %1304 = vmatpush.msra.mxu0 %v723
    %1305 = vmatpush.msra.mxu0 %v720
    %1306 = vmatpush.msra.mxu0 %v717
    %1307 = vmatpush.msra.mxu0 %v714
    %1308 = vmatpush.msra.mxu0 %v711
    %1309 = vmatpush.msra.mxu0 %v708
    %1310 = vmatpush.msra.mxu0 %v705
    %1311 = vmatpush.msra.mxu0 %v702
    %1312 = vmatpush.msra.mxu0 %v699
    %1313 = vmatmul.f32.gmra.mxu0 %v1127
    %v1314 = vpop.f32.mrf.mxu0
    %v1315 = vadd.f32 0.0, %v1314
    %1316 = vdwg.mxu0
    %1317 = vmatpush.msra.mxu0 %v745
    %1318 = vmatpush.msra.mxu0 %v742
    %1319 = vmatpush.msra.mxu0 %v739
    %1320 = vmatpush.msra.mxu0 %v736
    %1321 = vmatpush.msra.mxu0 %v733
    %1322 = vmatpush.msra.mxu0 %v730
    %1323 = vmatpush.msra.mxu0 %v727
    %1324 = vmatpush.msra.mxu0 %v724
    %1325 = vmatpush.msra.mxu0 %v721
    %1326 = vmatpush.msra.mxu0 %v718
    %1327 = vmatpush.msra.mxu0 %v715
    %1328 = vmatpush.msra.mxu0 %v712
    %1329 = vmatpush.msra.mxu0 %v709
    %1330 = vmatpush.msra.mxu0 %v706
    %1331 = vmatpush.msra.mxu0 %v703
    %1332 = vmatpush.msra.mxu0 %v700
    %1333 = vmatmul.f32.gmra.mxu0 %v1127
    %v1334 = vpop.f32.mrf.mxu0
    %v1335 = vadd.f32 0.0, %v1334
    %1336 = vdwg.mxu0
    %1337 = vmatpush.msra.mxu0 %v746
    %1338 = vmatpush.msra.mxu0 %v743
    %1339 = vmatpush.msra.mxu0 %v740
    %1340 = vmatpush.msra.mxu0 %v737
    %1341 = vmatpush.msra.mxu0 %v734
    %1342 = vmatpush.msra.mxu0 %v731
    %1343 = vmatpush.msra.mxu0 %v728
    %1344 = vmatpush.msra.mxu0 %v725
    %1345 = vmatpush.msra.mxu0 %v722
    %1346 = vmatpush.msra.mxu0 %v719
    %1347 = vmatpush.msra.mxu0 %v716
    %1348 = vmatpush.msra.mxu0 %v713
    %1349 = vmatpush.msra.mxu0 %v710
    %1350 = vmatpush.msra.mxu0 %v707
    %1351 = vmatpush.msra.mxu0 %v704
    %1352 = vmatpush.msra.mxu0 %v701
    %1353 = vmatmul.f32.gmra.mxu0 %v1127
    %v1354 = vpop.f32.mrf.mxu0
    %v1355 = vadd.f32 0.0, %v1354
    %1356 = vdwg.mxu0
    %v1357 = vadd.f32 %v1255, %v1315
    %v1358 = vadd.f32 %v1275, %v1335
    %v1359 = vxor.u32 %v1357, 2147483648
    %v1360 = vxor.u32 %v1358, 2147483648
    %v1361 = vmul.f32 %v1359, 1.442695
    %v1362 = vpow.pop %v1361
    %v1363 = vmul.f32 %v1360, 1.442695
    %v1364 = vpow.pop %v1363
    %v1365 = vadd.f32 %v1362, 1.0
    %v1366 = vadd.f32 %v1364, 1.0
    %v1367 = vrcp.pop %v1365
    %v1368 = vmul.f32 %v1365, %v1367
    %v1369 = vsub.f32 1.0, %v1368
    %v1370 = vmul.f32 %v1367, %v1369
    %v1371 = vadd.f32 %v1367, %v1370
    %vm1372 = vweird.f32 %v1365
    %vm1373 = vweird.f32 %v1367
    %vm1374 = vmor %vm1372, %vm1373
    %v1375 = vsel %vm1374, %v1367, %v1371
    %v1376 = vand.u32 2147483647, %v1365
    %vm1377 = vcmp.eq.f32.partialorder %v1376, 8.507059e+37
    %v1378 = vand.u32 %v1365, 2147483648
    %v1379 = vor.u32 1.1754944e-38, %v1378
    %v1380 = vsel %vm1377, %v1379, %v1375
    %v1381 = vmul.f32 1.0, %v1380
    %v1382 = vrcp.pop %v1366
    %v1383 = vmul.f32 %v1366, %v1382
    %v1384 = vsub.f32 1.0, %v1383
    %v1385 = vmul.f32 %v1382, %v1384
    %v1386 = vadd.f32 %v1382, %v1385
    %vm1387 = vweird.f32 %v1366
    %vm1388 = vweird.f32 %v1382
    %vm1389 = vmor %vm1387, %vm1388
    %v1390 = vsel %vm1389, %v1382, %v1386
    %v1391 = vand.u32 2147483647, %v1366
    %vm1392 = vcmp.eq.f32.partialorder %v1391, 8.507059e+37
    %v1393 = vand.u32 %v1366, 2147483648
    %v1394 = vor.u32 1.1754944e-38, %v1393
    %v1395 = vsel %vm1392, %v1394, %v1390
    %v1396 = vmul.f32 1.0, %v1395
    %v1397 = vmul.f32 %v1381, %v1355
    %v1398 = vadd.f32 %v1295, %v1397
    %v1399 = vtanh.pop %v1398
    %v1400 = vsub.f32 %v1127, %v1399
    %v1401 = vmul.f32 %v1396, %v1400
    %v1402 = vadd.f32 %v1399, %v1401
    %v1403 = vld [vmem:[#allocation2 + $0x60] sm:$0xff]
    %v1404 = vld [vmem:[#allocation2 + $0x68] sm:$0xff]
    %v1405 = vld [vmem:[#allocation2 + $0x70] sm:$0xff]
    %1406 = vmatpush.msra.mxu0 %v373
    %1407 = vmatpush.msra.mxu0 %v370
    %1408 = vmatpush.msra.mxu0 %v367
    %1409 = vmatpush.msra.mxu0 %v364
    %1410 = vmatpush.msra.mxu0 %v361
    %1411 = vmatpush.msra.mxu0 %v358
    %1412 = vmatpush.msra.mxu0 %v355
    %1413 = vmatpush.msra.mxu0 %v352
    %1414 = vmatpush.msra.mxu0 %v349
    %1415 = vmatpush.msra.mxu0 %v346
    %1416 = vmatpush.msra.mxu0 %v343
    %1417 = vmatpush.msra.mxu0 %v340
    %1418 = vmatpush.msra.mxu0 %v337
    %1419 = vmatpush.msra.mxu0 %v334
    %1420 = vmatpush.msra.mxu0 %v331
    %1421 = vmatpush.msra.mxu0 %v328
    %1422 = vmatmul.f32.gmra.mxu0 %v1236
    %v1423 = vpop.f32.mrf.mxu0
    %v1424 = vadd.f32 0.0, %v1423
    %1425 = vdwg.mxu0
    %1426 = vmatpush.msra.mxu0 %v374
    %1427 = vmatpush.msra.mxu0 %v371
    %1428 = vmatpush.msra.mxu0 %v368
    %1429 = vmatpush.msra.mxu0 %v365
    %1430 = vmatpush.msra.mxu0 %v362
    %1431 = vmatpush.msra.mxu0 %v359
    %1432 = vmatpush.msra.mxu0 %v356
    %1433 = vmatpush.msra.mxu0 %v353
    %1434 = vmatpush.msra.mxu0 %v350
    %1435 = vmatpush.msra.mxu0 %v347
    %1436 = vmatpush.msra.mxu0 %v344
    %1437 = vmatpush.msra.mxu0 %v341
    %1438 = vmatpush.msra.mxu0 %v338
    %1439 = vmatpush.msra.mxu0 %v335
    %1440 = vmatpush.msra.mxu0 %v332
    %1441 = vmatpush.msra.mxu0 %v329
    %1442 = vmatmul.f32.gmra.mxu0 %v1236
    %v1443 = vpop.f32.mrf.mxu0
    %v1444 = vadd.f32 0.0, %v1443
    %1445 = vdwg.mxu0
    %1446 = vmatpush.msra.mxu0 %v375
    %1447 = vmatpush.msra.mxu0 %v372
    %1448 = vmatpush.msra.mxu0 %v369
    %1449 = vmatpush.msra.mxu0 %v366
    %1450 = vmatpush.msra.mxu0 %v363
    %1451 = vmatpush.msra.mxu0 %v360
    %1452 = vmatpush.msra.mxu0 %v357
    %1453 = vmatpush.msra.mxu0 %v354
    %1454 = vmatpush.msra.mxu0 %v351
    %1455 = vmatpush.msra.mxu0 %v348
    %1456 = vmatpush.msra.mxu0 %v345
    %1457 = vmatpush.msra.mxu0 %v342
    %1458 = vmatpush.msra.mxu0 %v339
    %1459 = vmatpush.msra.mxu0 %v336
    %1460 = vmatpush.msra.mxu0 %v333
    %1461 = vmatpush.msra.mxu0 %v330
    %1462 = vmatmul.f32.gmra.mxu0 %v1236
    %v1463 = vpop.f32.mrf.mxu0
    %v1464 = vadd.f32 0.0, %v1463
    %1465 = vdwg.mxu0
    %v1466 = vadd.f32 %v1403, %v1424
    %v1467 = vadd.f32 %v1404, %v1444
    %v1468 = vxor.u32 %v1466, 2147483648
    %v1469 = vxor.u32 %v1467, 2147483648
    %v1470 = vmul.f32 %v1468, 1.442695
    %v1471 = vpow.pop %v1470
    %v1472 = vmul.f32 %v1469, 1.442695
    %v1473 = vpow.pop %v1472
    %v1474 = vadd.f32 %v1471, 1.0
    %v1475 = vadd.f32 %v1473, 1.0
    %v1476 = vrcp.pop %v1474
    %v1477 = vmul.f32 %v1474, %v1476
    %v1478 = vsub.f32 1.0, %v1477
    %v1479 = vmul.f32 %v1476, %v1478
    %v1480 = vadd.f32 %v1476, %v1479
    %vm1481 = vweird.f32 %v1474
    %vm1482 = vweird.f32 %v1476
    %vm1483 = vmor %vm1481, %vm1482
    %v1484 = vsel %vm1483, %v1476, %v1480
    %v1485 = vand.u32 2147483647, %v1474
    %vm1486 = vcmp.eq.f32.partialorder %v1485, 8.507059e+37
    %v1487 = vand.u32 %v1474, 2147483648
    %v1488 = vor.u32 1.1754944e-38, %v1487
    %v1489 = vsel %vm1486, %v1488, %v1484
    %v1490 = vmul.f32 1.0, %v1489
    %v1491 = vrcp.pop %v1475
    %v1492 = vmul.f32 %v1475, %v1491
    %v1493 = vsub.f32 1.0, %v1492
    %v1494 = vmul.f32 %v1491, %v1493
    %v1495 = vadd.f32 %v1491, %v1494
    %vm1496 = vweird.f32 %v1475
    %vm1497 = vweird.f32 %v1491
    %vm1498 = vmor %vm1496, %vm1497
    %v1499 = vsel %vm1498, %v1491, %v1495
    %v1500 = vand.u32 2147483647, %v1475
    %vm1501 = vcmp.eq.f32.partialorder %v1500, 8.507059e+37
    %v1502 = vand.u32 %v1475, 2147483648
    %v1503 = vor.u32 1.1754944e-38, %v1502
    %v1504 = vsel %vm1501, %v1503, %v1499
    %v1505 = vmul.f32 1.0, %v1504
    %v1506 = vmul.f32 %v1490, %v1464
    %v1507 = vadd.f32 %v1405, %v1506
    %v1508 = vtanh.pop %v1507
    %v1509 = vsub.f32 %v1236, %v1508
    %v1510 = vmul.f32 %v1505, %v1509
    %v1511 = vadd.f32 %v1508, %v1510
    %1512 = vmatpush.msra.mxu0 %v636
    %1513 = vmatpush.msra.mxu0 %v633
    %1514 = vmatpush.msra.mxu0 %v630
    %1515 = vmatpush.msra.mxu0 %v627
    %1516 = vmatpush.msra.mxu0 %v624
    %1517 = vmatpush.msra.mxu0 %v621
    %1518 = vmatpush.msra.mxu0 %v618
    %1519 = vmatpush.msra.mxu0 %v615
    %1520 = vmatpush.msra.mxu0 %v612
    %1521 = vmatpush.msra.mxu0 %v609
    %1522 = vmatpush.msra.mxu0 %v606
    %1523 = vmatpush.msra.mxu0 %v603
    %1524 = vmatpush.msra.mxu0 %v600
    %1525 = vmatpush.msra.mxu0 %v597
    %1526 = vmatpush.msra.mxu0 %v594
    %1527 = vmatpush.msra.mxu0 %v591
    %1528 = vmatmul.f32.gmra.mxu0 %v1236
    %v1529 = vpop.f32.mrf.mxu0
    %v1530 = vadd.f32 0.0, %v1529
    %1531 = vdwg.mxu0
    %1532 = vmatpush.msra.mxu0 %v637
    %1533 = vmatpush.msra.mxu0 %v634
    %1534 = vmatpush.msra.mxu0 %v631
    %1535 = vmatpush.msra.mxu0 %v628
    %1536 = vmatpush.msra.mxu0 %v625
    %1537 = vmatpush.msra.mxu0 %v622
    %1538 = vmatpush.msra.mxu0 %v619
    %1539 = vmatpush.msra.mxu0 %v616
    %1540 = vmatpush.msra.mxu0 %v613
    %1541 = vmatpush.msra.mxu0 %v610
    %1542 = vmatpush.msra.mxu0 %v607
    %1543 = vmatpush.msra.mxu0 %v604
    %1544 = vmatpush.msra.mxu0 %v601
    %1545 = vmatpush.msra.mxu0 %v598
    %1546 = vmatpush.msra.mxu0 %v595
    %1547 = vmatpush.msra.mxu0 %v592
    %1548 = vmatmul.f32.gmra.mxu0 %v1236
    %v1549 = vpop.f32.mrf.mxu0
    %v1550 = vadd.f32 0.0, %v1549
    %1551 = vdwg.mxu0
    %1552 = vmatpush.msra.mxu0 %v638
    %1553 = vmatpush.msra.mxu0 %v635
    %1554 = vmatpush.msra.mxu0 %v632
    %1555 = vmatpush.msra.mxu0 %v629
    %1556 = vmatpush.msra.mxu0 %v626
    %1557 = vmatpush.msra.mxu0 %v623
    %1558 = vmatpush.msra.mxu0 %v620
    %1559 = vmatpush.msra.mxu0 %v617
    %1560 = vmatpush.msra.mxu0 %v614
    %1561 = vmatpush.msra.mxu0 %v611
    %1562 = vmatpush.msra.mxu0 %v608
    %1563 = vmatpush.msra.mxu0 %v605
    %1564 = vmatpush.msra.mxu0 %v602
    %1565 = vmatpush.msra.mxu0 %v599
    %1566 = vmatpush.msra.mxu0 %v596
    %1567 = vmatpush.msra.mxu0 %v593
    %1568 = vmatmul.f32.gmra.mxu0 %v1236
    %v1569 = vpop.f32.mrf.mxu0
    %v1570 = vadd.f32 0.0, %v1569
    %1571 = vdwg.mxu0
    %1572 = vmatpush.msra.mxu0 %v744
    %1573 = vmatpush.msra.mxu0 %v741
    %1574 = vmatpush.msra.mxu0 %v738
    %1575 = vmatpush.msra.mxu0 %v735
    %1576 = vmatpush.msra.mxu0 %v732
    %1577 = vmatpush.msra.mxu0 %v729
    %1578 = vmatpush.msra.mxu0 %v726
    %1579 = vmatpush.msra.mxu0 %v723
    %1580 = vmatpush.msra.mxu0 %v720
    %1581 = vmatpush.msra.mxu0 %v717
    %1582 = vmatpush.msra.mxu0 %v714
    %1583 = vmatpush.msra.mxu0 %v711
    %1584 = vmatpush.msra.mxu0 %v708
    %1585 = vmatpush.msra.mxu0 %v705
    %1586 = vmatpush.msra.mxu0 %v702
    %1587 = vmatpush.msra.mxu0 %v699
    %1588 = vmatmul.f32.gmra.mxu0 %v1402
    %v1589 = vpop.f32.mrf.mxu0
    %v1590 = vadd.f32 0.0, %v1589
    %1591 = vdwg.mxu0
    %1592 = vmatpush.msra.mxu0 %v745
    %1593 = vmatpush.msra.mxu0 %v742
    %1594 = vmatpush.msra.mxu0 %v739
    %1595 = vmatpush.msra.mxu0 %v736
    %1596 = vmatpush.msra.mxu0 %v733
    %1597 = vmatpush.msra.mxu0 %v730
    %1598 = vmatpush.msra.mxu0 %v727
    %1599 = vmatpush.msra.mxu0 %v724
    %1600 = vmatpush.msra.mxu0 %v721
    %1601 = vmatpush.msra.mxu0 %v718
    %1602 = vmatpush.msra.mxu0 %v715
    %1603 = vmatpush.msra.mxu0 %v712
    %1604 = vmatpush.msra.mxu0 %v709
    %1605 = vmatpush.msra.mxu0 %v706
    %1606 = vmatpush.msra.mxu0 %v703
    %1607 = vmatpush.msra.mxu0 %v700
    %1608 = vmatmul.f32.gmra.mxu0 %v1402
    %v1609 = vpop.f32.mrf.mxu0
    %v1610 = vadd.f32 0.0, %v1609
    %1611 = vdwg.mxu0
    %1612 = vmatpush.msra.mxu0 %v746
    %1613 = vmatpush.msra.mxu0 %v743
    %1614 = vmatpush.msra.mxu0 %v740
    %1615 = vmatpush.msra.mxu0 %v737
    %1616 = vmatpush.msra.mxu0 %v734
    %1617 = vmatpush.msra.mxu0 %v731
    %1618 = vmatpush.msra.mxu0 %v728
    %1619 = vmatpush.msra.mxu0 %v725
    %1620 = vmatpush.msra.mxu0 %v722
    %1621 = vmatpush.msra.mxu0 %v719
    %1622 = vmatpush.msra.mxu0 %v716
    %1623 = vmatpush.msra.mxu0 %v713
    %1624 = vmatpush.msra.mxu0 %v710
    %1625 = vmatpush.msra.mxu0 %v707
    %1626 = vmatpush.msra.mxu0 %v704
    %1627 = vmatpush.msra.mxu0 %v701
    %1628 = vmatmul.f32.gmra.mxu0 %v1402
    %v1629 = vpop.f32.mrf.mxu0
    %v1630 = vadd.f32 0.0, %v1629
    %1631 = vdwg.mxu0
    %v1632 = vadd.f32 %v1530, %v1590
    %v1633 = vadd.f32 %v1550, %v1610
    %v1634 = vxor.u32 %v1632, 2147483648
    %v1635 = vxor.u32 %v1633, 2147483648
    %v1636 = vmul.f32 %v1634, 1.442695
    %v1637 = vpow.pop %v1636
    %v1638 = vmul.f32 %v1635, 1.442695
    %v1639 = vpow.pop %v1638
    %v1640 = vadd.f32 %v1637, 1.0
    %v1641 = vadd.f32 %v1639, 1.0
    %v1642 = vrcp.pop %v1640
    %v1643 = vmul.f32 %v1640, %v1642
    %v1644 = vsub.f32 1.0, %v1643
    %v1645 = vmul.f32 %v1642, %v1644
    %v1646 = vadd.f32 %v1642, %v1645
    %vm1647 = vweird.f32 %v1640
    %vm1648 = vweird.f32 %v1642
    %vm1649 = vmor %vm1647, %vm1648
    %v1650 = vsel %vm1649, %v1642, %v1646
    %v1651 = vand.u32 2147483647, %v1640
    %vm1652 = vcmp.eq.f32.partialorder %v1651, 8.507059e+37
    %v1653 = vand.u32 %v1640, 2147483648
    %v1654 = vor.u32 1.1754944e-38, %v1653
    %v1655 = vsel %vm1652, %v1654, %v1650
    %v1656 = vmul.f32 1.0, %v1655
    %v1657 = vrcp.pop %v1641
    %v1658 = vmul.f32 %v1641, %v1657
    %v1659 = vsub.f32 1.0, %v1658
    %v1660 = vmul.f32 %v1657, %v1659
    %v1661 = vadd.f32 %v1657, %v1660
    %vm1662 = vweird.f32 %v1641
    %vm1663 = vweird.f32 %v1657
    %vm1664 = vmor %vm1662, %vm1663
    %v1665 = vsel %vm1664, %v1657, %v1661
    %v1666 = vand.u32 2147483647, %v1641
    %vm1667 = vcmp.eq.f32.partialorder %v1666, 8.507059e+37
    %v1668 = vand.u32 %v1641, 2147483648
    %v1669 = vor.u32 1.1754944e-38, %v1668
    %v1670 = vsel %vm1667, %v1669, %v1665
    %v1671 = vmul.f32 1.0, %v1670
    %v1672 = vmul.f32 %v1656, %v1630
    %v1673 = vadd.f32 %v1570, %v1672
    %v1674 = vtanh.pop %v1673
    %v1675 = vsub.f32 %v1402, %v1674
    %v1676 = vmul.f32 %v1671, %v1675
    %v1677 = vadd.f32 %v1674, %v1676
    %v1678 = vld [vmem:[#allocation2 + $0x78] sm:$0xff]
    %v1679 = vld [vmem:[#allocation2 + $0x80] sm:$0xff]
    %v1680 = vld [vmem:[#allocation2 + $0x88] sm:$0xff]
    %1681 = vmatpush.msra.mxu0 %v373
    %1682 = vmatpush.msra.mxu0 %v370
    %1683 = vmatpush.msra.mxu0 %v367
    %1684 = vmatpush.msra.mxu0 %v364
    %1685 = vmatpush.msra.mxu0 %v361
    %1686 = vmatpush.msra.mxu0 %v358
    %1687 = vmatpush.msra.mxu0 %v355
    %1688 = vmatpush.msra.mxu0 %v352
    %1689 = vmatpush.msra.mxu0 %v349
    %1690 = vmatpush.msra.mxu0 %v346
    %1691 = vmatpush.msra.mxu0 %v343
    %1692 = vmatpush.msra.mxu0 %v340
    %1693 = vmatpush.msra.mxu0 %v337
    %1694 = vmatpush.msra.mxu0 %v334
    %1695 = vmatpush.msra.mxu0 %v331
    %1696 = vmatpush.msra.mxu0 %v328
    %1697 = vmatmul.f32.gmra.mxu0 %v1511
    %v1698 = vpop.f32.mrf.mxu0
    %v1699 = vadd.f32 0.0, %v1698
    %1700 = vdwg.mxu0
    %1701 = vmatpush.msra.mxu0 %v374
    %1702 = vmatpush.msra.mxu0 %v371
    %1703 = vmatpush.msra.mxu0 %v368
    %1704 = vmatpush.msra.mxu0 %v365
    %1705 = vmatpush.msra.mxu0 %v362
    %1706 = vmatpush.msra.mxu0 %v359
    %1707 = vmatpush.msra.mxu0 %v356
    %1708 = vmatpush.msra.mxu0 %v353
    %1709 = vmatpush.msra.mxu0 %v350
    %1710 = vmatpush.msra.mxu0 %v347
    %1711 = vmatpush.msra.mxu0 %v344
    %1712 = vmatpush.msra.mxu0 %v341
    %1713 = vmatpush.msra.mxu0 %v338
    %1714 = vmatpush.msra.mxu0 %v335
    %1715 = vmatpush.msra.mxu0 %v332
    %1716 = vmatpush.msra.mxu0 %v329
    %1717 = vmatmul.f32.gmra.mxu0 %v1511
    %v1718 = vpop.f32.mrf.mxu0
    %v1719 = vadd.f32 0.0, %v1718
    %1720 = vdwg.mxu0
    %1721 = vmatpush.msra.mxu0 %v375
    %1722 = vmatpush.msra.mxu0 %v372
    %1723 = vmatpush.msra.mxu0 %v369
    %1724 = vmatpush.msra.mxu0 %v366
    %1725 = vmatpush.msra.mxu0 %v363
    %1726 = vmatpush.msra.mxu0 %v360
    %1727 = vmatpush.msra.mxu0 %v357
    %1728 = vmatpush.msra.mxu0 %v354
    %1729 = vmatpush.msra.mxu0 %v351
    %1730 = vmatpush.msra.mxu0 %v348
    %1731 = vmatpush.msra.mxu0 %v345
    %1732 = vmatpush.msra.mxu0 %v342
    %1733 = vmatpush.msra.mxu0 %v339
    %1734 = vmatpush.msra.mxu0 %v336
    %1735 = vmatpush.msra.mxu0 %v333
    %1736 = vmatpush.msra.mxu0 %v330
    %1737 = vmatmul.f32.gmra.mxu0 %v1511
    %v1738 = vpop.f32.mrf.mxu0
    %v1739 = vadd.f32 0.0, %v1738
    %1740 = vdwg.mxu0
    %v1741 = vadd.f32 %v1678, %v1699
    %v1742 = vadd.f32 %v1679, %v1719
    %v1743 = vxor.u32 %v1741, 2147483648
    %v1744 = vxor.u32 %v1742, 2147483648
    %v1745 = vmul.f32 %v1743, 1.442695
    %v1746 = vpow.pop %v1745
    %v1747 = vmul.f32 %v1744, 1.442695
    %v1748 = vpow.pop %v1747
    %v1749 = vadd.f32 %v1746, 1.0
    %v1750 = vadd.f32 %v1748, 1.0
    %v1751 = vrcp.pop %v1749
    %v1752 = vmul.f32 %v1749, %v1751
    %v1753 = vsub.f32 1.0, %v1752
    %v1754 = vmul.f32 %v1751, %v1753
    %v1755 = vadd.f32 %v1751, %v1754
    %vm1756 = vweird.f32 %v1749
    %vm1757 = vweird.f32 %v1751
    %vm1758 = vmor %vm1756, %vm1757
    %v1759 = vsel %vm1758, %v1751, %v1755
    %v1760 = vand.u32 2147483647, %v1749
    %vm1761 = vcmp.eq.f32.partialorder %v1760, 8.507059e+37
    %v1762 = vand.u32 %v1749, 2147483648
    %v1763 = vor.u32 1.1754944e-38, %v1762
    %v1764 = vsel %vm1761, %v1763, %v1759
    %v1765 = vmul.f32 1.0, %v1764
    %v1766 = vrcp.pop %v1750
    %v1767 = vmul.f32 %v1750, %v1766
    %v1768 = vsub.f32 1.0, %v1767
    %v1769 = vmul.f32 %v1766, %v1768
    %v1770 = vadd.f32 %v1766, %v1769
    %vm1771 = vweird.f32 %v1750
    %vm1772 = vweird.f32 %v1766
    %vm1773 = vmor %vm1771, %vm1772
    %v1774 = vsel %vm1773, %v1766, %v1770
    %v1775 = vand.u32 2147483647, %v1750
    %vm1776 = vcmp.eq.f32.partialorder %v1775, 8.507059e+37
    %v1777 = vand.u32 %v1750, 2147483648
    %v1778 = vor.u32 1.1754944e-38, %v1777
    %v1779 = vsel %vm1776, %v1778, %v1774
    %v1780 = vmul.f32 1.0, %v1779
    %v1781 = vmul.f32 %v1765, %v1739
    %v1782 = vadd.f32 %v1680, %v1781
    %v1783 = vtanh.pop %v1782
    %v1784 = vsub.f32 %v1511, %v1783
    %v1785 = vmul.f32 %v1780, %v1784
    %v1786 = vadd.f32 %v1783, %v1785
    %1787 = vmatpush.msra.mxu0 %v636
    %1788 = vmatpush.msra.mxu0 %v633
    %1789 = vmatpush.msra.mxu0 %v630
    %1790 = vmatpush.msra.mxu0 %v627
    %1791 = vmatpush.msra.mxu0 %v624
    %1792 = vmatpush.msra.mxu0 %v621
    %1793 = vmatpush.msra.mxu0 %v618
    %1794 = vmatpush.msra.mxu0 %v615
    %1795 = vmatpush.msra.mxu0 %v612
    %1796 = vmatpush.msra.mxu0 %v609
    %1797 = vmatpush.msra.mxu0 %v606
    %1798 = vmatpush.msra.mxu0 %v603
    %1799 = vmatpush.msra.mxu0 %v600
    %1800 = vmatpush.msra.mxu0 %v597
    %1801 = vmatpush.msra.mxu0 %v594
    %1802 = vmatpush.msra.mxu0 %v591
    %1803 = vmatmul.f32.gmra.mxu0 %v1511
    %v1804 = vpop.f32.mrf.mxu0
    %v1805 = vadd.f32 0.0, %v1804
    %1806 = vdwg.mxu0
    %1807 = vmatpush.msra.mxu0 %v637
    %1808 = vmatpush.msra.mxu0 %v634
    %1809 = vmatpush.msra.mxu0 %v631
    %1810 = vmatpush.msra.mxu0 %v628
    %1811 = vmatpush.msra.mxu0 %v625
    %1812 = vmatpush.msra.mxu0 %v622
    %1813 = vmatpush.msra.mxu0 %v619
    %1814 = vmatpush.msra.mxu0 %v616
    %1815 = vmatpush.msra.mxu0 %v613
    %1816 = vmatpush.msra.mxu0 %v610
    %1817 = vmatpush.msra.mxu0 %v607
    %1818 = vmatpush.msra.mxu0 %v604
    %1819 = vmatpush.msra.mxu0 %v601
    %1820 = vmatpush.msra.mxu0 %v598
    %1821 = vmatpush.msra.mxu0 %v595
    %1822 = vmatpush.msra.mxu0 %v592
    %1823 = vmatmul.f32.gmra.mxu0 %v1511
    %v1824 = vpop.f32.mrf.mxu0
    %v1825 = vadd.f32 0.0, %v1824
    %1826 = vdwg.mxu0
    %1827 = vmatpush.msra.mxu0 %v638
    %1828 = vmatpush.msra.mxu0 %v635
    %1829 = vmatpush.msra.mxu0 %v632
    %1830 = vmatpush.msra.mxu0 %v629
    %1831 = vmatpush.msra.mxu0 %v626
    %1832 = vmatpush.msra.mxu0 %v623
    %1833 = vmatpush.msra.mxu0 %v620
    %1834 = vmatpush.msra.mxu0 %v617
    %1835 = vmatpush.msra.mxu0 %v614
    %1836 = vmatpush.msra.mxu0 %v611
    %1837 = vmatpush.msra.mxu0 %v608
    %1838 = vmatpush.msra.mxu0 %v605
    %1839 = vmatpush.msra.mxu0 %v602
    %1840 = vmatpush.msra.mxu0 %v599
    %1841 = vmatpush.msra.mxu0 %v596
    %1842 = vmatpush.msra.mxu0 %v593
    %1843 = vmatmul.f32.gmra.mxu0 %v1511
    %v1844 = vpop.f32.mrf.mxu0
    %v1845 = vadd.f32 0.0, %v1844
    %1846 = vdwg.mxu0
    %1847 = vmatpush.msra.mxu0 %v744
    %1848 = vmatpush.msra.mxu0 %v741
    %1849 = vmatpush.msra.mxu0 %v738
    %1850 = vmatpush.msra.mxu0 %v735
    %1851 = vmatpush.msra.mxu0 %v732
    %1852 = vmatpush.msra.mxu0 %v729
    %1853 = vmatpush.msra.mxu0 %v726
    %1854 = vmatpush.msra.mxu0 %v723
    %1855 = vmatpush.msra.mxu0 %v720
    %1856 = vmatpush.msra.mxu0 %v717
    %1857 = vmatpush.msra.mxu0 %v714
    %1858 = vmatpush.msra.mxu0 %v711
    %1859 = vmatpush.msra.mxu0 %v708
    %1860 = vmatpush.msra.mxu0 %v705
    %1861 = vmatpush.msra.mxu0 %v702
    %1862 = vmatpush.msra.mxu0 %v699
    %1863 = vmatmul.f32.gmra.mxu0 %v1677
    %v1864 = vpop.f32.mrf.mxu0
    %v1865 = vadd.f32 0.0, %v1864
    %1866 = vdwg.mxu0
    %1867 = vmatpush.msra.mxu0 %v745
    %1868 = vmatpush.msra.mxu0 %v742
    %1869 = vmatpush.msra.mxu0 %v739
    %1870 = vmatpush.msra.mxu0 %v736
    %1871 = vmatpush.msra.mxu0 %v733
    %1872 = vmatpush.msra.mxu0 %v730
    %1873 = vmatpush.msra.mxu0 %v727
    %1874 = vmatpush.msra.mxu0 %v724
    %1875 = vmatpush.msra.mxu0 %v721
    %1876 = vmatpush.msra.mxu0 %v718
    %1877 = vmatpush.msra.mxu0 %v715
    %1878 = vmatpush.msra.mxu0 %v712
    %1879 = vmatpush.msra.mxu0 %v709
    %1880 = vmatpush.msra.mxu0 %v706
    %1881 = vmatpush.msra.mxu0 %v703
    %1882 = vmatpush.msra.mxu0 %v700
    %1883 = vmatmul.f32.gmra.mxu0 %v1677
    %v1884 = vpop.f32.mrf.mxu0
    %v1885 = vadd.f32 0.0, %v1884
    %1886 = vdwg.mxu0
    %1887 = vmatpush.msra.mxu0 %v746
    %1888 = vmatpush.msra.mxu0 %v743
    %1889 = vmatpush.msra.mxu0 %v740
    %1890 = vmatpush.msra.mxu0 %v737
    %1891 = vmatpush.msra.mxu0 %v734
    %1892 = vmatpush.msra.mxu0 %v731
    %1893 = vmatpush.msra.mxu0 %v728
    %1894 = vmatpush.msra.mxu0 %v725
    %1895 = vmatpush.msra.mxu0 %v722
    %1896 = vmatpush.msra.mxu0 %v719
    %1897 = vmatpush.msra.mxu0 %v716
    %1898 = vmatpush.msra.mxu0 %v713
    %1899 = vmatpush.msra.mxu0 %v710
    %1900 = vmatpush.msra.mxu0 %v707
    %1901 = vmatpush.msra.mxu0 %v704
    %1902 = vmatpush.msra.mxu0 %v701
    %1903 = vmatmul.f32.gmra.mxu0 %v1677
    %v1904 = vpop.f32.mrf.mxu0
    %v1905 = vadd.f32 0.0, %v1904
    %1906 = vdwg.mxu0
    %v1907 = vadd.f32 %v1805, %v1865
    %v1908 = vadd.f32 %v1825, %v1885
    %v1909 = vxor.u32 %v1907, 2147483648
    %v1910 = vxor.u32 %v1908, 2147483648
    %v1911 = vmul.f32 %v1909, 1.442695
    %v1912 = vpow.pop %v1911
    %v1913 = vmul.f32 %v1910, 1.442695
    %v1914 = vpow.pop %v1913
    %v1915 = vadd.f32 %v1912, 1.0
    %v1916 = vadd.f32 %v1914, 1.0
    %v1917 = vrcp.pop %v1915
    %v1918 = vmul.f32 %v1915, %v1917
    %v1919 = vsub.f32 1.0, %v1918
    %v1920 = vmul.f32 %v1917, %v1919
    %v1921 = vadd.f32 %v1917, %v1920
    %vm1922 = vweird.f32 %v1915
    %vm1923 = vweird.f32 %v1917
    %vm1924 = vmor %vm1922, %vm1923
    %v1925 = vsel %vm1924, %v1917, %v1921
    %v1926 = vand.u32 2147483647, %v1915
    %vm1927 = vcmp.eq.f32.partialorder %v1926, 8.507059e+37
    %v1928 = vand.u32 %v1915, 2147483648
    %v1929 = vor.u32 1.1754944e-38, %v1928
    %v1930 = vsel %vm1927, %v1929, %v1925
    %v1931 = vmul.f32 1.0, %v1930
    %v1932 = vrcp.pop %v1916
    %v1933 = vmul.f32 %v1916, %v1932
    %v1934 = vsub.f32 1.0, %v1933
    %v1935 = vmul.f32 %v1932, %v1934
    %v1936 = vadd.f32 %v1932, %v1935
    %vm1937 = vweird.f32 %v1916
    %vm1938 = vweird.f32 %v1932
    %vm1939 = vmor %vm1937, %vm1938
    %v1940 = vsel %vm1939, %v1932, %v1936
    %v1941 = vand.u32 2147483647, %v1916
    %vm1942 = vcmp.eq.f32.partialorder %v1941, 8.507059e+37
    %v1943 = vand.u32 %v1916, 2147483648
    %v1944 = vor.u32 1.1754944e-38, %v1943
    %v1945 = vsel %vm1942, %v1944, %v1940
    %v1946 = vmul.f32 1.0, %v1945
    %v1947 = vmul.f32 %v1931, %v1905
    %v1948 = vadd.f32 %v1845, %v1947
    %v1949 = vtanh.pop %v1948
    %v1950 = vsub.f32 %v1677, %v1949
    %v1951 = vmul.f32 %v1946, %v1950
    %v1952 = vadd.f32 %v1949, %v1951
    %v1953 = vld [vmem:[#allocation2 + $0x90] sm:$0xff]
    %v1954 = vld [vmem:[#allocation2 + $0x98] sm:$0xff]
    %v1955 = vld [vmem:[#allocation2 + $0xa0] sm:$0xff]
    %1956 = vmatpush.msra.mxu0 %v373
    %1957 = vmatpush.msra.mxu0 %v370
    %1958 = vmatpush.msra.mxu0 %v367
    %1959 = vmatpush.msra.mxu0 %v364
    %1960 = vmatpush.msra.mxu0 %v361
    %1961 = vmatpush.msra.mxu0 %v358
    %1962 = vmatpush.msra.mxu0 %v355
    %1963 = vmatpush.msra.mxu0 %v352
    %1964 = vmatpush.msra.mxu0 %v349
    %1965 = vmatpush.msra.mxu0 %v346
    %1966 = vmatpush.msra.mxu0 %v343
    %1967 = vmatpush.msra.mxu0 %v340
    %1968 = vmatpush.msra.mxu0 %v337
    %1969 = vmatpush.msra.mxu0 %v334
    %1970 = vmatpush.msra.mxu0 %v331
    %1971 = vmatpush.msra.mxu0 %v328
    %1972 = vmatmul.f32.gmra.mxu0 %v1786
    %v1973 = vpop.f32.mrf.mxu0
    %v1974 = vadd.f32 0.0, %v1973
    %1975 = vdwg.mxu0
    %1976 = vmatpush.msra.mxu0 %v374
    %1977 = vmatpush.msra.mxu0 %v371
    %1978 = vmatpush.msra.mxu0 %v368
    %1979 = vmatpush.msra.mxu0 %v365
    %1980 = vmatpush.msra.mxu0 %v362
    %1981 = vmatpush.msra.mxu0 %v359
    %1982 = vmatpush.msra.mxu0 %v356
    %1983 = vmatpush.msra.mxu0 %v353
    %1984 = vmatpush.msra.mxu0 %v350
    %1985 = vmatpush.msra.mxu0 %v347
    %1986 = vmatpush.msra.mxu0 %v344
    %1987 = vmatpush.msra.mxu0 %v341
    %1988 = vmatpush.msra.mxu0 %v338
    %1989 = vmatpush.msra.mxu0 %v335
    %1990 = vmatpush.msra.mxu0 %v332
    %1991 = vmatpush.msra.mxu0 %v329
    %1992 = vmatmul.f32.gmra.mxu0 %v1786
    %v1993 = vpop.f32.mrf.mxu0
    %v1994 = vadd.f32 0.0, %v1993
    %1995 = vdwg.mxu0
    %1996 = vmatpush.msra.mxu0 %v375
    %1997 = vmatpush.msra.mxu0 %v372
    %1998 = vmatpush.msra.mxu0 %v369
    %1999 = vmatpush.msra.mxu0 %v366
    %2000 = vmatpush.msra.mxu0 %v363
    %2001 = vmatpush.msra.mxu0 %v360
    %2002 = vmatpush.msra.mxu0 %v357
    %2003 = vmatpush.msra.mxu0 %v354
    %2004 = vmatpush.msra.mxu0 %v351
    %2005 = vmatpush.msra.mxu0 %v348
    %2006 = vmatpush.msra.mxu0 %v345
    %2007 = vmatpush.msra.mxu0 %v342
    %2008 = vmatpush.msra.mxu0 %v339
    %2009 = vmatpush.msra.mxu0 %v336
    %2010 = vmatpush.msra.mxu0 %v333
    %2011 = vmatpush.msra.mxu0 %v330
    %2012 = vmatmul.f32.gmra.mxu0 %v1786
    %v2013 = vpop.f32.mrf.mxu0
    %v2014 = vadd.f32 0.0, %v2013
    %2015 = vdwg.mxu0
    %v2016 = vadd.f32 %v1953, %v1974
    %v2017 = vadd.f32 %v1954, %v1994
    %v2018 = vxor.u32 %v2016, 2147483648
    %v2019 = vxor.u32 %v2017, 2147483648
    %v2020 = vmul.f32 %v2018, 1.442695
    %v2021 = vpow.pop %v2020
    %v2022 = vmul.f32 %v2019, 1.442695
    %v2023 = vpow.pop %v2022
    %v2024 = vadd.f32 %v2021, 1.0
    %v2025 = vadd.f32 %v2023, 1.0
    %v2026 = vrcp.pop %v2024
    %v2027 = vmul.f32 %v2024, %v2026
    %v2028 = vsub.f32 1.0, %v2027
    %v2029 = vmul.f32 %v2026, %v2028
    %v2030 = vadd.f32 %v2026, %v2029
    %vm2031 = vweird.f32 %v2024
    %vm2032 = vweird.f32 %v2026
    %vm2033 = vmor %vm2031, %vm2032
    %v2034 = vsel %vm2033, %v2026, %v2030
    %v2035 = vand.u32 2147483647, %v2024
    %vm2036 = vcmp.eq.f32.partialorder %v2035, 8.507059e+37
    %v2037 = vand.u32 %v2024, 2147483648
    %v2038 = vor.u32 1.1754944e-38, %v2037
    %v2039 = vsel %vm2036, %v2038, %v2034
    %v2040 = vmul.f32 1.0, %v2039
    %v2041 = vrcp.pop %v2025
    %v2042 = vmul.f32 %v2025, %v2041
    %v2043 = vsub.f32 1.0, %v2042
    %v2044 = vmul.f32 %v2041, %v2043
    %v2045 = vadd.f32 %v2041, %v2044
    %vm2046 = vweird.f32 %v2025
    %vm2047 = vweird.f32 %v2041
    %vm2048 = vmor %vm2046, %vm2047
    %v2049 = vsel %vm2048, %v2041, %v2045
    %v2050 = vand.u32 2147483647, %v2025
    %vm2051 = vcmp.eq.f32.partialorder %v2050, 8.507059e+37
    %v2052 = vand.u32 %v2025, 2147483648
    %v2053 = vor.u32 1.1754944e-38, %v2052
    %v2054 = vsel %vm2051, %v2053, %v2049
    %v2055 = vmul.f32 1.0, %v2054
    %v2056 = vmul.f32 %v2040, %v2014
    %v2057 = vadd.f32 %v1955, %v2056
    %v2058 = vtanh.pop %v2057
    %v2059 = vsub.f32 %v1786, %v2058
    %v2060 = vmul.f32 %v2055, %v2059
    %v2061 = vadd.f32 %v2058, %v2060
    %2062 = vmatpush.msra.mxu0 %v636
    %2063 = vmatpush.msra.mxu0 %v633
    %2064 = vmatpush.msra.mxu0 %v630
    %2065 = vmatpush.msra.mxu0 %v627
    %2066 = vmatpush.msra.mxu0 %v624
    %2067 = vmatpush.msra.mxu0 %v621
    %2068 = vmatpush.msra.mxu0 %v618
    %2069 = vmatpush.msra.mxu0 %v615
    %2070 = vmatpush.msra.mxu0 %v612
    %2071 = vmatpush.msra.mxu0 %v609
    %2072 = vmatpush.msra.mxu0 %v606
    %2073 = vmatpush.msra.mxu0 %v603
    %2074 = vmatpush.msra.mxu0 %v600
    %2075 = vmatpush.msra.mxu0 %v597
    %2076 = vmatpush.msra.mxu0 %v594
    %2077 = vmatpush.msra.mxu0 %v591
    %2078 = vmatmul.f32.gmra.mxu0 %v1786
    %v2079 = vpop.f32.mrf.mxu0
    %v2080 = vadd.f32 0.0, %v2079
    %2081 = vdwg.mxu0
    %2082 = vmatpush.msra.mxu0 %v637
    %2083 = vmatpush.msra.mxu0 %v634
    %2084 = vmatpush.msra.mxu0 %v631
    %2085 = vmatpush.msra.mxu0 %v628
    %2086 = vmatpush.msra.mxu0 %v625
    %2087 = vmatpush.msra.mxu0 %v622
    %2088 = vmatpush.msra.mxu0 %v619
    %2089 = vmatpush.msra.mxu0 %v616
    %2090 = vmatpush.msra.mxu0 %v613
    %2091 = vmatpush.msra.mxu0 %v610
    %2092 = vmatpush.msra.mxu0 %v607
    %2093 = vmatpush.msra.mxu0 %v604
    %2094 = vmatpush.msra.mxu0 %v601
    %2095 = vmatpush.msra.mxu0 %v598
    %2096 = vmatpush.msra.mxu0 %v595
    %2097 = vmatpush.msra.mxu0 %v592
    %2098 = vmatmul.f32.gmra.mxu0 %v1786
    %v2099 = vpop.f32.mrf.mxu0
    %v2100 = vadd.f32 0.0, %v2099
    %2101 = vdwg.mxu0
    %2102 = vmatpush.msra.mxu0 %v638
    %2103 = vmatpush.msra.mxu0 %v635
    %2104 = vmatpush.msra.mxu0 %v632
    %2105 = vmatpush.msra.mxu0 %v629
    %2106 = vmatpush.msra.mxu0 %v626
    %2107 = vmatpush.msra.mxu0 %v623
    %2108 = vmatpush.msra.mxu0 %v620
    %2109 = vmatpush.msra.mxu0 %v617
    %2110 = vmatpush.msra.mxu0 %v614
    %2111 = vmatpush.msra.mxu0 %v611
    %2112 = vmatpush.msra.mxu0 %v608
    %2113 = vmatpush.msra.mxu0 %v605
    %2114 = vmatpush.msra.mxu0 %v602
    %2115 = vmatpush.msra.mxu0 %v599
    %2116 = vmatpush.msra.mxu0 %v596
    %2117 = vmatpush.msra.mxu0 %v593
    %2118 = vmatmul.f32.gmra.mxu0 %v1786
    %v2119 = vpop.f32.mrf.mxu0
    %v2120 = vadd.f32 0.0, %v2119
    %2121 = vdwg.mxu0
    %2122 = vmatpush.msra.mxu0 %v744
    %2123 = vmatpush.msra.mxu0 %v741
    %2124 = vmatpush.msra.mxu0 %v738
    %2125 = vmatpush.msra.mxu0 %v735
    %2126 = vmatpush.msra.mxu0 %v732
    %2127 = vmatpush.msra.mxu0 %v729
    %2128 = vmatpush.msra.mxu0 %v726
    %2129 = vmatpush.msra.mxu0 %v723
    %2130 = vmatpush.msra.mxu0 %v720
    %2131 = vmatpush.msra.mxu0 %v717
    %2132 = vmatpush.msra.mxu0 %v714
    %2133 = vmatpush.msra.mxu0 %v711
    %2134 = vmatpush.msra.mxu0 %v708
    %2135 = vmatpush.msra.mxu0 %v705
    %2136 = vmatpush.msra.mxu0 %v702
    %2137 = vmatpush.msra.mxu0 %v699
    %2138 = vmatmul.f32.gmra.mxu0 %v1952
    %v2139 = vpop.f32.mrf.mxu0
    %v2140 = vadd.f32 0.0, %v2139
    %2141 = vdwg.mxu0
    %2142 = vmatpush.msra.mxu0 %v745
    %2143 = vmatpush.msra.mxu0 %v742
    %2144 = vmatpush.msra.mxu0 %v739
    %2145 = vmatpush.msra.mxu0 %v736
    %2146 = vmatpush.msra.mxu0 %v733
    %2147 = vmatpush.msra.mxu0 %v730
    %2148 = vmatpush.msra.mxu0 %v727
    %2149 = vmatpush.msra.mxu0 %v724
    %2150 = vmatpush.msra.mxu0 %v721
    %2151 = vmatpush.msra.mxu0 %v718
    %2152 = vmatpush.msra.mxu0 %v715
    %2153 = vmatpush.msra.mxu0 %v712
    %2154 = vmatpush.msra.mxu0 %v709
    %2155 = vmatpush.msra.mxu0 %v706
    %2156 = vmatpush.msra.mxu0 %v703
    %2157 = vmatpush.msra.mxu0 %v700
    %2158 = vmatmul.f32.gmra.mxu0 %v1952
    %v2159 = vpop.f32.mrf.mxu0
    %v2160 = vadd.f32 0.0, %v2159
    %2161 = vdwg.mxu0
    %2162 = vmatpush.msra.mxu0 %v746
    %2163 = vmatpush.msra.mxu0 %v743
    %2164 = vmatpush.msra.mxu0 %v740
    %2165 = vmatpush.msra.mxu0 %v737
    %2166 = vmatpush.msra.mxu0 %v734
    %2167 = vmatpush.msra.mxu0 %v731
    %2168 = vmatpush.msra.mxu0 %v728
    %2169 = vmatpush.msra.mxu0 %v725
    %2170 = vmatpush.msra.mxu0 %v722
    %2171 = vmatpush.msra.mxu0 %v719
    %2172 = vmatpush.msra.mxu0 %v716
    %2173 = vmatpush.msra.mxu0 %v713
    %2174 = vmatpush.msra.mxu0 %v710
    %2175 = vmatpush.msra.mxu0 %v707
    %2176 = vmatpush.msra.mxu0 %v704
    %2177 = vmatpush.msra.mxu0 %v701
    %2178 = vmatmul.f32.gmra.mxu0 %v1952
    %v2179 = vpop.f32.mrf.mxu0
    %v2180 = vadd.f32 0.0, %v2179
    %2181 = vdwg.mxu0
    %v2182 = vadd.f32 %v2080, %v2140
    %v2183 = vadd.f32 %v2100, %v2160
    %v2184 = vxor.u32 %v2182, 2147483648
    %v2185 = vxor.u32 %v2183, 2147483648
    %v2186 = vmul.f32 %v2184, 1.442695
    %v2187 = vpow.pop %v2186
    %v2188 = vmul.f32 %v2185, 1.442695
    %v2189 = vpow.pop %v2188
    %v2190 = vadd.f32 %v2187, 1.0
    %v2191 = vadd.f32 %v2189, 1.0
    %v2192 = vrcp.pop %v2190
    %v2193 = vmul.f32 %v2190, %v2192
    %v2194 = vsub.f32 1.0, %v2193
    %v2195 = vmul.f32 %v2192, %v2194
    %v2196 = vadd.f32 %v2192, %v2195
    %vm2197 = vweird.f32 %v2190
    %vm2198 = vweird.f32 %v2192
    %vm2199 = vmor %vm2197, %vm2198
    %v2200 = vsel %vm2199, %v2192, %v2196
    %v2201 = vand.u32 2147483647, %v2190
    %vm2202 = vcmp.eq.f32.partialorder %v2201, 8.507059e+37
    %v2203 = vand.u32 %v2190, 2147483648
    %v2204 = vor.u32 1.1754944e-38, %v2203
    %v2205 = vsel %vm2202, %v2204, %v2200
    %v2206 = vmul.f32 1.0, %v2205
    %v2207 = vrcp.pop %v2191
    %v2208 = vmul.f32 %v2191, %v2207
    %v2209 = vsub.f32 1.0, %v2208
    %v2210 = vmul.f32 %v2207, %v2209
    %v2211 = vadd.f32 %v2207, %v2210
    %vm2212 = vweird.f32 %v2191
    %vm2213 = vweird.f32 %v2207
    %vm2214 = vmor %vm2212, %vm2213
    %v2215 = vsel %vm2214, %v2207, %v2211
    %v2216 = vand.u32 2147483647, %v2191
    %vm2217 = vcmp.eq.f32.partialorder %v2216, 8.507059e+37
    %v2218 = vand.u32 %v2191, 2147483648
    %v2219 = vor.u32 1.1754944e-38, %v2218
    %v2220 = vsel %vm2217, %v2219, %v2215
    %v2221 = vmul.f32 1.0, %v2220
    %v2222 = vmul.f32 %v2206, %v2180
    %v2223 = vadd.f32 %v2120, %v2222
    %v2224 = vtanh.pop %v2223
    %v2225 = vsub.f32 %v1952, %v2224
    %v2226 = vmul.f32 %v2221, %v2225
    %v2227 = vadd.f32 %v2224, %v2226
    %v2228 = vld [vmem:[#allocation2 + $0xa8] sm:$0xff]
    %v2229 = vld [vmem:[#allocation2 + $0xb0] sm:$0xff]
    %v2230 = vld [vmem:[#allocation2 + $0xb8] sm:$0xff]
    %2231 = vmatpush.msra.mxu0 %v373
    %2232 = vmatpush.msra.mxu0 %v370
    %2233 = vmatpush.msra.mxu0 %v367
    %2234 = vmatpush.msra.mxu0 %v364
    %2235 = vmatpush.msra.mxu0 %v361
    %2236 = vmatpush.msra.mxu0 %v358
    %2237 = vmatpush.msra.mxu0 %v355
    %2238 = vmatpush.msra.mxu0 %v352
    %2239 = vmatpush.msra.mxu0 %v349
    %2240 = vmatpush.msra.mxu0 %v346
    %2241 = vmatpush.msra.mxu0 %v343
    %2242 = vmatpush.msra.mxu0 %v340
    %2243 = vmatpush.msra.mxu0 %v337
    %2244 = vmatpush.msra.mxu0 %v334
    %2245 = vmatpush.msra.mxu0 %v331
    %2246 = vmatpush.msra.mxu0 %v328
    %2247 = vmatmul.f32.gmra.mxu0 %v2061
    %v2248 = vpop.f32.mrf.mxu0
    %v2249 = vadd.f32 0.0, %v2248
    %2250 = vdwg.mxu0
    %2251 = vmatpush.msra.mxu0 %v374
    %2252 = vmatpush.msra.mxu0 %v371
    %2253 = vmatpush.msra.mxu0 %v368
    %2254 = vmatpush.msra.mxu0 %v365
    %2255 = vmatpush.msra.mxu0 %v362
    %2256 = vmatpush.msra.mxu0 %v359
    %2257 = vmatpush.msra.mxu0 %v356
    %2258 = vmatpush.msra.mxu0 %v353
    %2259 = vmatpush.msra.mxu0 %v350
    %2260 = vmatpush.msra.mxu0 %v347
    %2261 = vmatpush.msra.mxu0 %v344
    %2262 = vmatpush.msra.mxu0 %v341
    %2263 = vmatpush.msra.mxu0 %v338
    %2264 = vmatpush.msra.mxu0 %v335
    %2265 = vmatpush.msra.mxu0 %v332
    %2266 = vmatpush.msra.mxu0 %v329
    %2267 = vmatmul.f32.gmra.mxu0 %v2061
    %v2268 = vpop.f32.mrf.mxu0
    %v2269 = vadd.f32 0.0, %v2268
    %2270 = vdwg.mxu0
    %2271 = vmatpush.msra.mxu0 %v375
    %2272 = vmatpush.msra.mxu0 %v372
    %2273 = vmatpush.msra.mxu0 %v369
    %2274 = vmatpush.msra.mxu0 %v366
    %2275 = vmatpush.msra.mxu0 %v363
    %2276 = vmatpush.msra.mxu0 %v360
    %2277 = vmatpush.msra.mxu0 %v357
    %2278 = vmatpush.msra.mxu0 %v354
    %2279 = vmatpush.msra.mxu0 %v351
    %2280 = vmatpush.msra.mxu0 %v348
    %2281 = vmatpush.msra.mxu0 %v345
    %2282 = vmatpush.msra.mxu0 %v342
    %2283 = vmatpush.msra.mxu0 %v339
    %2284 = vmatpush.msra.mxu0 %v336
    %2285 = vmatpush.msra.mxu0 %v333
    %2286 = vmatpush.msra.mxu0 %v330
    %2287 = vmatmul.f32.gmra.mxu0 %v2061
    %v2288 = vpop.f32.mrf.mxu0
    %v2289 = vadd.f32 0.0, %v2288
    %2290 = vdwg.mxu0
    %v2291 = vadd.f32 %v2228, %v2249
    %v2292 = vadd.f32 %v2229, %v2269
    %v2293 = vxor.u32 %v2291, 2147483648
    %v2294 = vxor.u32 %v2292, 2147483648
    %v2295 = vmul.f32 %v2293, 1.442695
    %v2296 = vpow.pop %v2295
    %v2297 = vmul.f32 %v2294, 1.442695
    %v2298 = vpow.pop %v2297
    %v2299 = vadd.f32 %v2296, 1.0
    %v2300 = vadd.f32 %v2298, 1.0
    %v2301 = vrcp.pop %v2299
    %v2302 = vmul.f32 %v2299, %v2301
    %v2303 = vsub.f32 1.0, %v2302
    %v2304 = vmul.f32 %v2301, %v2303
    %v2305 = vadd.f32 %v2301, %v2304
    %vm2306 = vweird.f32 %v2299
    %vm2307 = vweird.f32 %v2301
    %vm2308 = vmor %vm2306, %vm2307
    %v2309 = vsel %vm2308, %v2301, %v2305
    %v2310 = vand.u32 2147483647, %v2299
    %vm2311 = vcmp.eq.f32.partialorder %v2310, 8.507059e+37
    %v2312 = vand.u32 %v2299, 2147483648
    %v2313 = vor.u32 1.1754944e-38, %v2312
    %v2314 = vsel %vm2311, %v2313, %v2309
    %v2315 = vmul.f32 1.0, %v2314
    %v2316 = vrcp.pop %v2300
    %v2317 = vmul.f32 %v2300, %v2316
    %v2318 = vsub.f32 1.0, %v2317
    %v2319 = vmul.f32 %v2316, %v2318
    %v2320 = vadd.f32 %v2316, %v2319
    %vm2321 = vweird.f32 %v2300
    %vm2322 = vweird.f32 %v2316
    %vm2323 = vmor %vm2321, %vm2322
    %v2324 = vsel %vm2323, %v2316, %v2320
    %v2325 = vand.u32 2147483647, %v2300
    %vm2326 = vcmp.eq.f32.partialorder %v2325, 8.507059e+37
    %v2327 = vand.u32 %v2300, 2147483648
    %v2328 = vor.u32 1.1754944e-38, %v2327
    %v2329 = vsel %vm2326, %v2328, %v2324
    %v2330 = vmul.f32 1.0, %v2329
    %v2331 = vmul.f32 %v2315, %v2289
    %v2332 = vadd.f32 %v2230, %v2331
    %v2333 = vtanh.pop %v2332
    %v2334 = vsub.f32 %v2061, %v2333
    %v2335 = vmul.f32 %v2330, %v2334
    %v2336 = vadd.f32 %v2333, %v2335
    %2337 = vmatpush.msra.mxu0 %v636
    %2338 = vmatpush.msra.mxu0 %v633
    %2339 = vmatpush.msra.mxu0 %v630
    %2340 = vmatpush.msra.mxu0 %v627
    %2341 = vmatpush.msra.mxu0 %v624
    %2342 = vmatpush.msra.mxu0 %v621
    %2343 = vmatpush.msra.mxu0 %v618
    %2344 = vmatpush.msra.mxu0 %v615
    %2345 = vmatpush.msra.mxu0 %v612
    %2346 = vmatpush.msra.mxu0 %v609
    %2347 = vmatpush.msra.mxu0 %v606
    %2348 = vmatpush.msra.mxu0 %v603
    %2349 = vmatpush.msra.mxu0 %v600
    %2350 = vmatpush.msra.mxu0 %v597
    %2351 = vmatpush.msra.mxu0 %v594
    %2352 = vmatpush.msra.mxu0 %v591
    %2353 = vmatmul.f32.gmra.mxu0 %v2061
    %v2354 = vpop.f32.mrf.mxu0
    %v2355 = vadd.f32 0.0, %v2354
    %2356 = vdwg.mxu0
    %2357 = vmatpush.msra.mxu0 %v637
    %2358 = vmatpush.msra.mxu0 %v634
    %2359 = vmatpush.msra.mxu0 %v631
    %2360 = vmatpush.msra.mxu0 %v628
    %2361 = vmatpush.msra.mxu0 %v625
    %2362 = vmatpush.msra.mxu0 %v622
    %2363 = vmatpush.msra.mxu0 %v619
    %2364 = vmatpush.msra.mxu0 %v616
    %2365 = vmatpush.msra.mxu0 %v613
    %2366 = vmatpush.msra.mxu0 %v610
    %2367 = vmatpush.msra.mxu0 %v607
    %2368 = vmatpush.msra.mxu0 %v604
    %2369 = vmatpush.msra.mxu0 %v601
    %2370 = vmatpush.msra.mxu0 %v598
    %2371 = vmatpush.msra.mxu0 %v595
    %2372 = vmatpush.msra.mxu0 %v592
    %2373 = vmatmul.f32.gmra.mxu0 %v2061
    %v2374 = vpop.f32.mrf.mxu0
    %v2375 = vadd.f32 0.0, %v2374
    %2376 = vdwg.mxu0
    %2377 = vmatpush.msra.mxu0 %v638
    %2378 = vmatpush.msra.mxu0 %v635
    %2379 = vmatpush.msra.mxu0 %v632
    %2380 = vmatpush.msra.mxu0 %v629
    %2381 = vmatpush.msra.mxu0 %v626
    %2382 = vmatpush.msra.mxu0 %v623
    %2383 = vmatpush.msra.mxu0 %v620
    %2384 = vmatpush.msra.mxu0 %v617
    %2385 = vmatpush.msra.mxu0 %v614
    %2386 = vmatpush.msra.mxu0 %v611
    %2387 = vmatpush.msra.mxu0 %v608
    %2388 = vmatpush.msra.mxu0 %v605
    %2389 = vmatpush.msra.mxu0 %v602
    %2390 = vmatpush.msra.mxu0 %v599
    %2391 = vmatpush.msra.mxu0 %v596
    %2392 = vmatpush.msra.mxu0 %v593
    %2393 = vmatmul.f32.gmra.mxu0 %v2061
    %v2394 = vpop.f32.mrf.mxu0
    %v2395 = vadd.f32 0.0, %v2394
    %2396 = vdwg.mxu0
    %2397 = vmatpush.msra.mxu0 %v744
    %2398 = vmatpush.msra.mxu0 %v741
    %2399 = vmatpush.msra.mxu0 %v738
    %2400 = vmatpush.msra.mxu0 %v735
    %2401 = vmatpush.msra.mxu0 %v732
    %2402 = vmatpush.msra.mxu0 %v729
    %2403 = vmatpush.msra.mxu0 %v726
    %2404 = vmatpush.msra.mxu0 %v723
    %2405 = vmatpush.msra.mxu0 %v720
    %2406 = vmatpush.msra.mxu0 %v717
    %2407 = vmatpush.msra.mxu0 %v714
    %2408 = vmatpush.msra.mxu0 %v711
    %2409 = vmatpush.msra.mxu0 %v708
    %2410 = vmatpush.msra.mxu0 %v705
    %2411 = vmatpush.msra.mxu0 %v702
    %2412 = vmatpush.msra.mxu0 %v699
    %2413 = vmatmul.f32.gmra.mxu0 %v2227
    %v2414 = vpop.f32.mrf.mxu0
    %v2415 = vadd.f32 0.0, %v2414
    %2416 = vdwg.mxu0
    %2417 = vmatpush.msra.mxu0 %v745
    %2418 = vmatpush.msra.mxu0 %v742
    %2419 = vmatpush.msra.mxu0 %v739
    %2420 = vmatpush.msra.mxu0 %v736
    %2421 = vmatpush.msra.mxu0 %v733
    %2422 = vmatpush.msra.mxu0 %v730
    %2423 = vmatpush.msra.mxu0 %v727
    %2424 = vmatpush.msra.mxu0 %v724
    %2425 = vmatpush.msra.mxu0 %v721
    %2426 = vmatpush.msra.mxu0 %v718
    %2427 = vmatpush.msra.mxu0 %v715
    %2428 = vmatpush.msra.mxu0 %v712
    %2429 = vmatpush.msra.mxu0 %v709
    %2430 = vmatpush.msra.mxu0 %v706
    %2431 = vmatpush.msra.mxu0 %v703
    %2432 = vmatpush.msra.mxu0 %v700
    %2433 = vmatmul.f32.gmra.mxu0 %v2227
    %v2434 = vpop.f32.mrf.mxu0
    %v2435 = vadd.f32 0.0, %v2434
    %2436 = vdwg.mxu0
    %2437 = vmatpush.msra.mxu0 %v746
    %2438 = vmatpush.msra.mxu0 %v743
    %2439 = vmatpush.msra.mxu0 %v740
    %2440 = vmatpush.msra.mxu0 %v737
    %2441 = vmatpush.msra.mxu0 %v734
    %2442 = vmatpush.msra.mxu0 %v731
    %2443 = vmatpush.msra.mxu0 %v728
    %2444 = vmatpush.msra.mxu0 %v725
    %2445 = vmatpush.msra.mxu0 %v722
    %2446 = vmatpush.msra.mxu0 %v719
    %2447 = vmatpush.msra.mxu0 %v716
    %2448 = vmatpush.msra.mxu0 %v713
    %2449 = vmatpush.msra.mxu0 %v710
    %2450 = vmatpush.msra.mxu0 %v707
    %2451 = vmatpush.msra.mxu0 %v704
    %2452 = vmatpush.msra.mxu0 %v701
    %2453 = vmatmul.f32.gmra.mxu0 %v2227
    %v2454 = vpop.f32.mrf.mxu0
    %v2455 = vadd.f32 0.0, %v2454
    %2456 = vdwg.mxu0
    %v2457 = vadd.f32 %v2355, %v2415
    %v2458 = vadd.f32 %v2375, %v2435
    %v2459 = vxor.u32 %v2457, 2147483648
    %v2460 = vxor.u32 %v2458, 2147483648
    %v2461 = vmul.f32 %v2459, 1.442695
    %v2462 = vpow.pop %v2461
    %v2463 = vmul.f32 %v2460, 1.442695
    %v2464 = vpow.pop %v2463
    %v2465 = vadd.f32 %v2462, 1.0
    %v2466 = vadd.f32 %v2464, 1.0
    %v2467 = vrcp.pop %v2465
    %v2468 = vmul.f32 %v2465, %v2467
    %v2469 = vsub.f32 1.0, %v2468
    %v2470 = vmul.f32 %v2467, %v2469
    %v2471 = vadd.f32 %v2467, %v2470
    %vm2472 = vweird.f32 %v2465
    %vm2473 = vweird.f32 %v2467
    %vm2474 = vmor %vm2472, %vm2473
    %v2475 = vsel %vm2474, %v2467, %v2471
    %v2476 = vand.u32 2147483647, %v2465
    %vm2477 = vcmp.eq.f32.partialorder %v2476, 8.507059e+37
    %v2478 = vand.u32 %v2465, 2147483648
    %v2479 = vor.u32 1.1754944e-38, %v2478
    %v2480 = vsel %vm2477, %v2479, %v2475
    %v2481 = vmul.f32 1.0, %v2480
    %v2482 = vrcp.pop %v2466
    %v2483 = vmul.f32 %v2466, %v2482
    %v2484 = vsub.f32 1.0, %v2483
    %v2485 = vmul.f32 %v2482, %v2484
    %v2486 = vadd.f32 %v2482, %v2485
    %vm2487 = vweird.f32 %v2466
    %vm2488 = vweird.f32 %v2482
    %vm2489 = vmor %vm2487, %vm2488
    %v2490 = vsel %vm2489, %v2482, %v2486
    %v2491 = vand.u32 2147483647, %v2466
    %vm2492 = vcmp.eq.f32.partialorder %v2491, 8.507059e+37
    %v2493 = vand.u32 %v2466, 2147483648
    %v2494 = vor.u32 1.1754944e-38, %v2493
    %v2495 = vsel %vm2492, %v2494, %v2490
    %v2496 = vmul.f32 1.0, %v2495
    %v2497 = vmul.f32 %v2481, %v2455
    %v2498 = vadd.f32 %v2395, %v2497
    %v2499 = vtanh.pop %v2498
    %v2500 = vsub.f32 %v2227, %v2499
    %v2501 = vmul.f32 %v2496, %v2500
    %v2502 = vadd.f32 %v2499, %v2501
    %2503 = vmatpush.msra.mxu0 %v636
    %2504 = vmatpush.msra.mxu0 %v633
    %2505 = vmatpush.msra.mxu0 %v630
    %2506 = vmatpush.msra.mxu0 %v627
    %2507 = vmatpush.msra.mxu0 %v624
    %2508 = vmatpush.msra.mxu0 %v621
    %2509 = vmatpush.msra.mxu0 %v618
    %2510 = vmatpush.msra.mxu0 %v615
    %2511 = vmatpush.msra.mxu0 %v612
    %2512 = vmatpush.msra.mxu0 %v609
    %2513 = vmatpush.msra.mxu0 %v606
    %2514 = vmatpush.msra.mxu0 %v603
    %2515 = vmatpush.msra.mxu0 %v600
    %2516 = vmatpush.msra.mxu0 %v597
    %2517 = vmatpush.msra.mxu0 %v594
    %2518 = vmatpush.msra.mxu0 %v591
    %2519 = vmatmul.f32.gmra.mxu0 %v2336
    %v2520 = vpop.f32.mrf.mxu0
    %v2521 = vadd.f32 0.0, %v2520
    %2522 = vdwg.mxu0
    %2523 = vmatpush.msra.mxu0 %v637
    %2524 = vmatpush.msra.mxu0 %v634
    %2525 = vmatpush.msra.mxu0 %v631
    %2526 = vmatpush.msra.mxu0 %v628
    %2527 = vmatpush.msra.mxu0 %v625
    %2528 = vmatpush.msra.mxu0 %v622
    %2529 = vmatpush.msra.mxu0 %v619
    %2530 = vmatpush.msra.mxu0 %v616
    %2531 = vmatpush.msra.mxu0 %v613
    %2532 = vmatpush.msra.mxu0 %v610
    %2533 = vmatpush.msra.mxu0 %v607
    %2534 = vmatpush.msra.mxu0 %v604
    %2535 = vmatpush.msra.mxu0 %v601
    %2536 = vmatpush.msra.mxu0 %v598
    %2537 = vmatpush.msra.mxu0 %v595
    %2538 = vmatpush.msra.mxu0 %v592
    %2539 = vmatmul.f32.gmra.mxu0 %v2336
    %v2540 = vpop.f32.mrf.mxu0
    %v2541 = vadd.f32 0.0, %v2540
    %2542 = vdwg.mxu0
    %2543 = vmatpush.msra.mxu0 %v638
    %2544 = vmatpush.msra.mxu0 %v635
    %2545 = vmatpush.msra.mxu0 %v632
    %2546 = vmatpush.msra.mxu0 %v629
    %2547 = vmatpush.msra.mxu0 %v626
    %2548 = vmatpush.msra.mxu0 %v623
    %2549 = vmatpush.msra.mxu0 %v620
    %2550 = vmatpush.msra.mxu0 %v617
    %2551 = vmatpush.msra.mxu0 %v614
    %2552 = vmatpush.msra.mxu0 %v611
    %2553 = vmatpush.msra.mxu0 %v608
    %2554 = vmatpush.msra.mxu0 %v605
    %2555 = vmatpush.msra.mxu0 %v602
    %2556 = vmatpush.msra.mxu0 %v599
    %2557 = vmatpush.msra.mxu0 %v596
    %2558 = vmatpush.msra.mxu0 %v593
    %2559 = vmatmul.f32.gmra.mxu0 %v2336
    %v2560 = vpop.f32.mrf.mxu0
    %v2561 = vadd.f32 0.0, %v2560
    %2562 = vdwg.mxu0
    %2563 = vmatpush.msra.mxu0 %v744
    %2564 = vmatpush.msra.mxu0 %v741
    %2565 = vmatpush.msra.mxu0 %v738
    %2566 = vmatpush.msra.mxu0 %v735
    %2567 = vmatpush.msra.mxu0 %v732
    %2568 = vmatpush.msra.mxu0 %v729
    %2569 = vmatpush.msra.mxu0 %v726
    %2570 = vmatpush.msra.mxu0 %v723
    %2571 = vmatpush.msra.mxu0 %v720
    %2572 = vmatpush.msra.mxu0 %v717
    %2573 = vmatpush.msra.mxu0 %v714
    %2574 = vmatpush.msra.mxu0 %v711
    %2575 = vmatpush.msra.mxu0 %v708
    %2576 = vmatpush.msra.mxu0 %v705
    %2577 = vmatpush.msra.mxu0 %v702
    %2578 = vmatpush.msra.mxu0 %v699
    %2579 = vmatmul.f32.gmra.mxu0 %v2502
    %v2580 = vpop.f32.mrf.mxu0
    %v2581 = vadd.f32 0.0, %v2580
    %2582 = vdwg.mxu0
    %2583 = vmatpush.msra.mxu0 %v745
    %2584 = vmatpush.msra.mxu0 %v742
    %2585 = vmatpush.msra.mxu0 %v739
    %2586 = vmatpush.msra.mxu0 %v736
    %2587 = vmatpush.msra.mxu0 %v733
    %2588 = vmatpush.msra.mxu0 %v730
    %2589 = vmatpush.msra.mxu0 %v727
    %2590 = vmatpush.msra.mxu0 %v724
    %2591 = vmatpush.msra.mxu0 %v721
    %2592 = vmatpush.msra.mxu0 %v718
    %2593 = vmatpush.msra.mxu0 %v715
    %2594 = vmatpush.msra.mxu0 %v712
    %2595 = vmatpush.msra.mxu0 %v709
    %2596 = vmatpush.msra.mxu0 %v706
    %2597 = vmatpush.msra.mxu0 %v703
    %2598 = vmatpush.msra.mxu0 %v700
    %2599 = vmatmul.f32.gmra.mxu0 %v2502
    %v2600 = vpop.f32.mrf.mxu0
    %v2601 = vadd.f32 0.0, %v2600
    %2602 = vdwg.mxu0
    %2603 = vmatpush.msra.mxu0 %v746
    %2604 = vmatpush.msra.mxu0 %v743
    %2605 = vmatpush.msra.mxu0 %v740
    %2606 = vmatpush.msra.mxu0 %v737
    %2607 = vmatpush.msra.mxu0 %v734
    %2608 = vmatpush.msra.mxu0 %v731
    %2609 = vmatpush.msra.mxu0 %v728
    %2610 = vmatpush.msra.mxu0 %v725
    %2611 = vmatpush.msra.mxu0 %v722
    %2612 = vmatpush.msra.mxu0 %v719
    %2613 = vmatpush.msra.mxu0 %v716
    %2614 = vmatpush.msra.mxu0 %v713
    %2615 = vmatpush.msra.mxu0 %v710
    %2616 = vmatpush.msra.mxu0 %v707
    %2617 = vmatpush.msra.mxu0 %v704
    %2618 = vmatpush.msra.mxu0 %v701
    %2619 = vmatmul.f32.gmra.mxu0 %v2502
    %v2620 = vpop.f32.mrf.mxu0
    %v2621 = vadd.f32 0.0, %v2620
    %2622 = vdwg.mxu0
    %v2623 = vadd.f32 %v2521, %v2581
    %v2624 = vadd.f32 %v2541, %v2601
    %v2625 = vxor.u32 %v2623, 2147483648
    %v2626 = vxor.u32 %v2624, 2147483648
    %v2627 = vmul.f32 %v2625, 1.442695
    %v2628 = vpow.pop %v2627
    %v2629 = vmul.f32 %v2626, 1.442695
    %v2630 = vpow.pop %v2629
    %v2631 = vadd.f32 %v2628, 1.0
    %v2632 = vadd.f32 %v2630, 1.0
    %v2633 = vrcp.pop %v2631
    %v2634 = vmul.f32 %v2631, %v2633
    %v2635 = vsub.f32 1.0, %v2634
    %v2636 = vmul.f32 %v2633, %v2635
    %v2637 = vadd.f32 %v2633, %v2636
    %vm2638 = vweird.f32 %v2631
    %vm2639 = vweird.f32 %v2633
    %vm2640 = vmor %vm2638, %vm2639
    %v2641 = vsel %vm2640, %v2633, %v2637
    %v2642 = vand.u32 2147483647, %v2631
    %vm2643 = vcmp.eq.f32.partialorder %v2642, 8.507059e+37
    %v2644 = vand.u32 %v2631, 2147483648
    %v2645 = vor.u32 1.1754944e-38, %v2644
    %v2646 = vsel %vm2643, %v2645, %v2641
    %v2647 = vmul.f32 1.0, %v2646
    %v2648 = vrcp.pop %v2632
    %v2649 = vmul.f32 %v2632, %v2648
    %v2650 = vsub.f32 1.0, %v2649
    %v2651 = vmul.f32 %v2648, %v2650
    %v2652 = vadd.f32 %v2648, %v2651
    %vm2653 = vweird.f32 %v2632
    %vm2654 = vweird.f32 %v2648
    %vm2655 = vmor %vm2653, %vm2654
    %v2656 = vsel %vm2655, %v2648, %v2652
    %v2657 = vand.u32 2147483647, %v2632
    %vm2658 = vcmp.eq.f32.partialorder %v2657, 8.507059e+37
    %v2659 = vand.u32 %v2632, 2147483648
    %v2660 = vor.u32 1.1754944e-38, %v2659
    %v2661 = vsel %vm2658, %v2660, %v2656
    %v2662 = vmul.f32 1.0, %v2661
    %v2663 = vmul.f32 %v2647, %v2621
    %v2664 = vadd.f32 %v2561, %v2663
    %v2665 = vtanh.pop %v2664
    %v2666 = vsub.f32 %v2502, %v2665
    %v2667 = vmul.f32 %v2662, %v2666
    %v2668 = vadd.f32 %v2665, %v2667
    %v2669 = vld [vmem:[#allocation12] sm:$0xff]
    %v2670 = vld [vmem:[#allocation12 + $0x8] sm:$0xff]
    %v2671 = vld [vmem:[#allocation12 + $0x10] sm:$0xff]
    %v2672 = vld [vmem:[#allocation12 + $0x18] sm:$0xff]
    %v2673 = vld [vmem:[#allocation12 + $0x20] sm:$0xff]
    %v2674 = vld [vmem:[#allocation12 + $0x28] sm:$0xff]
    %v2675 = vld [vmem:[#allocation12 + $0x30] sm:$0xff]
    %v2676 = vld [vmem:[#allocation12 + $0x38] sm:$0xff]
    %v2677 = vld [vmem:[#allocation12 + $0x40] sm:$0xff]
    %v2678 = vld [vmem:[#allocation12 + $0x48] sm:$0xff]
    %v2679 = vld [vmem:[#allocation12 + $0x50] sm:$0xff]
    %v2680 = vld [vmem:[#allocation12 + $0x58] sm:$0xff]
    %v2681 = vld [vmem:[#allocation12 + $0x60] sm:$0xff]
    %v2682 = vld [vmem:[#allocation12 + $0x68] sm:$0xff]
    %v2683 = vld [vmem:[#allocation12 + $0x70] sm:$0xff]
    %v2684 = vld [vmem:[#allocation12 + $0x78] sm:$0xff]
    %v2685 = vld [vmem:[%s6] sm:$0x1]
    %v2687 = vperm.slane %v2685, 0
    %2689 = vmatpush.msra.mxu0 %v2684
    %2690 = vmatpush.msra.mxu0 %v2683
    %2691 = vmatpush.msra.mxu0 %v2682
    %2692 = vmatpush.msra.mxu0 %v2681
    %2693 = vmatpush.msra.mxu0 %v2680
    %2694 = vmatpush.msra.mxu0 %v2679
    %2695 = vmatpush.msra.mxu0 %v2678
    %2696 = vmatpush.msra.mxu0 %v2677
    %2697 = vmatpush.msra.mxu0 %v2676
    %2698 = vmatpush.msra.mxu0 %v2675
    %2699 = vmatpush.msra.mxu0 %v2674
    %2700 = vmatpush.msra.mxu0 %v2673
    %2701 = vmatpush.msra.mxu0 %v2672
    %2702 = vmatpush.msra.mxu0 %v2671
    %2703 = vmatpush.msra.mxu0 %v2670
    %2704 = vmatpush.msra.mxu0 %v2669
    %2705 = vmatmul.f32.gmra.mxu0 %v2668
    %v2706 = vpop.f32.mrf.mxu0
    %v2707 = vadd.f32 %v2687, %v2706
    %2708 = vdwg.mxu0
    %2709 = vst [vmem:[#allocation14] sm:$0xff] %v2707
    // Predicated region
    $region54: #{tpu_custom_call.1} parent=1 // pred_check
      _
    $region55: #{tpu_custom_call.1} parent=1 // pred_check_branch
      %2711 = sbr.rel (0) target = $region57
    $region56: #{tpu_custom_call.1} parent=1 // pred_region
      %2713 = vsyncadd [#allocation5], 0
      %s2715 = sshll.u32 [#allocation14], 4
      %s2716 = int_to_ptr.vmem [resolvable:$true] %s2715
      %s2717 = sshll.u32 %s7, 4
      %s2718 = int_to_ptr.hbm [resolvable:$true] %s2717
      %2720 = dma.vmem_to_hbm [thread:$0]  %s2716, 128, %s2718, [#allocation5]
    $region57: #{tpu_custom_call.1} parent=1 // pred_fallthru
      _
    // Predicated region
    $region58: #{tpu_custom_call.1} parent=1 // pred_check
      _
    $region59: #{tpu_custom_call.1} parent=1 // pred_check_branch
      %2722 = sbr.rel (0) target = $region61
    $region60: #{tpu_custom_call.1} parent=1 // pred_region
      %2724 = dma.done [#allocation5], 128
    $region61: #{tpu_custom_call.1} parent=1 // pred_fallthru
      _
    %2725 = vsyncpa [#allocation4], 1
    %2726 = vsyncpa [#allocation7], 1
    %2727 = vsyncpa [#allocation10], 1
    %2728 = vsyncpa [#allocation13], 1
    %2729 = vsyncpa [#allocation5], 1

</llo_original>
